<compile_context>
chip_gen: v7x
topology: tpu7x:2x2x1
jax: 0.10.0
libtpu: 0.0.40
codegen_flags: <defaults>
</compile_context>

<pallas_src>
import functools
import math

import jax
import jax.numpy as jnp
from jax.experimental import pallas as pl
from jax.experimental.pallas import tpu as pltpu


def _layernorm(x, gamma, beta, eps=1e-5):
    mu = jnp.mean(x, axis=-1, keepdims=True)
    var = jnp.mean(jnp.square(x - mu), axis=-1, keepdims=True)
    return (x - mu) * jax.lax.rsqrt(var + eps) * gamma + beta


def structural_attention_kernel(n_heads, out_dim, alpha,
                                feat_ref, bias_ref, wq_ref, wk_ref, wv_ref,
                                w_ffn1_ref, w_ffn2_ref, ln_ref,
                                out_ref, hp_ref):
    bb, n, f_in = feat_ref.shape
    hd = n_heads * out_dim

    f3 = feat_ref[...]                          # (Bb, N, F_in)
    f2 = f3.reshape(bb * n, f_in)               # fused rows for all Bb graphs

    # Fused projections: one big (Bb*N, F_in) @ (F_in, HD) matmul per projection.
    q = jnp.dot(f2, wq_ref[...], preferred_element_type=jnp.float32)    # (Bb*N, HD)
    k = jnp.dot(f2, wk_ref[...], preferred_element_type=jnp.float32)
    v = jnp.dot(f2, wv_ref[...], preferred_element_type=jnp.float32)

    bias = bias_ref[...].astype(jnp.float32)    # (Bb, N, N) additive adjacency mask

    for h in range(n_heads):                    # static loop — n_heads is small
        sl = slice(h * out_dim, (h + 1) * out_dim)
        qh = q[:, sl].reshape(bb, n, out_dim)
        kh = k[:, sl].reshape(bb, n, out_dim)
        vh = v[:, sl].reshape(bb, n, out_dim)
        # Contract the shared last dim directly (no kh.T transpose), batched over Bb.
        e = jnp.einsum("bnd,bmd->bnm", qh, kh,
                       preferred_element_type=jnp.float32)               # (Bb, N, N)
        e = jnp.where(e > 0, e, alpha * e)                               # LeakyReLU(alpha)
        e = e + bias                                                     # adjacency mask
        m = jnp.max(e, axis=-1, keepdims=True)
        p = jnp.exp(e - m)
        inv = pl.reciprocal(jnp.sum(p, axis=-1, keepdims=True), approx=True)
        attn = p * inv                                                   # softmax(dim=-1)
        # Write this head's output into its static lane slice of the scratch (no concat).
        hp_ref[:, :, sl] = jnp.einsum("bnm,bmd->bnd", attn, vh,
                                      preferred_element_type=jnp.float32)

    h_prime = hp_ref[...]                                                # (Bb, N, HD)
    g1, b1 = ln_ref[0:1, :], ln_ref[1:2, :]
    g2, b2 = ln_ref[2:3, :], ln_ref[3:4, :]

    out1 = _layernorm(h_prime, g1, b1)                                   # norm1
    # ffn(cat([out1, f])) without the lane-axis concat: split the contraction.
    ffn = (jnp.dot(out1.reshape(bb * n, hd), w_ffn1_ref[...],
                   preferred_element_type=jnp.float32)
           + jnp.dot(f2, w_ffn2_ref[...],
                     preferred_element_type=jnp.float32)).reshape(bb, n, hd)
    out2 = _layernorm(ffn, g2, b2)                                       # norm2
    out_ref[...] = (out2 + f3).astype(out_ref.dtype)                     # residual


def structural_attention(features, adj, params, *, n_heads, out_dim, alpha=0.2,
                         block_b=8):
    """Mirrors StructuralAttentionLayer.forward (inference mode)."""
    has_batches = features.ndim > 3
    if has_batches:
        b0, w, n, f_in = features.shape
        features = features.reshape(b0 * w, n, f_in)
        adj = adj.reshape(b0 * w, n, n)
    B, N, F_in = features.shape
    HD = n_heads * out_dim
    assert HD == F_in, (
        "residual `output += features` requires n_heads * out_dim == in_dim "
        f"(got {HD} vs {F_in})")

    features = features.astype(jnp.float32)
    # Additive adjacency bias (0 on edges, -9e15 elsewhere) in bf16: values are exact,
    # and the largest per-step DMA stream is halved.
    adj_bias = jnp.where(adj > 0, 0.0, -9e15).astype(jnp.bfloat16)

    # Bb graphs per grid step; keep >= 2 steps when possible so the parallel axis can
    # shard across both v7x TensorCores.
    bb = max(1, min(block_b, pl.cdiv(B, 2))) if B > 1 else 1
    B_pad = pl.cdiv(B, bb) * bb
    if B_pad != B:
        pad = B_pad - B
        features = jnp.pad(features, ((0, pad), (0, 0), (0, 0)))
        adj_bias = jnp.pad(adj_bias, ((0, pad), (0, 0), (0, 0)))

    # Split the ffn weight so the kernel never concatenates along the lane axis.
    w_ffn1 = params["W_ffn_T"][:HD]      # multiplies norm1(h')
    w_ffn2 = params["W_ffn_T"][HD:]      # multiplies the raw features
    # Pack the four LayerNorm vectors into one properly-tiled (8, HD) input.
    ln_pack = jnp.zeros((8, HD), jnp.float32)
    ln_pack = ln_pack.at[0].set(params["gamma1"]).at[1].set(params["beta1"])
    ln_pack = ln_pack.at[2].set(params["gamma2"]).at[3].set(params["beta2"])

    kernel = functools.partial(structural_attention_kernel, n_heads, out_dim, alpha)
    out = pl.pallas_call(
        kernel,
        out_shape=jax.ShapeDtypeStruct((B_pad, N, HD), jnp.float32),
        grid_spec=pltpu.PrefetchScalarGridSpec(
            num_scalar_prefetch=0,
            grid=(B_pad // bb,),
            in_specs=[
                pl.BlockSpec((bb, N, F_in), lambda i: (i, 0, 0)),   # features
                pl.BlockSpec((bb, N, N), lambda i: (i, 0, 0)),      # adjacency bias (bf16)
                pl.BlockSpec((F_in, HD), lambda i: (0, 0)),         # W_query
                pl.BlockSpec((F_in, HD), lambda i: (0, 0)),         # W_key
                pl.BlockSpec((F_in, HD), lambda i: (0, 0)),         # W_value
                pl.BlockSpec((HD, HD), lambda i: (0, 0)),           # ffn weight, h' rows
                pl.BlockSpec((F_in, HD), lambda i: (0, 0)),         # ffn weight, feature rows
                pl.BlockSpec((8, HD), lambda i: (0, 0)),            # packed LayerNorm params
            ],
            out_specs=pl.BlockSpec((bb, N, HD), lambda i: (i, 0, 0)),
            scratch_shapes=[pltpu.VMEM((bb, N, HD), jnp.float32)],  # per-head writeback
        ),
        compiler_params=pltpu.CompilerParams(dimension_semantics=("parallel",)),
    )(features, adj_bias, params["W_query"], params["W_key"], params["W_value"],
      w_ffn1, w_ffn2, ln_pack)

    out = out[:B]
    if has_batches:
        out = out.reshape(b0, w, N, HD)
    return out


def init_params(key, in_dim, out_dim, n_heads):
    HD = out_dim * n_heads
    ks = jax.random.split(key, 4)

    def xavier_uniform(k, shape, gain=1.414):
        fan_in, fan_out = shape
        bound = gain * math.sqrt(6.0 / (fan_in + fan_out))
        return jax.random.uniform(k, shape, jnp.float32, -bound, bound)

    wq = xavier_uniform(ks[0], (in_dim, HD))
    wk = xavier_uniform(ks[1], (in_dim, HD))
    wv = xavier_uniform(ks[2], (in_dim, HD))
    # nn.Linear(HD + in_dim, HD, bias=False): weight (HD, HD+in_dim), y = x @ W.T
    fan_in = HD + in_dim
    bound = 1.0 / math.sqrt(fan_in)
    w_ffn = jax.random.uniform(ks[3], (HD, fan_in), jnp.float32, -bound, bound)
    return {
        "W_query": wq, "W_key": wk, "W_value": wv,
        "W_ffn_T": jnp.asarray(w_ffn.T),                 # (HD + in_dim, HD)
        "gamma1": jnp.ones((HD,), jnp.float32),
        "beta1": jnp.zeros((HD,), jnp.float32),
        "gamma2": jnp.ones((HD,), jnp.float32),
        "beta2": jnp.zeros((HD,), jnp.float32),
    }


def reference(features, adj, params, *, n_heads, out_dim, alpha=0.2):
    """Pure-JAX transcription of the PyTorch forward (inference mode)."""
    has_batches = features.ndim > 3
    orig = features.shape
    if has_batches:
        b, w, n, f_in = features.shape
        feats = features.reshape(b * w, n, f_in)
        adjf = adj.reshape(b * w, n, n)
    else:
        feats, adjf = features, adj

    q = feats @ params["W_query"]
    k = feats @ params["W_key"]
    v = feats @ params["W_value"]

    def split_heads(x):
        return jnp.stack(jnp.split(x, n_heads, axis=-1), axis=-3)   # (B, H, N, D)

    qh, kh, vh = split_heads(q), split_heads(k), split_heads(v)
    e = jnp.einsum("bhnd,bhmd->bhnm", qh, kh)
    e = jnp.where(e > 0, e, alpha * e)
    attn = jnp.where(adjf[:, None, :, :] > 0, e, jnp.float32(-9e15))
    attn = jax.nn.softmax(attn, axis=-1)
    hp = jnp.einsum("bhnm,bhmd->bhnd", attn, vh)
    out = jnp.concatenate([hp[:, h] for h in range(n_heads)], axis=-1)

    def ln(x, g, b):
        mu = x.mean(-1, keepdims=True)
        var = ((x - mu) ** 2).mean(-1, keepdims=True)
        return (x - mu) / jnp.sqrt(var + 1e-5) * g + b

    out = ln(out, params["gamma1"], params["beta1"])
    out = jnp.concatenate([out, feats], axis=-1) @ params["W_ffn_T"]
    out = ln(out, params["gamma2"], params["beta2"])
    out = out + feats
    if has_batches:
        out = out.reshape(orig[0], orig[1], orig[2], -1)
    return out


if __name__ == "__main__":
    # residual `output += features` requires in_dim == n_heads * out_dim
    batch, w, n = 2, 3, 8
    in_dim, n_heads, out_dim = 32, 4, 8

    key = jax.random.PRNGKey(0)
    kf, ka, kp = jax.random.split(key, 3)
    features = jax.random.normal(kf, (batch, w, n, in_dim), jnp.float32)
    adj = (jax.random.uniform(ka, (batch, w, n, n)) > 0.5).astype(jnp.float32)
    adj = jnp.clip(adj + jnp.eye(n, dtype=jnp.float32), 0.0, 1.0)      # self-loops

    params = init_params(kp, in_dim, out_dim, n_heads)

    out = structural_attention(features, adj, params,
                               n_heads=n_heads, out_dim=out_dim, alpha=0.2)
    out = jax.block_until_ready(out)

    ref = reference(features, adj, params, n_heads=n_heads, out_dim=out_dim, alpha=0.2)
    assert out.shape == (batch, w, n, n_heads * out_dim), out.shape
    # Tolerance covers the EUP approximate-reciprocal softmax denominator; all other
    # math is exact f32 and matches the reference to f32 rounding.
    assert jnp.allclose(out, ref, rtol=1e-2, atol=1e-2), \
        float(jnp.max(jnp.abs(out - ref)))

    print("KERNEL_OK")
</pallas_src>

<mosaic_0001>
module attributes {stable_mosaic.version = 11 : i64} {
  func.func @structural_attention_kernel(%arg0: i32, %arg1: memref<3x8x32xf32, #tpu.memory_space<vmem>>, %arg2: memref<3x8x8xbf16, #tpu.memory_space<vmem>>, %arg3: memref<32x32xf32, #tpu.memory_space<vmem>>, %arg4: memref<32x32xf32, #tpu.memory_space<vmem>>, %arg5: memref<32x32xf32, #tpu.memory_space<vmem>>, %arg6: memref<32x32xf32, #tpu.memory_space<vmem>>, %arg7: memref<32x32xf32, #tpu.memory_space<vmem>>, %arg8: memref<8x32xf32, #tpu.memory_space<vmem>>, %arg9: memref<3x8x32xf32, #tpu.memory_space<vmem>>, %arg10: memref<3x8x32xf32, #tpu.memory_space<vmem>>) attributes {dimension_semantics = [#tpu.dimension_semantics<parallel>], iteration_bounds = array<i64: 2>, scalar_prefetch = 0 : i64, scratch_operands = 1 : i64, tpu.core_type = #tpu.core_type<tc>, window_params = [{transform_indices = @transform_0, window_bounds = array<i64: 3, 8, 32>}, {transform_indices = @transform_1, window_bounds = array<i64: 3, 8, 8>}, {pipeline_mode = #tpu.pipeline_mode<synchronous>, transform_indices = @transform_2, window_bounds = array<i64: 32, 32>}, {pipeline_mode = #tpu.pipeline_mode<synchronous>, transform_indices = @transform_3, window_bounds = array<i64: 32, 32>}, {pipeline_mode = #tpu.pipeline_mode<synchronous>, transform_indices = @transform_4, window_bounds = array<i64: 32, 32>}, {pipeline_mode = #tpu.pipeline_mode<synchronous>, transform_indices = @transform_5, window_bounds = array<i64: 32, 32>}, {pipeline_mode = #tpu.pipeline_mode<synchronous>, transform_indices = @transform_6, window_bounds = array<i64: 32, 32>}, {pipeline_mode = #tpu.pipeline_mode<synchronous>, transform_indices = @transform_7, window_bounds = array<i64: 8, 32>}, {transform_indices = @transform_8, window_bounds = array<i64: 3, 8, 32>}]} {
    %c0 = arith.constant 0 : index
    %c0_0 = arith.constant 0 : index
    %c0_1 = arith.constant 0 : index
    %0 = vector.load %arg1[%c0, %c0_0, %c0_1] : memref<3x8x32xf32, #tpu.memory_space<vmem>>, vector<3x8x32xf32>
    %1 = vector.shape_cast %0 : vector<3x8x32xf32> to vector<24x32xf32>
    %c0_2 = arith.constant 0 : index
    %c0_3 = arith.constant 0 : index
    %2 = vector.load %arg3[%c0_2, %c0_3] : memref<32x32xf32, #tpu.memory_space<vmem>>, vector<32x32xf32>
    %cst = arith.constant dense<0.000000e+00> : vector<24x32xf32>
    %3 = tpu.matmul %1, %2, %cst {dimension_numbers = #tpu.dot_dimension_numbers<[1], [0], [0], [1], [0, 0, 1, 1], [], []>} : vector<24x32xf32>, vector<32x32xf32>, vector<24x32xf32> -> vector<24x32xf32>
    %c0_4 = arith.constant 0 : index
    %c0_5 = arith.constant 0 : index
    %4 = vector.load %arg4[%c0_4, %c0_5] : memref<32x32xf32, #tpu.memory_space<vmem>>, vector<32x32xf32>
    %cst_6 = arith.constant dense<0.000000e+00> : vector<24x32xf32>
    %5 = tpu.matmul %1, %4, %cst_6 {dimension_numbers = #tpu.dot_dimension_numbers<[1], [0], [0], [1], [0, 0, 1, 1], [], []>} : vector<24x32xf32>, vector<32x32xf32>, vector<24x32xf32> -> vector<24x32xf32>
    %c0_7 = arith.constant 0 : index
    %c0_8 = arith.constant 0 : index
    %6 = vector.load %arg5[%c0_7, %c0_8] : memref<32x32xf32, #tpu.memory_space<vmem>>, vector<32x32xf32>
    %cst_9 = arith.constant dense<0.000000e+00> : vector<24x32xf32>
    %7 = tpu.matmul %1, %6, %cst_9 {dimension_numbers = #tpu.dot_dimension_numbers<[1], [0], [0], [1], [0, 0, 1, 1], [], []>} : vector<24x32xf32>, vector<32x32xf32>, vector<24x32xf32> -> vector<24x32xf32>
    %c0_10 = arith.constant 0 : index
    %c0_11 = arith.constant 0 : index
    %c0_12 = arith.constant 0 : index
    %8 = vector.load %arg2[%c0_10, %c0_11, %c0_12] : memref<3x8x8xbf16, #tpu.memory_space<vmem>>, vector<3x8x8xbf16>
    %9 = arith.extf %8 : vector<3x8x8xbf16> to vector<3x8x8xf32>
    %10 = vector.extract_strided_slice %3 {offsets = [0, 0], sizes = [24, 8], strides = [1, 1]} : vector<24x32xf32> to vector<24x8xf32>
    %11 = vector.shape_cast %10 : vector<24x8xf32> to vector<3x8x8xf32>
    %12 = vector.extract_strided_slice %5 {offsets = [0, 0], sizes = [24, 8], strides = [1, 1]} : vector<24x32xf32> to vector<24x8xf32>
    %13 = vector.shape_cast %12 : vector<24x8xf32> to vector<3x8x8xf32>
    %14 = vector.extract_strided_slice %7 {offsets = [0, 0], sizes = [24, 8], strides = [1, 1]} : vector<24x32xf32> to vector<24x8xf32>
    %15 = vector.shape_cast %14 : vector<24x8xf32> to vector<3x8x8xf32>
    "tpu.trace_start"() <{level = 10 : i32, message = "bnd,bmd->bnm"}> : () -> ()
    %cst_13 = arith.constant dense<0.000000e+00> : vector<3x8x8xf32>
    %16 = tpu.matmul %11, %13, %cst_13 {dimension_numbers = #tpu.dot_dimension_numbers<[2], [2], [1], [1], [0, 0, 0, 1, 1, 1], [0], [0]>} : vector<3x8x8xf32>, vector<3x8x8xf32>, vector<3x8x8xf32> -> vector<3x8x8xf32>
    %cst_14 = arith.constant 0.000000e+00 : f32
    "tpu.trace_stop"() : () -> ()
    %17 = vector.broadcast %cst_14 : f32 to vector<3x8x8xf32>
    %18 = arith.cmpf ogt, %16, %17 : vector<3x8x8xf32>
    %cst_15 = arith.constant 2.000000e-01 : f32
    %19 = vector.broadcast %cst_15 : f32 to vector<3x8x8xf32>
    %20 = arith.mulf %19, %16 : vector<3x8x8xf32>
    %21 = arith.select %18, %16, %20 : vector<3x8x8xi1>, vector<3x8x8xf32>
    %22 = arith.addf %21, %9 : vector<3x8x8xf32>
    %cst_16 = arith.constant dense<0xFF800000> : vector<3x8xf32>
    %23 = vector.multi_reduction <maximumf>, %22, %cst_16 [2] : vector<3x8x8xf32> to vector<3x8xf32>
    %24 = vector.shape_cast %23 : vector<3x8xf32> to vector<3x8x1xf32>
    %25 = vector.broadcast %24 : vector<3x8x1xf32> to vector<3x8x8xf32>
    %26 = arith.subf %22, %25 : vector<3x8x8xf32>
    %27 = math.exp %26 : vector<3x8x8xf32>
    %cst_17 = arith.constant dense<0.000000e+00> : vector<3x8xf32>
    %28 = vector.multi_reduction <add>, %27, %cst_17 [2] : vector<3x8x8xf32> to vector<3x8xf32>
    %29 = vector.shape_cast %28 : vector<3x8xf32> to vector<3x8x1xf32>
    %30 = tpu.reciprocal %29 {approx = true} : vector<3x8x1xf32> -> vector<3x8x1xf32>
    %31 = vector.broadcast %30 : vector<3x8x1xf32> to vector<3x8x8xf32>
    %32 = arith.mulf %27, %31 : vector<3x8x8xf32>
    "tpu.trace_start"() <{level = 10 : i32, message = "bnm,bmd->bnd"}> : () -> ()
    %cst_18 = arith.constant dense<0.000000e+00> : vector<3x8x8xf32>
    %33 = tpu.matmul %32, %15, %cst_18 {dimension_numbers = #tpu.dot_dimension_numbers<[2], [1], [1], [2], [0, 0, 0, 1, 1, 2], [0], [0]>} : vector<3x8x8xf32>, vector<3x8x8xf32>, vector<3x8x8xf32> -> vector<3x8x8xf32>
    "tpu.trace_stop"() : () -> ()
    %c0_19 = arith.constant 0 : index
    %c0_20 = arith.constant 0 : index
    %c0_21 = arith.constant 0 : index
    %34 = vector.load %arg10[%c0_19, %c0_20, %c0_21] : memref<3x8x32xf32, #tpu.memory_space<vmem>>, vector<3x8x8xf32>
    tpu.vector_store %arg10[%c0_19, %c0_20, %c0_21], %33 {strides = array<i32>} : memref<3x8x32xf32, #tpu.memory_space<vmem>>, vector<3x8x8xf32>,
    %35 = vector.extract_strided_slice %3 {offsets = [0, 8], sizes = [24, 8], strides = [1, 1]} : vector<24x32xf32> to vector<24x8xf32>
    %36 = vector.shape_cast %35 : vector<24x8xf32> to vector<3x8x8xf32>
    %37 = vector.extract_strided_slice %5 {offsets = [0, 8], sizes = [24, 8], strides = [1, 1]} : vector<24x32xf32> to vector<24x8xf32>
    %38 = vector.shape_cast %37 : vector<24x8xf32> to vector<3x8x8xf32>
    %39 = vector.extract_strided_slice %7 {offsets = [0, 8], sizes = [24, 8], strides = [1, 1]} : vector<24x32xf32> to vector<24x8xf32>
    %40 = vector.shape_cast %39 : vector<24x8xf32> to vector<3x8x8xf32>
    "tpu.trace_start"() <{level = 10 : i32, message = "bnd,bmd->bnm"}> : () -> ()
    %cst_22 = arith.constant dense<0.000000e+00> : vector<3x8x8xf32>
    %41 = tpu.matmul %36, %38, %cst_22 {dimension_numbers = #tpu.dot_dimension_numbers<[2], [2], [1], [1], [0, 0, 0, 1, 1, 1], [0], [0]>} : vector<3x8x8xf32>, vector<3x8x8xf32>, vector<3x8x8xf32> -> vector<3x8x8xf32>
    %cst_23 = arith.constant 0.000000e+00 : f32
    "tpu.trace_stop"() : () -> ()
    %42 = vector.broadcast %cst_23 : f32 to vector<3x8x8xf32>
    %43 = arith.cmpf ogt, %41, %42 : vector<3x8x8xf32>
    %cst_24 = arith.constant 2.000000e-01 : f32
    %44 = vector.broadcast %cst_24 : f32 to vector<3x8x8xf32>
    %45 = arith.mulf %44, %41 : vector<3x8x8xf32>
    %46 = arith.select %43, %41, %45 : vector<3x8x8xi1>, vector<3x8x8xf32>
    %47 = arith.addf %46, %9 : vector<3x8x8xf32>
    %cst_25 = arith.constant dense<0xFF800000> : vector<3x8xf32>
    %48 = vector.multi_reduction <maximumf>, %47, %cst_25 [2] : vector<3x8x8xf32> to vector<3x8xf32>
    %49 = vector.shape_cast %48 : vector<3x8xf32> to vector<3x8x1xf32>
    %50 = vector.broadcast %49 : vector<3x8x1xf32> to vector<3x8x8xf32>
    %51 = arith.subf %47, %50 : vector<3x8x8xf32>
    %52 = math.exp %51 : vector<3x8x8xf32>
    %cst_26 = arith.constant dense<0.000000e+00> : vector<3x8xf32>
    %53 = vector.multi_reduction <add>, %52, %cst_26 [2] : vector<3x8x8xf32> to vector<3x8xf32>
    %54 = vector.shape_cast %53 : vector<3x8xf32> to vector<3x8x1xf32>
    %55 = tpu.reciprocal %54 {approx = true} : vector<3x8x1xf32> -> vector<3x8x1xf32>
    %56 = vector.broadcast %55 : vector<3x8x1xf32> to vector<3x8x8xf32>
    %57 = arith.mulf %52, %56 : vector<3x8x8xf32>
    "tpu.trace_start"() <{level = 10 : i32, message = "bnm,bmd->bnd"}> : () -> ()
    %cst_27 = arith.constant dense<0.000000e+00> : vector<3x8x8xf32>
    %58 = tpu.matmul %57, %40, %cst_27 {dimension_numbers = #tpu.dot_dimension_numbers<[2], [1], [1], [2], [0, 0, 0, 1, 1, 2], [0], [0]>} : vector<3x8x8xf32>, vector<3x8x8xf32>, vector<3x8x8xf32> -> vector<3x8x8xf32>
    "tpu.trace_stop"() : () -> ()
    %c0_28 = arith.constant 0 : index
    %c0_29 = arith.constant 0 : index
    %c8 = arith.constant 8 : index
    %59 = vector.load %arg10[%c0_28, %c0_29, %c8] : memref<3x8x32xf32, #tpu.memory_space<vmem>>, vector<3x8x8xf32>
    tpu.vector_store %arg10[%c0_28, %c0_29, %c8], %58 {strides = array<i32>} : memref<3x8x32xf32, #tpu.memory_space<vmem>>, vector<3x8x8xf32>,
    %60 = vector.extract_strided_slice %3 {offsets = [0, 16], sizes = [24, 8], strides = [1, 1]} : vector<24x32xf32> to vector<24x8xf32>
    %61 = vector.shape_cast %60 : vector<24x8xf32> to vector<3x8x8xf32>
    %62 = vector.extract_strided_slice %5 {offsets = [0, 16], sizes = [24, 8], strides = [1, 1]} : vector<24x32xf32> to vector<24x8xf32>
    %63 = vector.shape_cast %62 : vector<24x8xf32> to vector<3x8x8xf32>
    %64 = vector.extract_strided_slice %7 {offsets = [0, 16], sizes = [24, 8], strides = [1, 1]} : vector<24x32xf32> to vector<24x8xf32>
    %65 = vector.shape_cast %64 : vector<24x8xf32> to vector<3x8x8xf32>
    "tpu.trace_start"() <{level = 10 : i32, message = "bnd,bmd->bnm"}> : () -> ()
    %cst_30 = arith.constant dense<0.000000e+00> : vector<3x8x8xf32>
    %66 = tpu.matmul %61, %63, %cst_30 {dimension_numbers = #tpu.dot_dimension_numbers<[2], [2], [1], [1], [0, 0, 0, 1, 1, 1], [0], [0]>} : vector<3x8x8xf32>, vector<3x8x8xf32>, vector<3x8x8xf32> -> vector<3x8x8xf32>
    %cst_31 = arith.constant 0.000000e+00 : f32
    "tpu.trace_stop"() : () -> ()
    %67 = vector.broadcast %cst_31 : f32 to vector<3x8x8xf32>
    %68 = arith.cmpf ogt, %66, %67 : vector<3x8x8xf32>
    %cst_32 = arith.constant 2.000000e-01 : f32
    %69 = vector.broadcast %cst_32 : f32 to vector<3x8x8xf32>
    %70 = arith.mulf %69, %66 : vector<3x8x8xf32>
    %71 = arith.select %68, %66, %70 : vector<3x8x8xi1>, vector<3x8x8xf32>
    %72 = arith.addf %71, %9 : vector<3x8x8xf32>
    %cst_33 = arith.constant dense<0xFF800000> : vector<3x8xf32>
    %73 = vector.multi_reduction <maximumf>, %72, %cst_33 [2] : vector<3x8x8xf32> to vector<3x8xf32>
    %74 = vector.shape_cast %73 : vector<3x8xf32> to vector<3x8x1xf32>
    %75 = vector.broadcast %74 : vector<3x8x1xf32> to vector<3x8x8xf32>
    %76 = arith.subf %72, %75 : vector<3x8x8xf32>
    %77 = math.exp %76 : vector<3x8x8xf32>
    %cst_34 = arith.constant dense<0.000000e+00> : vector<3x8xf32>
    %78 = vector.multi_reduction <add>, %77, %cst_34 [2] : vector<3x8x8xf32> to vector<3x8xf32>
    %79 = vector.shape_cast %78 : vector<3x8xf32> to vector<3x8x1xf32>
    %80 = tpu.reciprocal %79 {approx = true} : vector<3x8x1xf32> -> vector<3x8x1xf32>
    %81 = vector.broadcast %80 : vector<3x8x1xf32> to vector<3x8x8xf32>
    %82 = arith.mulf %77, %81 : vector<3x8x8xf32>
    "tpu.trace_start"() <{level = 10 : i32, message = "bnm,bmd->bnd"}> : () -> ()
    %cst_35 = arith.constant dense<0.000000e+00> : vector<3x8x8xf32>
    %83 = tpu.matmul %82, %65, %cst_35 {dimension_numbers = #tpu.dot_dimension_numbers<[2], [1], [1], [2], [0, 0, 0, 1, 1, 2], [0], [0]>} : vector<3x8x8xf32>, vector<3x8x8xf32>, vector<3x8x8xf32> -> vector<3x8x8xf32>
    "tpu.trace_stop"() : () -> ()
    %c0_36 = arith.constant 0 : index
    %c0_37 = arith.constant 0 : index
    %c16 = arith.constant 16 : index
    %84 = vector.load %arg10[%c0_36, %c0_37, %c16] : memref<3x8x32xf32, #tpu.memory_space<vmem>>, vector<3x8x8xf32>
    tpu.vector_store %arg10[%c0_36, %c0_37, %c16], %83 {strides = array<i32>} : memref<3x8x32xf32, #tpu.memory_space<vmem>>, vector<3x8x8xf32>,
    %85 = vector.extract_strided_slice %3 {offsets = [0, 24], sizes = [24, 8], strides = [1, 1]} : vector<24x32xf32> to vector<24x8xf32>
    %86 = vector.shape_cast %85 : vector<24x8xf32> to vector<3x8x8xf32>
    %87 = vector.extract_strided_slice %5 {offsets = [0, 24], sizes = [24, 8], strides = [1, 1]} : vector<24x32xf32> to vector<24x8xf32>
    %88 = vector.shape_cast %87 : vector<24x8xf32> to vector<3x8x8xf32>
    %89 = vector.extract_strided_slice %7 {offsets = [0, 24], sizes = [24, 8], strides = [1, 1]} : vector<24x32xf32> to vector<24x8xf32>
    %90 = vector.shape_cast %89 : vector<24x8xf32> to vector<3x8x8xf32>
    "tpu.trace_start"() <{level = 10 : i32, message = "bnd,bmd->bnm"}> : () -> ()
    %cst_38 = arith.constant dense<0.000000e+00> : vector<3x8x8xf32>
    %91 = tpu.matmul %86, %88, %cst_38 {dimension_numbers = #tpu.dot_dimension_numbers<[2], [2], [1], [1], [0, 0, 0, 1, 1, 1], [0], [0]>} : vector<3x8x8xf32>, vector<3x8x8xf32>, vector<3x8x8xf32> -> vector<3x8x8xf32>
    %cst_39 = arith.constant 0.000000e+00 : f32
    "tpu.trace_stop"() : () -> ()
    %92 = vector.broadcast %cst_39 : f32 to vector<3x8x8xf32>
    %93 = arith.cmpf ogt, %91, %92 : vector<3x8x8xf32>
    %cst_40 = arith.constant 2.000000e-01 : f32
    %94 = vector.broadcast %cst_40 : f32 to vector<3x8x8xf32>
    %95 = arith.mulf %94, %91 : vector<3x8x8xf32>
    %96 = arith.select %93, %91, %95 : vector<3x8x8xi1>, vector<3x8x8xf32>
    %97 = arith.addf %96, %9 : vector<3x8x8xf32>
    %cst_41 = arith.constant dense<0xFF800000> : vector<3x8xf32>
    %98 = vector.multi_reduction <maximumf>, %97, %cst_41 [2] : vector<3x8x8xf32> to vector<3x8xf32>
    %99 = vector.shape_cast %98 : vector<3x8xf32> to vector<3x8x1xf32>
    %100 = vector.broadcast %99 : vector<3x8x1xf32> to vector<3x8x8xf32>
    %101 = arith.subf %97, %100 : vector<3x8x8xf32>
    %102 = math.exp %101 : vector<3x8x8xf32>
    %cst_42 = arith.constant dense<0.000000e+00> : vector<3x8xf32>
    %103 = vector.multi_reduction <add>, %102, %cst_42 [2] : vector<3x8x8xf32> to vector<3x8xf32>
    %104 = vector.shape_cast %103 : vector<3x8xf32> to vector<3x8x1xf32>
    %105 = tpu.reciprocal %104 {approx = true} : vector<3x8x1xf32> -> vector<3x8x1xf32>
    %106 = vector.broadcast %105 : vector<3x8x1xf32> to vector<3x8x8xf32>
    %107 = arith.mulf %102, %106 : vector<3x8x8xf32>
    "tpu.trace_start"() <{level = 10 : i32, message = "bnm,bmd->bnd"}> : () -> ()
    %cst_43 = arith.constant dense<0.000000e+00> : vector<3x8x8xf32>
    %108 = tpu.matmul %107, %90, %cst_43 {dimension_numbers = #tpu.dot_dimension_numbers<[2], [1], [1], [2], [0, 0, 0, 1, 1, 2], [0], [0]>} : vector<3x8x8xf32>, vector<3x8x8xf32>, vector<3x8x8xf32> -> vector<3x8x8xf32>
    "tpu.trace_stop"() : () -> ()
    %c0_44 = arith.constant 0 : index
    %c0_45 = arith.constant 0 : index
    %c24 = arith.constant 24 : index
    %109 = vector.load %arg10[%c0_44, %c0_45, %c24] : memref<3x8x32xf32, #tpu.memory_space<vmem>>, vector<3x8x8xf32>
    tpu.vector_store %arg10[%c0_44, %c0_45, %c24], %108 {strides = array<i32>} : memref<3x8x32xf32, #tpu.memory_space<vmem>>, vector<3x8x8xf32>,
    %c0_46 = arith.constant 0 : index
    %c0_47 = arith.constant 0 : index
    %c0_48 = arith.constant 0 : index
    %110 = vector.load %arg10[%c0_46, %c0_47, %c0_48] : memref<3x8x32xf32, #tpu.memory_space<vmem>>, vector<3x8x32xf32>
    %c0_49 = arith.constant 0 : index
    %c0_50 = arith.constant 0 : index
    %111 = vector.load %arg8[%c0_49, %c0_50] : memref<8x32xf32, #tpu.memory_space<vmem>>, vector<1x32xf32>
    %c1 = arith.constant 1 : index
    %c0_51 = arith.constant 0 : index
    %112 = vector.load %arg8[%c1, %c0_51] : memref<8x32xf32, #tpu.memory_space<vmem>>, vector<1x32xf32>
    %c2 = arith.constant 2 : index
    %c0_52 = arith.constant 0 : index
    %113 = vector.load %arg8[%c2, %c0_52] : memref<8x32xf32, #tpu.memory_space<vmem>>, vector<1x32xf32>
    %c3 = arith.constant 3 : index
    %c0_53 = arith.constant 0 : index
    %114 = vector.load %arg8[%c3, %c0_53] : memref<8x32xf32, #tpu.memory_space<vmem>>, vector<1x32xf32>
    %cst_54 = arith.constant dense<0.000000e+00> : vector<3x8xf32>
    %115 = vector.multi_reduction <add>, %110, %cst_54 [2] : vector<3x8x32xf32> to vector<3x8xf32>
    %116 = vector.shape_cast %115 : vector<3x8xf32> to vector<3x8x1xf32>
    %cst_55 = arith.constant 3.200000e+01 : f32
    %117 = vector.broadcast %cst_55 : f32 to vector<3x8x1xf32>
    %118 = arith.divf %116, %117 : vector<3x8x1xf32>
    %119 = vector.broadcast %118 : vector<3x8x1xf32> to vector<3x8x32xf32>
    %120 = arith.subf %110, %119 : vector<3x8x32xf32>
    %121 = arith.mulf %120, %120 : vector<3x8x32xf32>
    %cst_56 = arith.constant dense<0.000000e+00> : vector<3x8xf32>
    %122 = vector.multi_reduction <add>, %121, %cst_56 [2] : vector<3x8x32xf32> to vector<3x8xf32>
    %123 = vector.shape_cast %122 : vector<3x8xf32> to vector<3x8x1xf32>
    %cst_57 = arith.constant 3.200000e+01 : f32
    %124 = vector.broadcast %cst_57 : f32 to vector<3x8x1xf32>
    %125 = arith.divf %123, %124 : vector<3x8x1xf32>
    %126 = vector.broadcast %118 : vector<3x8x1xf32> to vector<3x8x32xf32>
    %127 = arith.subf %110, %126 : vector<3x8x32xf32>
    %cst_58 = arith.constant 9.99999974E-6 : f32
    %128 = vector.broadcast %cst_58 : f32 to vector<3x8x1xf32>
    %129 = arith.addf %125, %128 : vector<3x8x1xf32>
    %130 = math.rsqrt %129 : vector<3x8x1xf32>
    %131 = vector.broadcast %130 : vector<3x8x1xf32> to vector<3x8x32xf32>
    %132 = arith.mulf %127, %131 : vector<3x8x32xf32>
    %133 = vector.shape_cast %111 : vector<1x32xf32> to vector<1x1x32xf32>
    %134 = vector.broadcast %133 : vector<1x1x32xf32> to vector<3x8x32xf32>
    %135 = arith.mulf %132, %134 : vector<3x8x32xf32>
    %136 = vector.shape_cast %112 : vector<1x32xf32> to vector<1x1x32xf32>
    %137 = vector.broadcast %136 : vector<1x1x32xf32> to vector<3x8x32xf32>
    %138 = arith.addf %135, %137 : vector<3x8x32xf32>
    %139 = vector.shape_cast %138 : vector<3x8x32xf32> to vector<24x32xf32>
    %c0_59 = arith.constant 0 : index
    %c0_60 = arith.constant 0 : index
    %140 = vector.load %arg6[%c0_59, %c0_60] : memref<32x32xf32, #tpu.memory_space<vmem>>, vector<32x32xf32>
    %cst_61 = arith.constant dense<0.000000e+00> : vector<24x32xf32>
    %141 = tpu.matmul %139, %140, %cst_61 {dimension_numbers = #tpu.dot_dimension_numbers<[1], [0], [0], [1], [0, 0, 1, 1], [], []>} : vector<24x32xf32>, vector<32x32xf32>, vector<24x32xf32> -> vector<24x32xf32>
    %c0_62 = arith.constant 0 : index
    %c0_63 = arith.constant 0 : index
    %142 = vector.load %arg7[%c0_62, %c0_63] : memref<32x32xf32, #tpu.memory_space<vmem>>, vector<32x32xf32>
    %cst_64 = arith.constant dense<0.000000e+00> : vector<24x32xf32>
    %143 = tpu.matmul %1, %142, %cst_64 {dimension_numbers = #tpu.dot_dimension_numbers<[1], [0], [0], [1], [0, 0, 1, 1], [], []>} : vector<24x32xf32>, vector<32x32xf32>, vector<24x32xf32> -> vector<24x32xf32>
    %144 = arith.addf %141, %143 : vector<24x32xf32>
    %145 = vector.shape_cast %144 : vector<24x32xf32> to vector<3x8x32xf32>
    %cst_65 = arith.constant dense<0.000000e+00> : vector<3x8xf32>
    %146 = vector.multi_reduction <add>, %145, %cst_65 [2] : vector<3x8x32xf32> to vector<3x8xf32>
    %147 = vector.shape_cast %146 : vector<3x8xf32> to vector<3x8x1xf32>
    %cst_66 = arith.constant 3.200000e+01 : f32
    %148 = vector.broadcast %cst_66 : f32 to vector<3x8x1xf32>
    %149 = arith.divf %147, %148 : vector<3x8x1xf32>
    %150 = vector.broadcast %149 : vector<3x8x1xf32> to vector<3x8x32xf32>
    %151 = arith.subf %145, %150 : vector<3x8x32xf32>
    %152 = arith.mulf %151, %151 : vector<3x8x32xf32>
    %cst_67 = arith.constant dense<0.000000e+00> : vector<3x8xf32>
    %153 = vector.multi_reduction <add>, %152, %cst_67 [2] : vector<3x8x32xf32> to vector<3x8xf32>
    %154 = vector.shape_cast %153 : vector<3x8xf32> to vector<3x8x1xf32>
    %cst_68 = arith.constant 3.200000e+01 : f32
    %155 = vector.broadcast %cst_68 : f32 to vector<3x8x1xf32>
    %156 = arith.divf %154, %155 : vector<3x8x1xf32>
    %157 = vector.broadcast %149 : vector<3x8x1xf32> to vector<3x8x32xf32>
    %158 = arith.subf %145, %157 : vector<3x8x32xf32>
    %cst_69 = arith.constant 9.99999974E-6 : f32
    %159 = vector.broadcast %cst_69 : f32 to vector<3x8x1xf32>
    %160 = arith.addf %156, %159 : vector<3x8x1xf32>
    %161 = math.rsqrt %160 : vector<3x8x1xf32>
    %162 = vector.broadcast %161 : vector<3x8x1xf32> to vector<3x8x32xf32>
    %163 = arith.mulf %158, %162 : vector<3x8x32xf32>
    %164 = vector.shape_cast %113 : vector<1x32xf32> to vector<1x1x32xf32>
    %165 = vector.broadcast %164 : vector<1x1x32xf32> to vector<3x8x32xf32>
    %166 = arith.mulf %163, %165 : vector<3x8x32xf32>
    %167 = vector.shape_cast %114 : vector<1x32xf32> to vector<1x1x32xf32>
    %168 = vector.broadcast %167 : vector<1x1x32xf32> to vector<3x8x32xf32>
    %169 = arith.addf %166, %168 : vector<3x8x32xf32>
    %170 = arith.addf %169, %0 : vector<3x8x32xf32>
    %c0_70 = arith.constant 0 : index
    %c0_71 = arith.constant 0 : index
    %c0_72 = arith.constant 0 : index
    %171 = vector.load %arg9[%c0_70, %c0_71, %c0_72] : memref<3x8x32xf32, #tpu.memory_space<vmem>>, vector<3x8x32xf32>
    tpu.vector_store %arg9[%c0_70, %c0_71, %c0_72], %170 {strides = array<i32>} : memref<3x8x32xf32, #tpu.memory_space<vmem>>, vector<3x8x32xf32>,
    return
  }
  func.func @transform_0(%arg0: i32) -> (i32, i32, i32) {
    %c0_i32 = arith.constant 0 : i32
    %c0_i32_0 = arith.constant 0 : i32
    %c0_i32_1 = arith.constant 0 : i32
    return %arg0, %c0_i32, %c0_i32_0 : i32, i32, i32
  }
  func.func @transform_1(%arg0: i32) -> (i32, i32, i32) {
    %c0_i32 = arith.constant 0 : i32
    %c0_i32_0 = arith.constant 0 : i32
    %c0_i32_1 = arith.constant 0 : i32
    return %arg0, %c0_i32, %c0_i32_0 : i32, i32, i32
  }
  func.func @transform_2(%arg0: i32) -> (i32, i32) {
    %c0_i32 = arith.constant 0 : i32
    %c0_i32_0 = arith.constant 0 : i32
    %c0_i32_1 = arith.constant 0 : i32
    return %c0_i32, %c0_i32_0 : i32, i32
  }
  func.func @transform_3(%arg0: i32) -> (i32, i32) {
    %c0_i32 = arith.constant 0 : i32
    %c0_i32_0 = arith.constant 0 : i32
    %c0_i32_1 = arith.constant 0 : i32
    return %c0_i32, %c0_i32_0 : i32, i32
  }
  func.func @transform_4(%arg0: i32) -> (i32, i32) {
    %c0_i32 = arith.constant 0 : i32
    %c0_i32_0 = arith.constant 0 : i32
    %c0_i32_1 = arith.constant 0 : i32
    return %c0_i32, %c0_i32_0 : i32, i32
  }
  func.func @transform_5(%arg0: i32) -> (i32, i32) {
    %c0_i32 = arith.constant 0 : i32
    %c0_i32_0 = arith.constant 0 : i32
    %c0_i32_1 = arith.constant 0 : i32
    return %c0_i32, %c0_i32_0 : i32, i32
  }
  func.func @transform_6(%arg0: i32) -> (i32, i32) {
    %c0_i32 = arith.constant 0 : i32
    %c0_i32_0 = arith.constant 0 : i32
    %c0_i32_1 = arith.constant 0 : i32
    return %c0_i32, %c0_i32_0 : i32, i32
  }
  func.func @transform_7(%arg0: i32) -> (i32, i32) {
    %c0_i32 = arith.constant 0 : i32
    %c0_i32_0 = arith.constant 0 : i32
    %c0_i32_1 = arith.constant 0 : i32
    return %c0_i32, %c0_i32_0 : i32, i32
  }
  func.func @transform_8(%arg0: i32) -> (i32, i32, i32) {
    %c0_i32 = arith.constant 0 : i32
    %c0_i32_0 = arith.constant 0 : i32
    %c0_i32_1 = arith.constant 0 : i32
    return %arg0, %c0_i32, %c0_i32_0 : i32, i32, i32
  }
}

</mosaic_0001>

<llo_original>
// kernel: tpu_custom_call.1
$region0: #{tpu_custom_call.1}
  #allocation0 [shape = 'u32[]', space=smem, size = 0x4, offset = 0x4, fixed_abs, tag = 'smem constant byte address 0x4 - core index']
  #allocation1 [shape = 'u32[144,128]{1,0:T(1,128)}', space=vmem, size = 0x12000, scoped, tag = 'internal scratch']
  #allocation2 [shape = 'f32[3,8,32]{2,1,0:T(8,128)}', space=vmem, size = 0x3000, scoped, tag = 'scratch operand']
  %s0 = inlined_call_operand.hbm [shape: f32[6,8,32], index: 0, kind: input, shape index: {}]
  %s1 = inlined_call_operand.hbm [shape: bf16[6,8,8], index: 1, kind: input, shape index: {}]
  %s2 = inlined_call_operand.hbm [shape: f32[32,32], index: 2, kind: input, shape index: {}]
  %s3 = inlined_call_operand.hbm [shape: f32[32,32], index: 3, kind: input, shape index: {}]
  %s4 = inlined_call_operand.hbm [shape: f32[32,32], index: 4, kind: input, shape index: {}]
  %s5 = inlined_call_operand.hbm [shape: f32[32,32], index: 5, kind: input, shape index: {}]
  %s6 = inlined_call_operand.hbm [shape: f32[32,32], index: 6, kind: input, shape index: {}]
  %s7 = inlined_call_operand.vmem [shape: f32[8,32], index: 7, kind: input, shape index: {}]
  %s8 = inlined_call_operand.hbm [shape: f32[6,8,32], index: 8, kind: output, shape index: {}]
  %s9 = sld [smem:[#allocation0]]
  $region93: #{tpu_custom_call.1} parent=0
    _
  %s11 = ssub.s32 1, %s9
  %s12 = scalar_select 0, %s11, %s9
  $region1: #{tpu_custom_call.1} parent=0
    #allocation3 [shape = 'u8[24576]{0}', space=vmem, size = 0x6000, scoped, tag = 'input window, operand 0']
    #allocation4 [shape = 's32[2]{0}', space=sflag, size = 0x8, scoped, tag = 'scoped memory for tpu_custom_call.1']
    #allocation5 [shape = 's32[2]{0}', space=sflag, size = 0x8, scoped, tag = 'scoped memory for tpu_custom_call.1']
    #allocation6 [shape = 'u8[12288]{0}', space=vmem, size = 0x3000, scoped, tag = 'input window, operand 1']
    #allocation7 [shape = 's32[2]{0}', space=sflag, size = 0x8, scoped, tag = 'scoped memory for tpu_custom_call.1']
    #allocation8 [shape = 'u8[16384]{0}', space=vmem, size = 0x4000, scoped, tag = 'input window, operand 2, single buffered']
    #allocation9 [shape = 'u8[16384]{0}', space=vmem, size = 0x4000, scoped, tag = 'input window, operand 3, single buffered']
    #allocation10 [shape = 's32[1]{0}', space=sflag, size = 0x4, scoped, tag = 'scoped memory for tpu_custom_call.1']
    #allocation11 [shape = 'u8[16384]{0}', space=vmem, size = 0x4000, scoped, tag = 'input window, operand 4, single buffered']
    #allocation12 [shape = 'u8[16384]{0}', space=vmem, size = 0x4000, scoped, tag = 'input window, operand 5, single buffered']
    #allocation13 [shape = 's32[1]{0}', space=sflag, size = 0x4, scoped, tag = 'scoped memory for tpu_custom_call.1']
    #allocation14 [shape = 'u8[16384]{0}', space=vmem, size = 0x4000, scoped, tag = 'input window, operand 6, single buffered']
    #allocation15 [shape = 'u8[24576]{0}', space=vmem, size = 0x6000, scoped, tag = 'output window, operand 0']
    %13 = vsyncpa [#allocation4], 0
    %s14 = scalar_lea.sflag [#allocation4], 1
    %15 = vsyncpa %s14, 0
    %16 = vsyncpa [#allocation7], 0
    %s17 = scalar_lea.sflag [#allocation7], 1
    %18 = vsyncpa %s17, 0
    %19 = vsyncpa [#allocation10], 0
    %20 = vsyncpa [#allocation13], 0
    %21 = vsyncpa [#allocation5], 0
    %s22 = scalar_lea.sflag [#allocation5], 1
    %23 = vsyncpa %s22, 0
    loop: start=0, step=1, limit=4
    $region2: #{tpu_custom_call.1} parent=1 // loop_pre_header
      _
    $region3: #{tpu_custom_call.1} parent=1 // loop_header
      %s25 = sphi 0, %s29
      %p26 = scmp.ge.s32.totalorder %s25, 4
      %s35 = sphi 0, %s37
      %s38 = sphi 0, %s35
      %s39 = sphi 0, %s38
      %s55 = sphi 0, %s39
      %s61 = sphi 0, %s63
      %s64 = sphi 0, %s61
      %s65 = sphi 0, %s64
      %s81 = sphi 0, %s65
      %s85 = sphi 0, %s85
      %s87 = sphi 0, %s85
      %s88 = sphi 0, %s87
      %s102 = sphi 0, %s88
      %s106 = sphi 0, %s106
      %s108 = sphi 0, %s106
      %s109 = sphi 0, %s108
      %s123 = sphi 0, %s109
      %s127 = sphi 0, %s127
      %s129 = sphi 0, %s127
      %s130 = sphi 0, %s129
      %s144 = sphi 0, %s130
      %s148 = sphi 0, %s148
      %s150 = sphi 0, %s148
      %s151 = sphi 0, %s150
      %s165 = sphi 0, %s151
      %s169 = sphi 0, %s169
      %s171 = sphi 0, %s169
      %s172 = sphi 0, %s171
      %s186 = sphi 0, %s172
      %s190 = sphi 0, %s190
      %s192 = sphi 0, %s190
      %s193 = sphi 0, %s192
      %s207 = sphi 0, %s193
      %s213 = sphi 0, %s215
      %s216 = sphi 0, %s213
      %s217 = sphi 0, %s216
      %s233 = sphi 0, %s217
    $region4: #{tpu_custom_call.1} parent=1 // loop_header_branch
      %28 = sbr.rel (%p26) target = $region8
    $region5: #{tpu_custom_call.1} parent=1 // loop_body
      %s30 = ssub.s32 %s25, 1
      %s31 = ssub.s32 %s25, 2
      %s32 = sadd.s32 %s25, 1
      %s33 = ssub.s32 %s25, %s32
      %p34 = scmp.eq.s32.totalorder %s33, 0
      %s36 = sadd.s32 %s35, 1
      %s37 = scalar_select %p34, %s35, %s36
      %p40 = pneg %p34
      %p41 = scmp.eq.s32.totalorder %s25, 1
      %p42 = por %p40, %p41
      %p43 = scmp.ne.s32.totalorder %s35, %s38
      %p44 = scmp.eq.s32.totalorder %s25, 0
      %p45 = por %p43, %p44
      %p46 = scmp.ne.s32.totalorder %s35, %s38
      %p47 = scmp.eq.s32.totalorder %s30, 1
      %p48 = por %p46, %p47
      %p49 = scmp.ne.s32.totalorder %s38, %s39
      %p50 = scmp.eq.s32.totalorder %s30, 0
      %p51 = por %p49, %p50
      %p52 = scmp.ne.s32.totalorder %s38, %s39
      %p53 = scmp.eq.s32.totalorder %s31, 1
      %p54 = por %p52, %p53
      %p56 = scmp.ne.s32.totalorder %s39, %s55
      %p57 = scmp.eq.s32.totalorder %s31, 0
      %p58 = por %p56, %p57
      %s59 = ssub.s32 %s25, %s32
      %p60 = scmp.eq.s32.totalorder %s59, 0
      %s62 = sadd.s32 %s61, 1
      %s63 = scalar_select %p60, %s61, %s62
      %p66 = pneg %p60
      %p67 = scmp.eq.s32.totalorder %s25, 1
      %p68 = por %p66, %p67
      %p69 = scmp.ne.s32.totalorder %s61, %s64
      %p70 = scmp.eq.s32.totalorder %s25, 0
      %p71 = por %p69, %p70
      %p72 = scmp.ne.s32.totalorder %s61, %s64
      %p73 = scmp.eq.s32.totalorder %s30, 1
      %p74 = por %p72, %p73
      %p75 = scmp.ne.s32.totalorder %s64, %s65
      %p76 = scmp.eq.s32.totalorder %s30, 0
      %p77 = por %p75, %p76
      %p78 = scmp.ne.s32.totalorder %s64, %s65
      %p79 = scmp.eq.s32.totalorder %s31, 1
      %p80 = por %p78, %p79
      %p82 = scmp.ne.s32.totalorder %s65, %s81
      %p83 = scmp.eq.s32.totalorder %s31, 0
      %p84 = por %p82, %p83
      %s86 = sadd.s32 %s85, 1
      %p89 = scmp.eq.s32.totalorder %s25, 1
      %p90 = scmp.ne.s32.totalorder %s85, %s87
      %p91 = scmp.eq.s32.totalorder %s25, 0
      %p92 = por %p90, %p91
      %p93 = scmp.ne.s32.totalorder %s85, %s87
      %p94 = scmp.eq.s32.totalorder %s30, 1
      %p95 = por %p93, %p94
      %p96 = scmp.ne.s32.totalorder %s87, %s88
      %p97 = scmp.eq.s32.totalorder %s30, 0
      %p98 = por %p96, %p97
      %p99 = scmp.ne.s32.totalorder %s87, %s88
      %p100 = scmp.eq.s32.totalorder %s31, 1
      %p101 = por %p99, %p100
      %p103 = scmp.ne.s32.totalorder %s88, %s102
      %p104 = scmp.eq.s32.totalorder %s31, 0
      %p105 = por %p103, %p104
      %s107 = sadd.s32 %s106, 1
      %p110 = scmp.eq.s32.totalorder %s25, 1
      %p111 = scmp.ne.s32.totalorder %s106, %s108
      %p112 = scmp.eq.s32.totalorder %s25, 0
      %p113 = por %p111, %p112
      %p114 = scmp.ne.s32.totalorder %s106, %s108
      %p115 = scmp.eq.s32.totalorder %s30, 1
      %p116 = por %p114, %p115
      %p117 = scmp.ne.s32.totalorder %s108, %s109
      %p118 = scmp.eq.s32.totalorder %s30, 0
      %p119 = por %p117, %p118
      %p120 = scmp.ne.s32.totalorder %s108, %s109
      %p121 = scmp.eq.s32.totalorder %s31, 1
      %p122 = por %p120, %p121
      %p124 = scmp.ne.s32.totalorder %s109, %s123
      %p125 = scmp.eq.s32.totalorder %s31, 0
      %p126 = por %p124, %p125
      %s128 = sadd.s32 %s127, 1
      %p131 = scmp.eq.s32.totalorder %s25, 1
      %p132 = scmp.ne.s32.totalorder %s127, %s129
      %p133 = scmp.eq.s32.totalorder %s25, 0
      %p134 = por %p132, %p133
      %p135 = scmp.ne.s32.totalorder %s127, %s129
      %p136 = scmp.eq.s32.totalorder %s30, 1
      %p137 = por %p135, %p136
      %p138 = scmp.ne.s32.totalorder %s129, %s130
      %p139 = scmp.eq.s32.totalorder %s30, 0
      %p140 = por %p138, %p139
      %p141 = scmp.ne.s32.totalorder %s129, %s130
      %p142 = scmp.eq.s32.totalorder %s31, 1
      %p143 = por %p141, %p142
      %p145 = scmp.ne.s32.totalorder %s130, %s144
      %p146 = scmp.eq.s32.totalorder %s31, 0
      %p147 = por %p145, %p146
      %s149 = sadd.s32 %s148, 1
      %p152 = scmp.eq.s32.totalorder %s25, 1
      %p153 = scmp.ne.s32.totalorder %s148, %s150
      %p154 = scmp.eq.s32.totalorder %s25, 0
      %p155 = por %p153, %p154
      %p156 = scmp.ne.s32.totalorder %s148, %s150
      %p157 = scmp.eq.s32.totalorder %s30, 1
      %p158 = por %p156, %p157
      %p159 = scmp.ne.s32.totalorder %s150, %s151
      %p160 = scmp.eq.s32.totalorder %s30, 0
      %p161 = por %p159, %p160
      %p162 = scmp.ne.s32.totalorder %s150, %s151
      %p163 = scmp.eq.s32.totalorder %s31, 1
      %p164 = por %p162, %p163
      %p166 = scmp.ne.s32.totalorder %s151, %s165
      %p167 = scmp.eq.s32.totalorder %s31, 0
      %p168 = por %p166, %p167
      %s170 = sadd.s32 %s169, 1
      %p173 = scmp.eq.s32.totalorder %s25, 1
      %p174 = scmp.ne.s32.totalorder %s169, %s171
      %p175 = scmp.eq.s32.totalorder %s25, 0
      %p176 = por %p174, %p175
      %p177 = scmp.ne.s32.totalorder %s169, %s171
      %p178 = scmp.eq.s32.totalorder %s30, 1
      %p179 = por %p177, %p178
      %p180 = scmp.ne.s32.totalorder %s171, %s172
      %p181 = scmp.eq.s32.totalorder %s30, 0
      %p182 = por %p180, %p181
      %p183 = scmp.ne.s32.totalorder %s171, %s172
      %p184 = scmp.eq.s32.totalorder %s31, 1
      %p185 = por %p183, %p184
      %p187 = scmp.ne.s32.totalorder %s172, %s186
      %p188 = scmp.eq.s32.totalorder %s31, 0
      %p189 = por %p187, %p188
      %s191 = sadd.s32 %s190, 1
      %p194 = scmp.eq.s32.totalorder %s25, 1
      %p195 = scmp.ne.s32.totalorder %s190, %s192
      %p196 = scmp.eq.s32.totalorder %s25, 0
      %p197 = por %p195, %p196
      %p198 = scmp.ne.s32.totalorder %s190, %s192
      %p199 = scmp.eq.s32.totalorder %s30, 1
      %p200 = por %p198, %p199
      %p201 = scmp.ne.s32.totalorder %s192, %s193
      %p202 = scmp.eq.s32.totalorder %s30, 0
      %p203 = por %p201, %p202
      %p204 = scmp.ne.s32.totalorder %s192, %s193
      %p205 = scmp.eq.s32.totalorder %s31, 1
      %p206 = por %p204, %p205
      %p208 = scmp.ne.s32.totalorder %s193, %s207
      %p209 = scmp.eq.s32.totalorder %s31, 0
      %p210 = por %p208, %p209
      %s211 = ssub.s32 %s25, %s32
      %p212 = scmp.eq.s32.totalorder %s211, 0
      %s214 = sadd.s32 %s213, 1
      %s215 = scalar_select %p212, %s213, %s214
      %p218 = pneg %p212
      %p219 = scmp.eq.s32.totalorder %s25, 1
      %p220 = por %p218, %p219
      %p221 = scmp.ne.s32.totalorder %s213, %s216
      %p222 = scmp.eq.s32.totalorder %s25, 0
      %p223 = por %p221, %p222
      %p224 = scmp.ne.s32.totalorder %s213, %s216
      %p225 = scmp.eq.s32.totalorder %s30, 1
      %p226 = por %p224, %p225
      %p227 = scmp.ne.s32.totalorder %s216, %s217
      %p228 = scmp.eq.s32.totalorder %s30, 0
      %p229 = por %p227, %p228
      %p230 = scmp.ne.s32.totalorder %s216, %s217
      %p231 = scmp.eq.s32.totalorder %s31, 1
      %p232 = por %p230, %p231
      %p234 = scmp.ne.s32.totalorder %s217, %s233
      %p235 = scmp.eq.s32.totalorder %s31, 0
      %p236 = por %p234, %p235
      %p237 = scmp.le.s32.totalorder 1, %s25
      %p238 = scmp.lt.s32.totalorder %s25, 3
      %p239 = pnand %p237, %p238
      %p240 = pneg %p239
      // Predicated region
      $region9: #{tpu_custom_call.1} parent=5 // pred_check
        _
      $region10: #{tpu_custom_call.1} parent=5 // pred_check_branch
        %242 = sbr.rel (%p239) target = $region12
      $region11: #{tpu_custom_call.1} parent=5 // pred_region
        %s243 = ssub.s32 %s25, 1
        // Predicated region
        $region13: #{tpu_custom_call.1} parent=11 // pred_check
          %p244 = pneg %p98
        $region14: #{tpu_custom_call.1} parent=11 // pred_check_branch
          %246 = sbr.rel (%p244) target = $region16
        $region15: #{tpu_custom_call.1} parent=11 // pred_region
          %s248 = ssub.s32 512, 512
          %249 = vsyncadd [#allocation7], %s248
          %s250 = sshll.u32 [#allocation8], 4
          %s251 = int_to_ptr.vmem [resolvable:$true] %s250
          %256 = dma.hbm_to_vmem [thread:$0]  %s2, 512, %s251, [#allocation7], 128, 128, 8
        $region16: #{tpu_custom_call.1} parent=11 // pred_fallthru
          _
        // Predicated region
        $region17: #{tpu_custom_call.1} parent=11 // pred_check
          %p257 = pneg %p119
        $region18: #{tpu_custom_call.1} parent=11 // pred_check_branch
          %259 = sbr.rel (%p257) target = $region20
        $region19: #{tpu_custom_call.1} parent=11 // pred_region
          %s261 = ssub.s32 512, 512
          %262 = vsyncadd [#allocation10], %s261
          %s263 = sshll.u32 [#allocation9], 4
          %s264 = int_to_ptr.vmem [resolvable:$true] %s263
          %269 = dma.hbm_to_vmem [thread:$0]  %s3, 512, %s264, [#allocation10], 128, 128, 8
        $region20: #{tpu_custom_call.1} parent=11 // pred_fallthru
          _
        // Predicated region
        $region21: #{tpu_custom_call.1} parent=11 // pred_check
          %p270 = pneg %p140
        $region22: #{tpu_custom_call.1} parent=11 // pred_check_branch
          %272 = sbr.rel (%p270) target = $region24
        $region23: #{tpu_custom_call.1} parent=11 // pred_region
          %s274 = ssub.s32 512, 512
          %275 = vsyncadd [#allocation10], %s274
          %s276 = sshll.u32 [#allocation11], 4
          %s277 = int_to_ptr.vmem [resolvable:$true] %s276
          %282 = dma.hbm_to_vmem [thread:$0]  %s4, 512, %s277, [#allocation10], 128, 128, 8
        $region24: #{tpu_custom_call.1} parent=11 // pred_fallthru
          _
        // Predicated region
        $region25: #{tpu_custom_call.1} parent=11 // pred_check
          %p283 = pneg %p161
        $region26: #{tpu_custom_call.1} parent=11 // pred_check_branch
          %285 = sbr.rel (%p283) target = $region28
        $region27: #{tpu_custom_call.1} parent=11 // pred_region
          %s287 = ssub.s32 512, 512
          %288 = vsyncadd [#allocation13], %s287
          %s289 = sshll.u32 [#allocation12], 4
          %s290 = int_to_ptr.vmem [resolvable:$true] %s289
          %295 = dma.hbm_to_vmem [thread:$0]  %s5, 512, %s290, [#allocation13], 128, 128, 8
        $region28: #{tpu_custom_call.1} parent=11 // pred_fallthru
          _
        // Predicated region
        $region29: #{tpu_custom_call.1} parent=11 // pred_check
          %p296 = pneg %p182
        $region30: #{tpu_custom_call.1} parent=11 // pred_check_branch
          %298 = sbr.rel (%p296) target = $region32
        $region31: #{tpu_custom_call.1} parent=11 // pred_region
          %s300 = ssub.s32 512, 512
          %301 = vsyncadd [#allocation13], %s300
          %s302 = sshll.u32 [#allocation14], 4
          %s303 = int_to_ptr.vmem [resolvable:$true] %s302
          %308 = dma.hbm_to_vmem [thread:$0]  %s6, 512, %s303, [#allocation13], 128, 128, 8
        $region32: #{tpu_custom_call.1} parent=11 // pred_fallthru
          _
        // Predicated region
        $region33: #{tpu_custom_call.1} parent=11 // pred_check
          %p309 = pneg %p203
        $region34: #{tpu_custom_call.1} parent=11 // pred_check_branch
          %311 = sbr.rel (%p309) target = $region36
        $region35: #{tpu_custom_call.1} parent=11 // pred_region
          _
        $region36: #{tpu_custom_call.1} parent=11 // pred_fallthru
          _
      $region12: #{tpu_custom_call.1} parent=5 // pred_fallthru
        _
      %p312 = scmp.lt.s32.totalorder %s25, 2
      // Predicated region
      $region37: #{tpu_custom_call.1} parent=5 // pred_check
        %p313 = pneg %p312
      $region38: #{tpu_custom_call.1} parent=5 // pred_check_branch
        %315 = sbr.rel (%p313) target = $region40
      $region39: #{tpu_custom_call.1} parent=5 // pred_region
        // Predicated region
        $region41: #{tpu_custom_call.1} parent=39 // pred_check
          %p316 = pneg %p45
        $region42: #{tpu_custom_call.1} parent=39 // pred_check_branch
          %318 = sbr.rel (%p316) target = $region44
        $region43: #{tpu_custom_call.1} parent=39 // pred_region
          %s319 = sand.u32 %s35, 1
          %s320 = scalar_lea.sflag [#allocation4], %s319
          %s321 = sand.u32 %s35, 1
          %s322 = smul.addr %s321, 24
          %s323 = scalar_lea.vmem [#allocation3], %s322
          %s324 = smul.u32 3, %s25
          %s326 = ssub.s32 384, 384
          %327 = vsyncadd %s320, %s326
          %s328 = smul.addr %s324, 128
          %s329 = scalar_lea.hbm %s0, %s328
          %s330 = sshll.u32 %s323, 4
          %s331 = int_to_ptr.vmem [resolvable:$true] %s330
          %336 = dma.hbm_to_vmem [thread:$0]  %s329, 384, %s331, %s320, 128, 128, 8
        $region44: #{tpu_custom_call.1} parent=39 // pred_fallthru
          _
        // Predicated region
        $region45: #{tpu_custom_call.1} parent=39 // pred_check
          %p337 = pneg %p71
        $region46: #{tpu_custom_call.1} parent=39 // pred_check_branch
          %339 = sbr.rel (%p337) target = $region48
        $region47: #{tpu_custom_call.1} parent=39 // pred_region
          %s340 = sand.u32 %s25, 1
          %s341 = scalar_lea.sflag [#allocation7], %s340
          %s342 = sand.u32 %s61, 1
          %s343 = smul.addr %s342, 12
          %s344 = scalar_lea.vmem [#allocation6], %s343
          %s345 = smul.u32 3, %s25
          %s347 = ssub.s32 192, 192
          %348 = vsyncadd %s341, %s347
          %s349 = smul.addr %s345, 64
          %s350 = scalar_lea.hbm %s1, %s349
          %s351 = sshll.u32 %s344, 4
          %s352 = int_to_ptr.vmem [resolvable:$true] %s351
          %357 = dma.hbm_to_vmem [thread:$0]  %s350, 192, %s352, %s341, 64, 64, 4
        $region48: #{tpu_custom_call.1} parent=39 // pred_fallthru
          _
      $region40: #{tpu_custom_call.1} parent=5 // pred_fallthru
        _
      %p358 = scmp.le.s32.totalorder 1, %s25
      %p359 = scmp.lt.s32.totalorder %s25, 3
      %p360 = pnand %p358, %p359
      %p361 = pneg %p360
      // Predicated region
      $region49: #{tpu_custom_call.1} parent=5 // pred_check
        _
      $region50: #{tpu_custom_call.1} parent=5 // pred_check_branch
        %363 = sbr.rel (%p360) target = $region52
      $region51: #{tpu_custom_call.1} parent=5 // pred_region
        %s364 = ssub.s32 %s25, 1
        %s365 = sand.u32 %s38, 1
        %s366 = scalar_lea.sflag [#allocation4], %s365
        %s367 = sand.u32 %s38, 1
        %s368 = smul.addr %s367, 24
        %s369 = scalar_lea.vmem [#allocation3], %s368
        // Predicated region
        $region53: #{tpu_custom_call.1} parent=51 // pred_check
          %p370 = pneg %p51
        $region54: #{tpu_custom_call.1} parent=51 // pred_check_branch
          %372 = sbr.rel (%p370) target = $region56
        $region55: #{tpu_custom_call.1} parent=51 // pred_region
          %373 = dma.done %s366, 384
        $region56: #{tpu_custom_call.1} parent=51 // pred_fallthru
          _
        %s374 = sand.u32 %s30, 1
        %s375 = scalar_lea.sflag [#allocation7], %s374
        %s376 = sand.u32 %s64, 1
        %s377 = smul.addr %s376, 12
        %s378 = scalar_lea.vmem [#allocation6], %s377
        // Predicated region
        $region57: #{tpu_custom_call.1} parent=51 // pred_check
          %p379 = pneg %p77
        $region58: #{tpu_custom_call.1} parent=51 // pred_check_branch
          %381 = sbr.rel (%p379) target = $region60
        $region59: #{tpu_custom_call.1} parent=51 // pred_region
          %382 = dma.done %s375, 192
        $region60: #{tpu_custom_call.1} parent=51 // pred_fallthru
          _
        // Predicated region
        $region61: #{tpu_custom_call.1} parent=51 // pred_check
          %p383 = pneg %p98
        $region62: #{tpu_custom_call.1} parent=51 // pred_check_branch
          %385 = sbr.rel (%p383) target = $region64
        $region63: #{tpu_custom_call.1} parent=51 // pred_region
          %386 = dma.done [#allocation7], 512
        $region64: #{tpu_custom_call.1} parent=51 // pred_fallthru
          _
        // Predicated region
        $region65: #{tpu_custom_call.1} parent=51 // pred_check
          %p387 = pneg %p119
        $region66: #{tpu_custom_call.1} parent=51 // pred_check_branch
          %389 = sbr.rel (%p387) target = $region68
        $region67: #{tpu_custom_call.1} parent=51 // pred_region
          %390 = dma.done [#allocation10], 512
        $region68: #{tpu_custom_call.1} parent=51 // pred_fallthru
          _
        // Predicated region
        $region69: #{tpu_custom_call.1} parent=51 // pred_check
          %p391 = pneg %p140
        $region70: #{tpu_custom_call.1} parent=51 // pred_check_branch
          %393 = sbr.rel (%p391) target = $region72
        $region71: #{tpu_custom_call.1} parent=51 // pred_region
          %394 = dma.done [#allocation10], 512
        $region72: #{tpu_custom_call.1} parent=51 // pred_fallthru
          _
        // Predicated region
        $region73: #{tpu_custom_call.1} parent=51 // pred_check
          %p395 = pneg %p161
        $region74: #{tpu_custom_call.1} parent=51 // pred_check_branch
          %397 = sbr.rel (%p395) target = $region76
        $region75: #{tpu_custom_call.1} parent=51 // pred_region
          %398 = dma.done [#allocation13], 512
        $region76: #{tpu_custom_call.1} parent=51 // pred_fallthru
          _
        // Predicated region
        $region77: #{tpu_custom_call.1} parent=51 // pred_check
          %p399 = pneg %p182
        $region78: #{tpu_custom_call.1} parent=51 // pred_check_branch
          %401 = sbr.rel (%p399) target = $region80
        $region79: #{tpu_custom_call.1} parent=51 // pred_region
          %402 = dma.done [#allocation13], 512
        $region80: #{tpu_custom_call.1} parent=51 // pred_fallthru
          _
        %s403 = sand.u32 %s38, 1
        %s404 = scalar_lea.sflag [#allocation4], %s403
        %s405 = sand.u32 %s38, 1
        %s406 = smul.addr %s405, 24
        %s407 = scalar_lea.vmem [#allocation3], %s406
        %p408 = pneg %p51
        %p409 = pneg %p48
        %s410 = sand.u32 %s30, 1
        %s411 = scalar_lea.sflag [#allocation7], %s410
        %s412 = sand.u32 %s64, 1
        %s413 = smul.addr %s412, 12
        %s414 = scalar_lea.vmem [#allocation6], %s413
        %p415 = pneg %p77
        %p416 = pneg %p74
        %p417 = pneg %p98
        %p418 = pneg %p95
        %p419 = pneg %p119
        %p420 = pneg %p116
        %p421 = pneg %p140
        %p422 = pneg %p137
        %p423 = pneg %p161
        %p424 = pneg %p158
        %p425 = pneg %p182
        %p426 = pneg %p179
        %p427 = pneg %p203
        %p428 = pneg %p200
        %p429 = pneg %p229
        %p430 = pneg %p226
        %s431 = sand.u32 %s216, 1
        %s432 = scalar_lea.sflag [#allocation5], %s431
        %s433 = sand.u32 %s216, 1
        %s434 = smul.addr %s433, 24
        %s435 = scalar_lea.vmem [#allocation15], %s434
        %s436 = smul.u32 3, %s30
        %s437 = smul.u32 3, %s30
        %s438 = smul.u32 3, %s30
        %v439 = vld [vmem:[%s369] sm:$0xff]
        %v440 = vld [vmem:[%s369 + $0x8] sm:$0xff]
        %v441 = vld [vmem:[%s369 + $0x10] sm:$0xff]
        %v442 = vld [vmem:[#allocation8] sm:$0xff]
        %v443 = vld [vmem:[#allocation8 + $0x8] sm:$0xff]
        %v444 = vld [vmem:[#allocation8 + $0x10] sm:$0xff]
        %v445 = vld [vmem:[#allocation8 + $0x18] sm:$0xff]
        %vm446 = vcmask 261120
        %v448 = vsel %vm446, %v439, 0
        %v451 = vsel %vm446, %v440, 0
        %v454 = vsel %vm446, %v441, 0
        %456 = vmatprep.subr.mxu0 0.0
        %457 = vmatpush1.msra.mxu0 %v442
        %458 = vmatprep.subr.mxu0 0.0
        %459 = vmatpush1.msra.mxu0 %v443
        %460 = vmatprep.subr.mxu0 0.0
        %461 = vmatpush1.msra.mxu0 %v444
        %462 = vmatprep.subr.mxu0 0.0
        %463 = vmatpush1.msra.mxu0 %v445
        %464 = vmatprep.subr.mxu0 0.0
        %465 = vmatpush1.msra.mxu0 0.0
        %466 = vmatprep.subr.mxu0 0.0
        %467 = vmatpush1.msra.mxu0 0.0
        %468 = vmatprep.subr.mxu0 0.0
        %469 = vmatpush1.msra.mxu0 0.0
        %470 = vmatprep.subr.mxu0 0.0
        %471 = vmatpush1.msra.mxu0 0.0
        %472 = vmatprep.subr.mxu0 0.0
        %473 = vmatpush1.msra.mxu0 0.0
        %474 = vmatprep.subr.mxu0 0.0
        %475 = vmatpush1.msra.mxu0 0.0
        %476 = vmatprep.subr.mxu0 0.0
        %477 = vmatpush1.msra.mxu0 0.0
        %478 = vmatprep.subr.mxu0 0.0
        %479 = vmatpush1.msra.mxu0 0.0
        %480 = vmatprep.subr.mxu0 0.0
        %481 = vmatpush1.msra.mxu0 0.0
        %482 = vmatprep.subr.mxu0 0.0
        %483 = vmatpush1.msra.mxu0 0.0
        %484 = vmatprep.subr.mxu0 0.0
        %485 = vmatpush1.msra.mxu0 0.0
        %486 = vmatprep.subr.mxu0 0.0
        %487 = vmatpush1.msra.mxu0 0.0
        %488 = vmatprep.subr.mxu0 0.0
        %489 = vmatpush1.msra.mxu0 0.0
        %490 = vmatprep.subr.mxu0 0.0
        %491 = vmatpush1.msra.mxu0 0.0
        %492 = vmatprep.subr.mxu0 0.0
        %493 = vmatpush1.msra.mxu0 0.0
        %494 = vmatprep.subr.mxu0 0.0
        %495 = vmatpush1.msra.mxu0 0.0
        %496 = vmatprep.subr.mxu0 0.0
        %497 = vmatpush1.msra.mxu0 0.0
        %498 = vmatprep.subr.mxu0 0.0
        %499 = vmatpush1.msra.mxu0 0.0
        %500 = vmatprep.subr.mxu0 0.0
        %501 = vmatpush1.msra.mxu0 0.0
        %502 = vmatprep.subr.mxu0 0.0
        %503 = vmatpush1.msra.mxu0 0.0
        %504 = vmatprep.subr.mxu0 0.0
        %505 = vmatpush1.msra.mxu0 0.0
        %506 = vmatprep.subr.mxu0 0.0
        %507 = vmatpush1.msra.mxu0 0.0
        %508 = vmatprep.subr.mxu0 0.0
        %509 = vmatpush1.msra.mxu0 0.0
        %510 = vmatprep.subr.mxu0 0.0
        %511 = vmatpush1.msra.mxu0 0.0
        %512 = vmatprep.subr.mxu0 0.0
        %513 = vmatpush1.msra.mxu0 0.0
        %514 = vmatprep.subr.mxu0 0.0
        %515 = vmatpush1.msra.mxu0 0.0
        %516 = vmatprep.subr.mxu0 0.0
        %517 = vmatpush1.msra.mxu0 0.0
        %518 = vmatprep.subr.mxu0 0.0
        %519 = vmatpush1.msra.mxu0 0.0
        %520 = vmatprep.mubr.f32.mxu0 0.0
        %521 = vmatmul.mubr.f32.gmra.mrb[0].mxu0 %v448
        %v522 = vpop.f32.mrb[0].mxu0
        %v523 = vadd.f32 0.0, %v522
        %v524 = vpop.f32.mrb[0].mxu0
        %525 = vmatprep.mubr.f32.mxu0 0.0
        %526 = vmatmul.mubr.f32.gmra.mrb[0].mxu0 %v451
        %v527 = vpop.f32.mrb[0].mxu0
        %v528 = vadd.f32 0.0, %v527
        %v529 = vpop.f32.mrb[0].mxu0
        %530 = vmatprep.mubr.f32.mxu0 0.0
        %531 = vmatmul.mubr.f32.gmra.mrb[0].mxu0 %v454
        %v532 = vpop.f32.mrb[0].mxu0
        %v533 = vadd.f32 0.0, %v532
        %v534 = vpop.f32.mrb[0].mxu0
        %535 = vdwg.mxu0
        %v536 = vld [vmem:[#allocation9] sm:$0xff]
        %v537 = vld [vmem:[#allocation9 + $0x8] sm:$0xff]
        %v538 = vld [vmem:[#allocation9 + $0x10] sm:$0xff]
        %v539 = vld [vmem:[#allocation9 + $0x18] sm:$0xff]
        %540 = vmatprep.subr.mxu0 0.0
        %541 = vmatpush1.msra.mxu0 %v536
        %542 = vmatprep.subr.mxu0 0.0
        %543 = vmatpush1.msra.mxu0 %v537
        %544 = vmatprep.subr.mxu0 0.0
        %545 = vmatpush1.msra.mxu0 %v538
        %546 = vmatprep.subr.mxu0 0.0
        %547 = vmatpush1.msra.mxu0 %v539
        %548 = vmatprep.subr.mxu0 0.0
        %549 = vmatpush1.msra.mxu0 0.0
        %550 = vmatprep.subr.mxu0 0.0
        %551 = vmatpush1.msra.mxu0 0.0
        %552 = vmatprep.subr.mxu0 0.0
        %553 = vmatpush1.msra.mxu0 0.0
        %554 = vmatprep.subr.mxu0 0.0
        %555 = vmatpush1.msra.mxu0 0.0
        %556 = vmatprep.subr.mxu0 0.0
        %557 = vmatpush1.msra.mxu0 0.0
        %558 = vmatprep.subr.mxu0 0.0
        %559 = vmatpush1.msra.mxu0 0.0
        %560 = vmatprep.subr.mxu0 0.0
        %561 = vmatpush1.msra.mxu0 0.0
        %562 = vmatprep.subr.mxu0 0.0
        %563 = vmatpush1.msra.mxu0 0.0
        %564 = vmatprep.subr.mxu0 0.0
        %565 = vmatpush1.msra.mxu0 0.0
        %566 = vmatprep.subr.mxu0 0.0
        %567 = vmatpush1.msra.mxu0 0.0
        %568 = vmatprep.subr.mxu0 0.0
        %569 = vmatpush1.msra.mxu0 0.0
        %570 = vmatprep.subr.mxu0 0.0
        %571 = vmatpush1.msra.mxu0 0.0
        %572 = vmatprep.subr.mxu0 0.0
        %573 = vmatpush1.msra.mxu0 0.0
        %574 = vmatprep.subr.mxu0 0.0
        %575 = vmatpush1.msra.mxu0 0.0
        %576 = vmatprep.subr.mxu0 0.0
        %577 = vmatpush1.msra.mxu0 0.0
        %578 = vmatprep.subr.mxu0 0.0
        %579 = vmatpush1.msra.mxu0 0.0
        %580 = vmatprep.subr.mxu0 0.0
        %581 = vmatpush1.msra.mxu0 0.0
        %582 = vmatprep.subr.mxu0 0.0
        %583 = vmatpush1.msra.mxu0 0.0
        %584 = vmatprep.subr.mxu0 0.0
        %585 = vmatpush1.msra.mxu0 0.0
        %586 = vmatprep.subr.mxu0 0.0
        %587 = vmatpush1.msra.mxu0 0.0
        %588 = vmatprep.subr.mxu0 0.0
        %589 = vmatpush1.msra.mxu0 0.0
        %590 = vmatprep.subr.mxu0 0.0
        %591 = vmatpush1.msra.mxu0 0.0
        %592 = vmatprep.subr.mxu0 0.0
        %593 = vmatpush1.msra.mxu0 0.0
        %594 = vmatprep.subr.mxu0 0.0
        %595 = vmatpush1.msra.mxu0 0.0
        %596 = vmatprep.subr.mxu0 0.0
        %597 = vmatpush1.msra.mxu0 0.0
        %598 = vmatprep.subr.mxu0 0.0
        %599 = vmatpush1.msra.mxu0 0.0
        %600 = vmatprep.subr.mxu0 0.0
        %601 = vmatpush1.msra.mxu0 0.0
        %602 = vmatprep.subr.mxu0 0.0
        %603 = vmatpush1.msra.mxu0 0.0
        %604 = vmatprep.mubr.f32.mxu0 0.0
        %605 = vmatmul.mubr.f32.gmra.mrb[0].mxu0 %v448
        %v606 = vpop.f32.mrb[0].mxu0
        %v607 = vadd.f32 0.0, %v606
        %v608 = vpop.f32.mrb[0].mxu0
        %609 = vmatprep.mubr.f32.mxu0 0.0
        %610 = vmatmul.mubr.f32.gmra.mrb[0].mxu0 %v451
        %v611 = vpop.f32.mrb[0].mxu0
        %v612 = vadd.f32 0.0, %v611
        %v613 = vpop.f32.mrb[0].mxu0
        %614 = vmatprep.mubr.f32.mxu0 0.0
        %615 = vmatmul.mubr.f32.gmra.mrb[0].mxu0 %v454
        %v616 = vpop.f32.mrb[0].mxu0
        %v617 = vadd.f32 0.0, %v616
        %v618 = vpop.f32.mrb[0].mxu0
        %619 = vdwg.mxu0
        %v620 = vld [vmem:[#allocation11] sm:$0xff]
        %v621 = vld [vmem:[#allocation11 + $0x8] sm:$0xff]
        %v622 = vld [vmem:[#allocation11 + $0x10] sm:$0xff]
        %v623 = vld [vmem:[#allocation11 + $0x18] sm:$0xff]
        %624 = vmatprep.subr.mxu0 0.0
        %625 = vmatpush1.msra.mxu0 %v620
        %626 = vmatprep.subr.mxu0 0.0
        %627 = vmatpush1.msra.mxu0 %v621
        %628 = vmatprep.subr.mxu0 0.0
        %629 = vmatpush1.msra.mxu0 %v622
        %630 = vmatprep.subr.mxu0 0.0
        %631 = vmatpush1.msra.mxu0 %v623
        %632 = vmatprep.subr.mxu0 0.0
        %633 = vmatpush1.msra.mxu0 0.0
        %634 = vmatprep.subr.mxu0 0.0
        %635 = vmatpush1.msra.mxu0 0.0
        %636 = vmatprep.subr.mxu0 0.0
        %637 = vmatpush1.msra.mxu0 0.0
        %638 = vmatprep.subr.mxu0 0.0
        %639 = vmatpush1.msra.mxu0 0.0
        %640 = vmatprep.subr.mxu0 0.0
        %641 = vmatpush1.msra.mxu0 0.0
        %642 = vmatprep.subr.mxu0 0.0
        %643 = vmatpush1.msra.mxu0 0.0
        %644 = vmatprep.subr.mxu0 0.0
        %645 = vmatpush1.msra.mxu0 0.0
        %646 = vmatprep.subr.mxu0 0.0
        %647 = vmatpush1.msra.mxu0 0.0
        %648 = vmatprep.subr.mxu0 0.0
        %649 = vmatpush1.msra.mxu0 0.0
        %650 = vmatprep.subr.mxu0 0.0
        %651 = vmatpush1.msra.mxu0 0.0
        %652 = vmatprep.subr.mxu0 0.0
        %653 = vmatpush1.msra.mxu0 0.0
        %654 = vmatprep.subr.mxu0 0.0
        %655 = vmatpush1.msra.mxu0 0.0
        %656 = vmatprep.subr.mxu0 0.0
        %657 = vmatpush1.msra.mxu0 0.0
        %658 = vmatprep.subr.mxu0 0.0
        %659 = vmatpush1.msra.mxu0 0.0
        %660 = vmatprep.subr.mxu0 0.0
        %661 = vmatpush1.msra.mxu0 0.0
        %662 = vmatprep.subr.mxu0 0.0
        %663 = vmatpush1.msra.mxu0 0.0
        %664 = vmatprep.subr.mxu0 0.0
        %665 = vmatpush1.msra.mxu0 0.0
        %666 = vmatprep.subr.mxu0 0.0
        %667 = vmatpush1.msra.mxu0 0.0
        %668 = vmatprep.subr.mxu0 0.0
        %669 = vmatpush1.msra.mxu0 0.0
        %670 = vmatprep.subr.mxu0 0.0
        %671 = vmatpush1.msra.mxu0 0.0
        %672 = vmatprep.subr.mxu0 0.0
        %673 = vmatpush1.msra.mxu0 0.0
        %674 = vmatprep.subr.mxu0 0.0
        %675 = vmatpush1.msra.mxu0 0.0
        %676 = vmatprep.subr.mxu0 0.0
        %677 = vmatpush1.msra.mxu0 0.0
        %678 = vmatprep.subr.mxu0 0.0
        %679 = vmatpush1.msra.mxu0 0.0
        %680 = vmatprep.subr.mxu0 0.0
        %681 = vmatpush1.msra.mxu0 0.0
        %682 = vmatprep.subr.mxu0 0.0
        %683 = vmatpush1.msra.mxu0 0.0
        %684 = vmatprep.subr.mxu0 0.0
        %685 = vmatpush1.msra.mxu0 0.0
        %686 = vmatprep.subr.mxu0 0.0
        %687 = vmatpush1.msra.mxu0 0.0
        %688 = vmatprep.mubr.f32.mxu0 0.0
        %689 = vmatmul.mubr.f32.gmra.mrb[0].mxu0 %v448
        %v690 = vpop.f32.mrb[0].mxu0
        %v691 = vadd.f32 0.0, %v690
        %v692 = vpop.f32.mrb[0].mxu0
        %693 = vmatprep.mubr.f32.mxu0 0.0
        %694 = vmatmul.mubr.f32.gmra.mrb[0].mxu0 %v451
        %v695 = vpop.f32.mrb[0].mxu0
        %v696 = vadd.f32 0.0, %v695
        %v697 = vpop.f32.mrb[0].mxu0
        %698 = vmatprep.mubr.f32.mxu0 0.0
        %699 = vmatmul.mubr.f32.gmra.mrb[0].mxu0 %v454
        %v700 = vpop.f32.mrb[0].mxu0
        %v701 = vadd.f32 0.0, %v700
        %v702 = vpop.f32.mrb[0].mxu0
        %703 = vdwg.mxu0
        %v704 = vld [vmem:[%s378] sm:$0xf]
        %v705 = vld [vmem:[%s378 + $0x4] sm:$0xf]
        %v706 = vld [vmem:[%s378 + $0x8] sm:$0xf]
        %v707 = vunpack.c.l.bf16 %v704
        %v708 = vunpack.c.l.bf16 %v705
        %v709 = vunpack.c.l.bf16 %v706
        %vm710 = vcmask 64512
        %v712 = vsel %vm710, %v523, 0
        %v715 = vsel %vm710, %v607, 0
        %717 = vmatprep.subr.mxu0 0.0
        %718 = vmatpush1.xpose.msra.mxu0 %v715
        %719 = vmatprep.subr.mxu0 0.0
        %720 = vmatpush1.xpose.msra.mxu0 0.0
        %721 = vmatprep.subr.mxu0 0.0
        %722 = vmatpush1.xpose.msra.mxu0 0.0
        %723 = vmatprep.subr.mxu0 0.0
        %724 = vmatpush1.xpose.msra.mxu0 0.0
        %725 = vmatprep.subr.mxu0 0.0
        %726 = vmatpush1.xpose.msra.mxu0 0.0
        %727 = vmatprep.subr.mxu0 0.0
        %728 = vmatpush1.xpose.msra.mxu0 0.0
        %729 = vmatprep.subr.mxu0 0.0
        %730 = vmatpush1.xpose.msra.mxu0 0.0
        %731 = vmatprep.subr.mxu0 0.0
        %732 = vmatpush1.xpose.msra.mxu0 0.0
        %733 = vmatprep.subr.mxu0 0.0
        %734 = vmatpush1.xpose.msra.mxu0 0.0
        %735 = vmatprep.subr.mxu0 0.0
        %736 = vmatpush1.xpose.msra.mxu0 0.0
        %737 = vmatprep.subr.mxu0 0.0
        %738 = vmatpush1.xpose.msra.mxu0 0.0
        %739 = vmatprep.subr.mxu0 0.0
        %740 = vmatpush1.xpose.msra.mxu0 0.0
        %741 = vmatprep.subr.mxu0 0.0
        %742 = vmatpush1.xpose.msra.mxu0 0.0
        %743 = vmatprep.subr.mxu0 0.0
        %744 = vmatpush1.xpose.msra.mxu0 0.0
        %745 = vmatprep.subr.mxu0 0.0
        %746 = vmatpush1.xpose.msra.mxu0 0.0
        %747 = vmatprep.subr.mxu0 0.0
        %748 = vmatpush1.xpose.msra.mxu0 0.0
        %749 = vmatprep.subr.mxu0 0.0
        %750 = vmatpush1.xpose.msra.mxu0 0.0
        %751 = vmatprep.subr.mxu0 0.0
        %752 = vmatpush1.xpose.msra.mxu0 0.0
        %753 = vmatprep.subr.mxu0 0.0
        %754 = vmatpush1.xpose.msra.mxu0 0.0
        %755 = vmatprep.subr.mxu0 0.0
        %756 = vmatpush1.xpose.msra.mxu0 0.0
        %757 = vmatprep.subr.mxu0 0.0
        %758 = vmatpush1.xpose.msra.mxu0 0.0
        %759 = vmatprep.subr.mxu0 0.0
        %760 = vmatpush1.xpose.msra.mxu0 0.0
        %761 = vmatprep.subr.mxu0 0.0
        %762 = vmatpush1.xpose.msra.mxu0 0.0
        %763 = vmatprep.subr.mxu0 0.0
        %764 = vmatpush1.xpose.msra.mxu0 0.0
        %765 = vmatprep.subr.mxu0 0.0
        %766 = vmatpush1.xpose.msra.mxu0 0.0
        %767 = vmatprep.subr.mxu0 0.0
        %768 = vmatpush1.xpose.msra.mxu0 0.0
        %769 = vmatprep.subr.mxu0 0.0
        %770 = vmatpush1.xpose.msra.mxu0 0.0
        %771 = vmatprep.subr.mxu0 0.0
        %772 = vmatpush1.xpose.msra.mxu0 0.0
        %773 = vmatprep.subr.mxu0 0.0
        %774 = vmatpush1.xpose.msra.mxu0 0.0
        %775 = vmatprep.subr.mxu0 0.0
        %776 = vmatpush1.xpose.msra.mxu0 0.0
        %777 = vmatprep.subr.mxu0 0.0
        %778 = vmatpush1.xpose.msra.mxu0 0.0
        %779 = vmatprep.subr.mxu0 0.0
        %780 = vmatpush1.xpose.msra.mxu0 0.0
        %781 = vmatprep.mubr.f32.mxu0 0.0
        %782 = vmatmul.mubr.f32.gmra.mrb[0].mxu0 %v712
        %v783 = vpop.f32.mrb[0].mxu0
        %v784 = vadd.f32 0.0, %v783
        %v785 = vpop.f32.mrb[0].mxu0
        %786 = vdwg.mxu0
        %v788 = vsel %vm710, %v528, 0
        %v791 = vsel %vm710, %v612, 0
        %793 = vmatprep.subr.mxu0 0.0
        %794 = vmatpush1.xpose.msra.mxu0 %v791
        %795 = vmatprep.subr.mxu0 0.0
        %796 = vmatpush1.xpose.msra.mxu0 0.0
        %797 = vmatprep.subr.mxu0 0.0
        %798 = vmatpush1.xpose.msra.mxu0 0.0
        %799 = vmatprep.subr.mxu0 0.0
        %800 = vmatpush1.xpose.msra.mxu0 0.0
        %801 = vmatprep.subr.mxu0 0.0
        %802 = vmatpush1.xpose.msra.mxu0 0.0
        %803 = vmatprep.subr.mxu0 0.0
        %804 = vmatpush1.xpose.msra.mxu0 0.0
        %805 = vmatprep.subr.mxu0 0.0
        %806 = vmatpush1.xpose.msra.mxu0 0.0
        %807 = vmatprep.subr.mxu0 0.0
        %808 = vmatpush1.xpose.msra.mxu0 0.0
        %809 = vmatprep.subr.mxu0 0.0
        %810 = vmatpush1.xpose.msra.mxu0 0.0
        %811 = vmatprep.subr.mxu0 0.0
        %812 = vmatpush1.xpose.msra.mxu0 0.0
        %813 = vmatprep.subr.mxu0 0.0
        %814 = vmatpush1.xpose.msra.mxu0 0.0
        %815 = vmatprep.subr.mxu0 0.0
        %816 = vmatpush1.xpose.msra.mxu0 0.0
        %817 = vmatprep.subr.mxu0 0.0
        %818 = vmatpush1.xpose.msra.mxu0 0.0
        %819 = vmatprep.subr.mxu0 0.0
        %820 = vmatpush1.xpose.msra.mxu0 0.0
        %821 = vmatprep.subr.mxu0 0.0
        %822 = vmatpush1.xpose.msra.mxu0 0.0
        %823 = vmatprep.subr.mxu0 0.0
        %824 = vmatpush1.xpose.msra.mxu0 0.0
        %825 = vmatprep.subr.mxu0 0.0
        %826 = vmatpush1.xpose.msra.mxu0 0.0
        %827 = vmatprep.subr.mxu0 0.0
        %828 = vmatpush1.xpose.msra.mxu0 0.0
        %829 = vmatprep.subr.mxu0 0.0
        %830 = vmatpush1.xpose.msra.mxu0 0.0
        %831 = vmatprep.subr.mxu0 0.0
        %832 = vmatpush1.xpose.msra.mxu0 0.0
        %833 = vmatprep.subr.mxu0 0.0
        %834 = vmatpush1.xpose.msra.mxu0 0.0
        %835 = vmatprep.subr.mxu0 0.0
        %836 = vmatpush1.xpose.msra.mxu0 0.0
        %837 = vmatprep.subr.mxu0 0.0
        %838 = vmatpush1.xpose.msra.mxu0 0.0
        %839 = vmatprep.subr.mxu0 0.0
        %840 = vmatpush1.xpose.msra.mxu0 0.0
        %841 = vmatprep.subr.mxu0 0.0
        %842 = vmatpush1.xpose.msra.mxu0 0.0
        %843 = vmatprep.subr.mxu0 0.0
        %844 = vmatpush1.xpose.msra.mxu0 0.0
        %845 = vmatprep.subr.mxu0 0.0
        %846 = vmatpush1.xpose.msra.mxu0 0.0
        %847 = vmatprep.subr.mxu0 0.0
        %848 = vmatpush1.xpose.msra.mxu0 0.0
        %849 = vmatprep.subr.mxu0 0.0
        %850 = vmatpush1.xpose.msra.mxu0 0.0
        %851 = vmatprep.subr.mxu0 0.0
        %852 = vmatpush1.xpose.msra.mxu0 0.0
        %853 = vmatprep.subr.mxu0 0.0
        %854 = vmatpush1.xpose.msra.mxu0 0.0
        %855 = vmatprep.subr.mxu0 0.0
        %856 = vmatpush1.xpose.msra.mxu0 0.0
        %857 = vmatprep.mubr.f32.mxu0 0.0
        %858 = vmatmul.mubr.f32.gmra.mrb[0].mxu0 %v788
        %v859 = vpop.f32.mrb[0].mxu0
        %v860 = vadd.f32 0.0, %v859
        %v861 = vpop.f32.mrb[0].mxu0
        %862 = vdwg.mxu0
        %v864 = vsel %vm710, %v533, 0
        %v867 = vsel %vm710, %v617, 0
        %869 = vmatprep.subr.mxu0 0.0
        %870 = vmatpush1.xpose.msra.mxu0 %v867
        %871 = vmatprep.subr.mxu0 0.0
        %872 = vmatpush1.xpose.msra.mxu0 0.0
        %873 = vmatprep.subr.mxu0 0.0
        %874 = vmatpush1.xpose.msra.mxu0 0.0
        %875 = vmatprep.subr.mxu0 0.0
        %876 = vmatpush1.xpose.msra.mxu0 0.0
        %877 = vmatprep.subr.mxu0 0.0
        %878 = vmatpush1.xpose.msra.mxu0 0.0
        %879 = vmatprep.subr.mxu0 0.0
        %880 = vmatpush1.xpose.msra.mxu0 0.0
        %881 = vmatprep.subr.mxu0 0.0
        %882 = vmatpush1.xpose.msra.mxu0 0.0
        %883 = vmatprep.subr.mxu0 0.0
        %884 = vmatpush1.xpose.msra.mxu0 0.0
        %885 = vmatprep.subr.mxu0 0.0
        %886 = vmatpush1.xpose.msra.mxu0 0.0
        %887 = vmatprep.subr.mxu0 0.0
        %888 = vmatpush1.xpose.msra.mxu0 0.0
        %889 = vmatprep.subr.mxu0 0.0
        %890 = vmatpush1.xpose.msra.mxu0 0.0
        %891 = vmatprep.subr.mxu0 0.0
        %892 = vmatpush1.xpose.msra.mxu0 0.0
        %893 = vmatprep.subr.mxu0 0.0
        %894 = vmatpush1.xpose.msra.mxu0 0.0
        %895 = vmatprep.subr.mxu0 0.0
        %896 = vmatpush1.xpose.msra.mxu0 0.0
        %897 = vmatprep.subr.mxu0 0.0
        %898 = vmatpush1.xpose.msra.mxu0 0.0
        %899 = vmatprep.subr.mxu0 0.0
        %900 = vmatpush1.xpose.msra.mxu0 0.0
        %901 = vmatprep.subr.mxu0 0.0
        %902 = vmatpush1.xpose.msra.mxu0 0.0
        %903 = vmatprep.subr.mxu0 0.0
        %904 = vmatpush1.xpose.msra.mxu0 0.0
        %905 = vmatprep.subr.mxu0 0.0
        %906 = vmatpush1.xpose.msra.mxu0 0.0
        %907 = vmatprep.subr.mxu0 0.0
        %908 = vmatpush1.xpose.msra.mxu0 0.0
        %909 = vmatprep.subr.mxu0 0.0
        %910 = vmatpush1.xpose.msra.mxu0 0.0
        %911 = vmatprep.subr.mxu0 0.0
        %912 = vmatpush1.xpose.msra.mxu0 0.0
        %913 = vmatprep.subr.mxu0 0.0
        %914 = vmatpush1.xpose.msra.mxu0 0.0
        %915 = vmatprep.subr.mxu0 0.0
        %916 = vmatpush1.xpose.msra.mxu0 0.0
        %917 = vmatprep.subr.mxu0 0.0
        %918 = vmatpush1.xpose.msra.mxu0 0.0
        %919 = vmatprep.subr.mxu0 0.0
        %920 = vmatpush1.xpose.msra.mxu0 0.0
        %921 = vmatprep.subr.mxu0 0.0
        %922 = vmatpush1.xpose.msra.mxu0 0.0
        %923 = vmatprep.subr.mxu0 0.0
        %924 = vmatpush1.xpose.msra.mxu0 0.0
        %925 = vmatprep.subr.mxu0 0.0
        %926 = vmatpush1.xpose.msra.mxu0 0.0
        %927 = vmatprep.subr.mxu0 0.0
        %928 = vmatpush1.xpose.msra.mxu0 0.0
        %929 = vmatprep.subr.mxu0 0.0
        %930 = vmatpush1.xpose.msra.mxu0 0.0
        %931 = vmatprep.subr.mxu0 0.0
        %932 = vmatpush1.xpose.msra.mxu0 0.0
        %933 = vmatprep.mubr.f32.mxu0 0.0
        %934 = vmatmul.mubr.f32.gmra.mrb[0].mxu0 %v864
        %v935 = vpop.f32.mrb[0].mxu0
        %v936 = vadd.f32 0.0, %v935
        %v937 = vpop.f32.mrb[0].mxu0
        %938 = vdwg.mxu0
        %vm939 = vcmp.gt.f32.partialorder %v784, 0.0
        %vm940 = vcmp.gt.f32.partialorder %v860, 0.0
        %vm941 = vcmp.gt.f32.partialorder %v936, 0.0
        %v942 = vmul.f32 %v784, 0.2
        %v943 = vmul.f32 %v860, 0.2
        %v944 = vmul.f32 %v936, 0.2
        %v945 = vsel %vm939, %v784, %v942
        %v946 = vsel %vm940, %v860, %v943
        %v947 = vsel %vm941, %v936, %v944
        %v948 = vadd.f32 %v945, %v707
        %v949 = vadd.f32 %v946, %v708
        %v950 = vadd.f32 %v947, %v709
        %v951 = vsel %vm710, %v948, -inf
        %952 = vmax.xlane.f32.xlu0 %v951
        %v953 = vpop.xlane.xlu0 %952
        %v954 = vsel %vm710, %v949, -inf
        %955 = vmax.xlane.f32.xlu0 %v954
        %v956 = vpop.xlane.xlu0 %955
        %v957 = vsel %vm710, %v950, -inf
        %958 = vmax.xlane.f32.xlu0 %v957
        %v959 = vpop.xlane.xlu0 %958
        %v960 = vsub.f32 %v948, %v953
        %v961 = vsub.f32 %v949, %v956
        %v962 = vsub.f32 %v950, %v959
        %v963 = vmul.f32 %v960, 1.442695
        %v964 = vpow.pop %v963
        %v965 = vmul.f32 %v961, 1.442695
        %v966 = vpow.pop %v965
        %v967 = vmul.f32 %v962, 1.442695
        %v968 = vpow.pop %v967
        %v969 = vsel %vm710, %v964, 0.0
        %970 = vadd.xlane.f32.xlu0 %v969
        %v971 = vpop.xlane.xlu0 %970
        %v972 = vsel %vm710, %v966, 0.0
        %973 = vadd.xlane.f32.xlu0 %v972
        %v974 = vpop.xlane.xlu0 %973
        %v975 = vsel %vm710, %v968, 0.0
        %976 = vadd.xlane.f32.xlu0 %v975
        %v977 = vpop.xlane.xlu0 %976
        %v978 = vrcp.pop %v971
        %v979 = vrcp.pop %v974
        %v980 = vrcp.pop %v977
        %v981 = vmul.f32 %v964, %v978
        %v982 = vmul.f32 %v966, %v979
        %v983 = vmul.f32 %v968, %v980
        %v985 = vsel %vm710, %v981, 0
        %987 = vmatprep.subr.mxu0 0.0
        %988 = vmatpush1.msra.mxu0 %v691
        %989 = vmatprep.subr.mxu0 0.0
        %990 = vmatpush1.msra.mxu0 0.0
        %991 = vmatprep.subr.mxu0 0.0
        %992 = vmatpush1.msra.mxu0 0.0
        %993 = vmatprep.subr.mxu0 0.0
        %994 = vmatpush1.msra.mxu0 0.0
        %995 = vmatprep.subr.mxu0 0.0
        %996 = vmatpush1.msra.mxu0 0.0
        %997 = vmatprep.subr.mxu0 0.0
        %998 = vmatpush1.msra.mxu0 0.0
        %999 = vmatprep.subr.mxu0 0.0
        %1000 = vmatpush1.msra.mxu0 0.0
        %1001 = vmatprep.subr.mxu0 0.0
        %1002 = vmatpush1.msra.mxu0 0.0
        %1003 = vmatprep.subr.mxu0 0.0
        %1004 = vmatpush1.msra.mxu0 0.0
        %1005 = vmatprep.subr.mxu0 0.0
        %1006 = vmatpush1.msra.mxu0 0.0
        %1007 = vmatprep.subr.mxu0 0.0
        %1008 = vmatpush1.msra.mxu0 0.0
        %1009 = vmatprep.subr.mxu0 0.0
        %1010 = vmatpush1.msra.mxu0 0.0
        %1011 = vmatprep.subr.mxu0 0.0
        %1012 = vmatpush1.msra.mxu0 0.0
        %1013 = vmatprep.subr.mxu0 0.0
        %1014 = vmatpush1.msra.mxu0 0.0
        %1015 = vmatprep.subr.mxu0 0.0
        %1016 = vmatpush1.msra.mxu0 0.0
        %1017 = vmatprep.subr.mxu0 0.0
        %1018 = vmatpush1.msra.mxu0 0.0
        %1019 = vmatprep.subr.mxu0 0.0
        %1020 = vmatpush1.msra.mxu0 0.0
        %1021 = vmatprep.subr.mxu0 0.0
        %1022 = vmatpush1.msra.mxu0 0.0
        %1023 = vmatprep.subr.mxu0 0.0
        %1024 = vmatpush1.msra.mxu0 0.0
        %1025 = vmatprep.subr.mxu0 0.0
        %1026 = vmatpush1.msra.mxu0 0.0
        %1027 = vmatprep.subr.mxu0 0.0
        %1028 = vmatpush1.msra.mxu0 0.0
        %1029 = vmatprep.subr.mxu0 0.0
        %1030 = vmatpush1.msra.mxu0 0.0
        %1031 = vmatprep.subr.mxu0 0.0
        %1032 = vmatpush1.msra.mxu0 0.0
        %1033 = vmatprep.subr.mxu0 0.0
        %1034 = vmatpush1.msra.mxu0 0.0
        %1035 = vmatprep.subr.mxu0 0.0
        %1036 = vmatpush1.msra.mxu0 0.0
        %1037 = vmatprep.subr.mxu0 0.0
        %1038 = vmatpush1.msra.mxu0 0.0
        %1039 = vmatprep.subr.mxu0 0.0
        %1040 = vmatpush1.msra.mxu0 0.0
        %1041 = vmatprep.subr.mxu0 0.0
        %1042 = vmatpush1.msra.mxu0 0.0
        %1043 = vmatprep.subr.mxu0 0.0
        %1044 = vmatpush1.msra.mxu0 0.0
        %1045 = vmatprep.subr.mxu0 0.0
        %1046 = vmatpush1.msra.mxu0 0.0
        %1047 = vmatprep.subr.mxu0 0.0
        %1048 = vmatpush1.msra.mxu0 0.0
        %1049 = vmatprep.subr.mxu0 0.0
        %1050 = vmatpush1.msra.mxu0 0.0
        %1051 = vmatprep.mubr.f32.mxu0 0.0
        %1052 = vmatmul.mubr.f32.gmra.mrb[0].mxu0 %v985
        %v1053 = vpop.f32.mrb[0].mxu0
        %v1054 = vadd.f32 0.0, %v1053
        %v1055 = vpop.f32.mrb[0].mxu0
        %1056 = vdwg.mxu0
        %v1058 = vsel %vm710, %v982, 0
        %1060 = vmatprep.subr.mxu0 0.0
        %1061 = vmatpush1.msra.mxu0 %v696
        %1062 = vmatprep.subr.mxu0 0.0
        %1063 = vmatpush1.msra.mxu0 0.0
        %1064 = vmatprep.subr.mxu0 0.0
        %1065 = vmatpush1.msra.mxu0 0.0
        %1066 = vmatprep.subr.mxu0 0.0
        %1067 = vmatpush1.msra.mxu0 0.0
        %1068 = vmatprep.subr.mxu0 0.0
        %1069 = vmatpush1.msra.mxu0 0.0
        %1070 = vmatprep.subr.mxu0 0.0
        %1071 = vmatpush1.msra.mxu0 0.0
        %1072 = vmatprep.subr.mxu0 0.0
        %1073 = vmatpush1.msra.mxu0 0.0
        %1074 = vmatprep.subr.mxu0 0.0
        %1075 = vmatpush1.msra.mxu0 0.0
        %1076 = vmatprep.subr.mxu0 0.0
        %1077 = vmatpush1.msra.mxu0 0.0
        %1078 = vmatprep.subr.mxu0 0.0
        %1079 = vmatpush1.msra.mxu0 0.0
        %1080 = vmatprep.subr.mxu0 0.0
        %1081 = vmatpush1.msra.mxu0 0.0
        %1082 = vmatprep.subr.mxu0 0.0
        %1083 = vmatpush1.msra.mxu0 0.0
        %1084 = vmatprep.subr.mxu0 0.0
        %1085 = vmatpush1.msra.mxu0 0.0
        %1086 = vmatprep.subr.mxu0 0.0
        %1087 = vmatpush1.msra.mxu0 0.0
        %1088 = vmatprep.subr.mxu0 0.0
        %1089 = vmatpush1.msra.mxu0 0.0
        %1090 = vmatprep.subr.mxu0 0.0
        %1091 = vmatpush1.msra.mxu0 0.0
        %1092 = vmatprep.subr.mxu0 0.0
        %1093 = vmatpush1.msra.mxu0 0.0
        %1094 = vmatprep.subr.mxu0 0.0
        %1095 = vmatpush1.msra.mxu0 0.0
        %1096 = vmatprep.subr.mxu0 0.0
        %1097 = vmatpush1.msra.mxu0 0.0
        %1098 = vmatprep.subr.mxu0 0.0
        %1099 = vmatpush1.msra.mxu0 0.0
        %1100 = vmatprep.subr.mxu0 0.0
        %1101 = vmatpush1.msra.mxu0 0.0
        %1102 = vmatprep.subr.mxu0 0.0
        %1103 = vmatpush1.msra.mxu0 0.0
        %1104 = vmatprep.subr.mxu0 0.0
        %1105 = vmatpush1.msra.mxu0 0.0
        %1106 = vmatprep.subr.mxu0 0.0
        %1107 = vmatpush1.msra.mxu0 0.0
        %1108 = vmatprep.subr.mxu0 0.0
        %1109 = vmatpush1.msra.mxu0 0.0
        %1110 = vmatprep.subr.mxu0 0.0
        %1111 = vmatpush1.msra.mxu0 0.0
        %1112 = vmatprep.subr.mxu0 0.0
        %1113 = vmatpush1.msra.mxu0 0.0
        %1114 = vmatprep.subr.mxu0 0.0
        %1115 = vmatpush1.msra.mxu0 0.0
        %1116 = vmatprep.subr.mxu0 0.0
        %1117 = vmatpush1.msra.mxu0 0.0
        %1118 = vmatprep.subr.mxu0 0.0
        %1119 = vmatpush1.msra.mxu0 0.0
        %1120 = vmatprep.subr.mxu0 0.0
        %1121 = vmatpush1.msra.mxu0 0.0
        %1122 = vmatprep.subr.mxu0 0.0
        %1123 = vmatpush1.msra.mxu0 0.0
        %1124 = vmatprep.mubr.f32.mxu0 0.0
        %1125 = vmatmul.mubr.f32.gmra.mrb[0].mxu0 %v1058
        %v1126 = vpop.f32.mrb[0].mxu0
        %v1127 = vadd.f32 0.0, %v1126
        %v1128 = vpop.f32.mrb[0].mxu0
        %1129 = vdwg.mxu0
        %v1131 = vsel %vm710, %v983, 0
        %1133 = vmatprep.subr.mxu0 0.0
        %1134 = vmatpush1.msra.mxu0 %v701
        %1135 = vmatprep.subr.mxu0 0.0
        %1136 = vmatpush1.msra.mxu0 0.0
        %1137 = vmatprep.subr.mxu0 0.0
        %1138 = vmatpush1.msra.mxu0 0.0
        %1139 = vmatprep.subr.mxu0 0.0
        %1140 = vmatpush1.msra.mxu0 0.0
        %1141 = vmatprep.subr.mxu0 0.0
        %1142 = vmatpush1.msra.mxu0 0.0
        %1143 = vmatprep.subr.mxu0 0.0
        %1144 = vmatpush1.msra.mxu0 0.0
        %1145 = vmatprep.subr.mxu0 0.0
        %1146 = vmatpush1.msra.mxu0 0.0
        %1147 = vmatprep.subr.mxu0 0.0
        %1148 = vmatpush1.msra.mxu0 0.0
        %1149 = vmatprep.subr.mxu0 0.0
        %1150 = vmatpush1.msra.mxu0 0.0
        %1151 = vmatprep.subr.mxu0 0.0
        %1152 = vmatpush1.msra.mxu0 0.0
        %1153 = vmatprep.subr.mxu0 0.0
        %1154 = vmatpush1.msra.mxu0 0.0
        %1155 = vmatprep.subr.mxu0 0.0
        %1156 = vmatpush1.msra.mxu0 0.0
        %1157 = vmatprep.subr.mxu0 0.0
        %1158 = vmatpush1.msra.mxu0 0.0
        %1159 = vmatprep.subr.mxu0 0.0
        %1160 = vmatpush1.msra.mxu0 0.0
        %1161 = vmatprep.subr.mxu0 0.0
        %1162 = vmatpush1.msra.mxu0 0.0
        %1163 = vmatprep.subr.mxu0 0.0
        %1164 = vmatpush1.msra.mxu0 0.0
        %1165 = vmatprep.subr.mxu0 0.0
        %1166 = vmatpush1.msra.mxu0 0.0
        %1167 = vmatprep.subr.mxu0 0.0
        %1168 = vmatpush1.msra.mxu0 0.0
        %1169 = vmatprep.subr.mxu0 0.0
        %1170 = vmatpush1.msra.mxu0 0.0
        %1171 = vmatprep.subr.mxu0 0.0
        %1172 = vmatpush1.msra.mxu0 0.0
        %1173 = vmatprep.subr.mxu0 0.0
        %1174 = vmatpush1.msra.mxu0 0.0
        %1175 = vmatprep.subr.mxu0 0.0
        %1176 = vmatpush1.msra.mxu0 0.0
        %1177 = vmatprep.subr.mxu0 0.0
        %1178 = vmatpush1.msra.mxu0 0.0
        %1179 = vmatprep.subr.mxu0 0.0
        %1180 = vmatpush1.msra.mxu0 0.0
        %1181 = vmatprep.subr.mxu0 0.0
        %1182 = vmatpush1.msra.mxu0 0.0
        %1183 = vmatprep.subr.mxu0 0.0
        %1184 = vmatpush1.msra.mxu0 0.0
        %1185 = vmatprep.subr.mxu0 0.0
        %1186 = vmatpush1.msra.mxu0 0.0
        %1187 = vmatprep.subr.mxu0 0.0
        %1188 = vmatpush1.msra.mxu0 0.0
        %1189 = vmatprep.subr.mxu0 0.0
        %1190 = vmatpush1.msra.mxu0 0.0
        %1191 = vmatprep.subr.mxu0 0.0
        %1192 = vmatpush1.msra.mxu0 0.0
        %1193 = vmatprep.subr.mxu0 0.0
        %1194 = vmatpush1.msra.mxu0 0.0
        %1195 = vmatprep.subr.mxu0 0.0
        %1196 = vmatpush1.msra.mxu0 0.0
        %1197 = vmatprep.mubr.f32.mxu0 0.0
        %1198 = vmatmul.mubr.f32.gmra.mrb[0].mxu0 %v1131
        %v1199 = vpop.f32.mrb[0].mxu0
        %v1200 = vadd.f32 0.0, %v1199
        %v1201 = vpop.f32.mrb[0].mxu0
        %1202 = vdwg.mxu0
        %1203 = vst.msk [vmem:[#allocation2] sm:$0xff] %vm710, %v1054
        %1204 = vst.msk [vmem:[#allocation2 + $0x8] sm:$0xff] %vm710, %v1127
        %1205 = vst.msk [vmem:[#allocation2 + $0x10] sm:$0xff] %vm710, %v1200
        %1206 = vrot.lane.b32.xlu0 %v523, 120
        %v1207 = vpop.permute.xlu0 %1206
        %1208 = vrot.lane.b32.xlu0 %v607, 120
        %v1209 = vpop.permute.xlu0 %1208
        %v1210 = vsel %vm710, %v1207, 0
        %v1212 = vsel %vm710, %v1209, 0
        %1214 = vmatprep.subr.mxu0 0.0
        %1215 = vmatpush1.xpose.msra.mxu0 %v1212
        %1216 = vmatprep.subr.mxu0 0.0
        %1217 = vmatpush1.xpose.msra.mxu0 0.0
        %1218 = vmatprep.subr.mxu0 0.0
        %1219 = vmatpush1.xpose.msra.mxu0 0.0
        %1220 = vmatprep.subr.mxu0 0.0
        %1221 = vmatpush1.xpose.msra.mxu0 0.0
        %1222 = vmatprep.subr.mxu0 0.0
        %1223 = vmatpush1.xpose.msra.mxu0 0.0
        %1224 = vmatprep.subr.mxu0 0.0
        %1225 = vmatpush1.xpose.msra.mxu0 0.0
        %1226 = vmatprep.subr.mxu0 0.0
        %1227 = vmatpush1.xpose.msra.mxu0 0.0
        %1228 = vmatprep.subr.mxu0 0.0
        %1229 = vmatpush1.xpose.msra.mxu0 0.0
        %1230 = vmatprep.subr.mxu0 0.0
        %1231 = vmatpush1.xpose.msra.mxu0 0.0
        %1232 = vmatprep.subr.mxu0 0.0
        %1233 = vmatpush1.xpose.msra.mxu0 0.0
        %1234 = vmatprep.subr.mxu0 0.0
        %1235 = vmatpush1.xpose.msra.mxu0 0.0
        %1236 = vmatprep.subr.mxu0 0.0
        %1237 = vmatpush1.xpose.msra.mxu0 0.0
        %1238 = vmatprep.subr.mxu0 0.0
        %1239 = vmatpush1.xpose.msra.mxu0 0.0
        %1240 = vmatprep.subr.mxu0 0.0
        %1241 = vmatpush1.xpose.msra.mxu0 0.0
        %1242 = vmatprep.subr.mxu0 0.0
        %1243 = vmatpush1.xpose.msra.mxu0 0.0
        %1244 = vmatprep.subr.mxu0 0.0
        %1245 = vmatpush1.xpose.msra.mxu0 0.0
        %1246 = vmatprep.subr.mxu0 0.0
        %1247 = vmatpush1.xpose.msra.mxu0 0.0
        %1248 = vmatprep.subr.mxu0 0.0
        %1249 = vmatpush1.xpose.msra.mxu0 0.0
        %1250 = vmatprep.subr.mxu0 0.0
        %1251 = vmatpush1.xpose.msra.mxu0 0.0
        %1252 = vmatprep.subr.mxu0 0.0
        %1253 = vmatpush1.xpose.msra.mxu0 0.0
        %1254 = vmatprep.subr.mxu0 0.0
        %1255 = vmatpush1.xpose.msra.mxu0 0.0
        %1256 = vmatprep.subr.mxu0 0.0
        %1257 = vmatpush1.xpose.msra.mxu0 0.0
        %1258 = vmatprep.subr.mxu0 0.0
        %1259 = vmatpush1.xpose.msra.mxu0 0.0
        %1260 = vmatprep.subr.mxu0 0.0
        %1261 = vmatpush1.xpose.msra.mxu0 0.0
        %1262 = vmatprep.subr.mxu0 0.0
        %1263 = vmatpush1.xpose.msra.mxu0 0.0
        %1264 = vmatprep.subr.mxu0 0.0
        %1265 = vmatpush1.xpose.msra.mxu0 0.0
        %1266 = vmatprep.subr.mxu0 0.0
        %1267 = vmatpush1.xpose.msra.mxu0 0.0
        %1268 = vmatprep.subr.mxu0 0.0
        %1269 = vmatpush1.xpose.msra.mxu0 0.0
        %1270 = vmatprep.subr.mxu0 0.0
        %1271 = vmatpush1.xpose.msra.mxu0 0.0
        %1272 = vmatprep.subr.mxu0 0.0
        %1273 = vmatpush1.xpose.msra.mxu0 0.0
        %1274 = vmatprep.subr.mxu0 0.0
        %1275 = vmatpush1.xpose.msra.mxu0 0.0
        %1276 = vmatprep.subr.mxu0 0.0
        %1277 = vmatpush1.xpose.msra.mxu0 0.0
        %1278 = vmatprep.mubr.f32.mxu0 0.0
        %1279 = vmatmul.mubr.f32.gmra.mrb[0].mxu0 %v1210
        %v1280 = vpop.f32.mrb[0].mxu0
        %v1281 = vadd.f32 0.0, %v1280
        %v1282 = vpop.f32.mrb[0].mxu0
        %1283 = vdwg.mxu0
        %1284 = vrot.lane.b32.xlu0 %v528, 120
        %v1285 = vpop.permute.xlu0 %1284
        %1286 = vrot.lane.b32.xlu0 %v612, 120
        %v1287 = vpop.permute.xlu0 %1286
        %v1288 = vsel %vm710, %v1285, 0
        %v1290 = vsel %vm710, %v1287, 0
        %1292 = vmatprep.subr.mxu0 0.0
        %1293 = vmatpush1.xpose.msra.mxu0 %v1290
        %1294 = vmatprep.subr.mxu0 0.0
        %1295 = vmatpush1.xpose.msra.mxu0 0.0
        %1296 = vmatprep.subr.mxu0 0.0
        %1297 = vmatpush1.xpose.msra.mxu0 0.0
        %1298 = vmatprep.subr.mxu0 0.0
        %1299 = vmatpush1.xpose.msra.mxu0 0.0
        %1300 = vmatprep.subr.mxu0 0.0
        %1301 = vmatpush1.xpose.msra.mxu0 0.0
        %1302 = vmatprep.subr.mxu0 0.0
        %1303 = vmatpush1.xpose.msra.mxu0 0.0
        %1304 = vmatprep.subr.mxu0 0.0
        %1305 = vmatpush1.xpose.msra.mxu0 0.0
        %1306 = vmatprep.subr.mxu0 0.0
        %1307 = vmatpush1.xpose.msra.mxu0 0.0
        %1308 = vmatprep.subr.mxu0 0.0
        %1309 = vmatpush1.xpose.msra.mxu0 0.0
        %1310 = vmatprep.subr.mxu0 0.0
        %1311 = vmatpush1.xpose.msra.mxu0 0.0
        %1312 = vmatprep.subr.mxu0 0.0
        %1313 = vmatpush1.xpose.msra.mxu0 0.0
        %1314 = vmatprep.subr.mxu0 0.0
        %1315 = vmatpush1.xpose.msra.mxu0 0.0
        %1316 = vmatprep.subr.mxu0 0.0
        %1317 = vmatpush1.xpose.msra.mxu0 0.0
        %1318 = vmatprep.subr.mxu0 0.0
        %1319 = vmatpush1.xpose.msra.mxu0 0.0
        %1320 = vmatprep.subr.mxu0 0.0
        %1321 = vmatpush1.xpose.msra.mxu0 0.0
        %1322 = vmatprep.subr.mxu0 0.0
        %1323 = vmatpush1.xpose.msra.mxu0 0.0
        %1324 = vmatprep.subr.mxu0 0.0
        %1325 = vmatpush1.xpose.msra.mxu0 0.0
        %1326 = vmatprep.subr.mxu0 0.0
        %1327 = vmatpush1.xpose.msra.mxu0 0.0
        %1328 = vmatprep.subr.mxu0 0.0
        %1329 = vmatpush1.xpose.msra.mxu0 0.0
        %1330 = vmatprep.subr.mxu0 0.0
        %1331 = vmatpush1.xpose.msra.mxu0 0.0
        %1332 = vmatprep.subr.mxu0 0.0
        %1333 = vmatpush1.xpose.msra.mxu0 0.0
        %1334 = vmatprep.subr.mxu0 0.0
        %1335 = vmatpush1.xpose.msra.mxu0 0.0
        %1336 = vmatprep.subr.mxu0 0.0
        %1337 = vmatpush1.xpose.msra.mxu0 0.0
        %1338 = vmatprep.subr.mxu0 0.0
        %1339 = vmatpush1.xpose.msra.mxu0 0.0
        %1340 = vmatprep.subr.mxu0 0.0
        %1341 = vmatpush1.xpose.msra.mxu0 0.0
        %1342 = vmatprep.subr.mxu0 0.0
        %1343 = vmatpush1.xpose.msra.mxu0 0.0
        %1344 = vmatprep.subr.mxu0 0.0
        %1345 = vmatpush1.xpose.msra.mxu0 0.0
        %1346 = vmatprep.subr.mxu0 0.0
        %1347 = vmatpush1.xpose.msra.mxu0 0.0
        %1348 = vmatprep.subr.mxu0 0.0
        %1349 = vmatpush1.xpose.msra.mxu0 0.0
        %1350 = vmatprep.subr.mxu0 0.0
        %1351 = vmatpush1.xpose.msra.mxu0 0.0
        %1352 = vmatprep.subr.mxu0 0.0
        %1353 = vmatpush1.xpose.msra.mxu0 0.0
        %1354 = vmatprep.subr.mxu0 0.0
        %1355 = vmatpush1.xpose.msra.mxu0 0.0
        %1356 = vmatprep.mubr.f32.mxu0 0.0
        %1357 = vmatmul.mubr.f32.gmra.mrb[0].mxu0 %v1288
        %v1358 = vpop.f32.mrb[0].mxu0
        %v1359 = vadd.f32 0.0, %v1358
        %v1360 = vpop.f32.mrb[0].mxu0
        %1361 = vdwg.mxu0
        %1362 = vrot.lane.b32.xlu0 %v533, 120
        %v1363 = vpop.permute.xlu0 %1362
        %1364 = vrot.lane.b32.xlu0 %v617, 120
        %v1365 = vpop.permute.xlu0 %1364
        %v1366 = vsel %vm710, %v1363, 0
        %v1368 = vsel %vm710, %v1365, 0
        %1370 = vmatprep.subr.mxu0 0.0
        %1371 = vmatpush1.xpose.msra.mxu0 %v1368
        %1372 = vmatprep.subr.mxu0 0.0
        %1373 = vmatpush1.xpose.msra.mxu0 0.0
        %1374 = vmatprep.subr.mxu0 0.0
        %1375 = vmatpush1.xpose.msra.mxu0 0.0
        %1376 = vmatprep.subr.mxu0 0.0
        %1377 = vmatpush1.xpose.msra.mxu0 0.0
        %1378 = vmatprep.subr.mxu0 0.0
        %1379 = vmatpush1.xpose.msra.mxu0 0.0
        %1380 = vmatprep.subr.mxu0 0.0
        %1381 = vmatpush1.xpose.msra.mxu0 0.0
        %1382 = vmatprep.subr.mxu0 0.0
        %1383 = vmatpush1.xpose.msra.mxu0 0.0
        %1384 = vmatprep.subr.mxu0 0.0
        %1385 = vmatpush1.xpose.msra.mxu0 0.0
        %1386 = vmatprep.subr.mxu0 0.0
        %1387 = vmatpush1.xpose.msra.mxu0 0.0
        %1388 = vmatprep.subr.mxu0 0.0
        %1389 = vmatpush1.xpose.msra.mxu0 0.0
        %1390 = vmatprep.subr.mxu0 0.0
        %1391 = vmatpush1.xpose.msra.mxu0 0.0
        %1392 = vmatprep.subr.mxu0 0.0
        %1393 = vmatpush1.xpose.msra.mxu0 0.0
        %1394 = vmatprep.subr.mxu0 0.0
        %1395 = vmatpush1.xpose.msra.mxu0 0.0
        %1396 = vmatprep.subr.mxu0 0.0
        %1397 = vmatpush1.xpose.msra.mxu0 0.0
        %1398 = vmatprep.subr.mxu0 0.0
        %1399 = vmatpush1.xpose.msra.mxu0 0.0
        %1400 = vmatprep.subr.mxu0 0.0
        %1401 = vmatpush1.xpose.msra.mxu0 0.0
        %1402 = vmatprep.subr.mxu0 0.0
        %1403 = vmatpush1.xpose.msra.mxu0 0.0
        %1404 = vmatprep.subr.mxu0 0.0
        %1405 = vmatpush1.xpose.msra.mxu0 0.0
        %1406 = vmatprep.subr.mxu0 0.0
        %1407 = vmatpush1.xpose.msra.mxu0 0.0
        %1408 = vmatprep.subr.mxu0 0.0
        %1409 = vmatpush1.xpose.msra.mxu0 0.0
        %1410 = vmatprep.subr.mxu0 0.0
        %1411 = vmatpush1.xpose.msra.mxu0 0.0
        %1412 = vmatprep.subr.mxu0 0.0
        %1413 = vmatpush1.xpose.msra.mxu0 0.0
        %1414 = vmatprep.subr.mxu0 0.0
        %1415 = vmatpush1.xpose.msra.mxu0 0.0
        %1416 = vmatprep.subr.mxu0 0.0
        %1417 = vmatpush1.xpose.msra.mxu0 0.0
        %1418 = vmatprep.subr.mxu0 0.0
        %1419 = vmatpush1.xpose.msra.mxu0 0.0
        %1420 = vmatprep.subr.mxu0 0.0
        %1421 = vmatpush1.xpose.msra.mxu0 0.0
        %1422 = vmatprep.subr.mxu0 0.0
        %1423 = vmatpush1.xpose.msra.mxu0 0.0
        %1424 = vmatprep.subr.mxu0 0.0
        %1425 = vmatpush1.xpose.msra.mxu0 0.0
        %1426 = vmatprep.subr.mxu0 0.0
        %1427 = vmatpush1.xpose.msra.mxu0 0.0
        %1428 = vmatprep.subr.mxu0 0.0
        %1429 = vmatpush1.xpose.msra.mxu0 0.0
        %1430 = vmatprep.subr.mxu0 0.0
        %1431 = vmatpush1.xpose.msra.mxu0 0.0
        %1432 = vmatprep.subr.mxu0 0.0
        %1433 = vmatpush1.xpose.msra.mxu0 0.0
        %1434 = vmatprep.mubr.f32.mxu0 0.0
        %1435 = vmatmul.mubr.f32.gmra.mrb[0].mxu0 %v1366
        %v1436 = vpop.f32.mrb[0].mxu0
        %v1437 = vadd.f32 0.0, %v1436
        %v1438 = vpop.f32.mrb[0].mxu0
        %1439 = vdwg.mxu0
        %vm1440 = vcmp.gt.f32.partialorder %v1281, 0.0
        %vm1441 = vcmp.gt.f32.partialorder %v1359, 0.0
        %vm1442 = vcmp.gt.f32.partialorder %v1437, 0.0
        %v1443 = vmul.f32 %v1281, 0.2
        %v1444 = vmul.f32 %v1359, 0.2
        %v1445 = vmul.f32 %v1437, 0.2
        %v1446 = vsel %vm1440, %v1281, %v1443
        %v1447 = vsel %vm1441, %v1359, %v1444
        %v1448 = vsel %vm1442, %v1437, %v1445
        %v1449 = vadd.f32 %v1446, %v707
        %v1450 = vadd.f32 %v1447, %v708
        %v1451 = vadd.f32 %v1448, %v709
        %v1452 = vsel %vm710, %v1449, -inf
        %1453 = vmax.xlane.f32.xlu0 %v1452
        %v1454 = vpop.xlane.xlu0 %1453
        %v1455 = vsel %vm710, %v1450, -inf
        %1456 = vmax.xlane.f32.xlu0 %v1455
        %v1457 = vpop.xlane.xlu0 %1456
        %v1458 = vsel %vm710, %v1451, -inf
        %1459 = vmax.xlane.f32.xlu0 %v1458
        %v1460 = vpop.xlane.xlu0 %1459
        %v1461 = vsub.f32 %v1449, %v1454
        %v1462 = vsub.f32 %v1450, %v1457
        %v1463 = vsub.f32 %v1451, %v1460
        %v1464 = vmul.f32 %v1461, 1.442695
        %v1465 = vpow.pop %v1464
        %v1466 = vmul.f32 %v1462, 1.442695
        %v1467 = vpow.pop %v1466
        %v1468 = vmul.f32 %v1463, 1.442695
        %v1469 = vpow.pop %v1468
        %v1470 = vsel %vm710, %v1465, 0.0
        %1471 = vadd.xlane.f32.xlu0 %v1470
        %v1472 = vpop.xlane.xlu0 %1471
        %v1473 = vsel %vm710, %v1467, 0.0
        %1474 = vadd.xlane.f32.xlu0 %v1473
        %v1475 = vpop.xlane.xlu0 %1474
        %v1476 = vsel %vm710, %v1469, 0.0
        %1477 = vadd.xlane.f32.xlu0 %v1476
        %v1478 = vpop.xlane.xlu0 %1477
        %v1479 = vrcp.pop %v1472
        %v1480 = vrcp.pop %v1475
        %v1481 = vrcp.pop %v1478
        %v1482 = vmul.f32 %v1465, %v1479
        %v1483 = vmul.f32 %v1467, %v1480
        %v1484 = vmul.f32 %v1469, %v1481
        %1486 = vrot.lane.b32.xlu0 %v691, 120
        %v1487 = vpop.permute.xlu0 %1486
        %v1490 = vsel %vm710, %v1482, 0
        %1492 = vmatprep.subr.mxu0 0.0
        %1493 = vmatpush1.msra.mxu0 %v1487
        %1494 = vmatprep.subr.mxu0 0.0
        %1495 = vmatpush1.msra.mxu0 0.0
        %1496 = vmatprep.subr.mxu0 0.0
        %1497 = vmatpush1.msra.mxu0 0.0
        %1498 = vmatprep.subr.mxu0 0.0
        %1499 = vmatpush1.msra.mxu0 0.0
        %1500 = vmatprep.subr.mxu0 0.0
        %1501 = vmatpush1.msra.mxu0 0.0
        %1502 = vmatprep.subr.mxu0 0.0
        %1503 = vmatpush1.msra.mxu0 0.0
        %1504 = vmatprep.subr.mxu0 0.0
        %1505 = vmatpush1.msra.mxu0 0.0
        %1506 = vmatprep.subr.mxu0 0.0
        %1507 = vmatpush1.msra.mxu0 0.0
        %1508 = vmatprep.subr.mxu0 0.0
        %1509 = vmatpush1.msra.mxu0 0.0
        %1510 = vmatprep.subr.mxu0 0.0
        %1511 = vmatpush1.msra.mxu0 0.0
        %1512 = vmatprep.subr.mxu0 0.0
        %1513 = vmatpush1.msra.mxu0 0.0
        %1514 = vmatprep.subr.mxu0 0.0
        %1515 = vmatpush1.msra.mxu0 0.0
        %1516 = vmatprep.subr.mxu0 0.0
        %1517 = vmatpush1.msra.mxu0 0.0
        %1518 = vmatprep.subr.mxu0 0.0
        %1519 = vmatpush1.msra.mxu0 0.0
        %1520 = vmatprep.subr.mxu0 0.0
        %1521 = vmatpush1.msra.mxu0 0.0
        %1522 = vmatprep.subr.mxu0 0.0
        %1523 = vmatpush1.msra.mxu0 0.0
        %1524 = vmatprep.subr.mxu0 0.0
        %1525 = vmatpush1.msra.mxu0 0.0
        %1526 = vmatprep.subr.mxu0 0.0
        %1527 = vmatpush1.msra.mxu0 0.0
        %1528 = vmatprep.subr.mxu0 0.0
        %1529 = vmatpush1.msra.mxu0 0.0
        %1530 = vmatprep.subr.mxu0 0.0
        %1531 = vmatpush1.msra.mxu0 0.0
        %1532 = vmatprep.subr.mxu0 0.0
        %1533 = vmatpush1.msra.mxu0 0.0
        %1534 = vmatprep.subr.mxu0 0.0
        %1535 = vmatpush1.msra.mxu0 0.0
        %1536 = vmatprep.subr.mxu0 0.0
        %1537 = vmatpush1.msra.mxu0 0.0
        %1538 = vmatprep.subr.mxu0 0.0
        %1539 = vmatpush1.msra.mxu0 0.0
        %1540 = vmatprep.subr.mxu0 0.0
        %1541 = vmatpush1.msra.mxu0 0.0
        %1542 = vmatprep.subr.mxu0 0.0
        %1543 = vmatpush1.msra.mxu0 0.0
        %1544 = vmatprep.subr.mxu0 0.0
        %1545 = vmatpush1.msra.mxu0 0.0
        %1546 = vmatprep.subr.mxu0 0.0
        %1547 = vmatpush1.msra.mxu0 0.0
        %1548 = vmatprep.subr.mxu0 0.0
        %1549 = vmatpush1.msra.mxu0 0.0
        %1550 = vmatprep.subr.mxu0 0.0
        %1551 = vmatpush1.msra.mxu0 0.0
        %1552 = vmatprep.subr.mxu0 0.0
        %1553 = vmatpush1.msra.mxu0 0.0
        %1554 = vmatprep.subr.mxu0 0.0
        %1555 = vmatpush1.msra.mxu0 0.0
        %1556 = vmatprep.mubr.f32.mxu0 0.0
        %1557 = vmatmul.mubr.f32.gmra.mrb[0].mxu0 %v1490
        %v1558 = vpop.f32.mrb[0].mxu0
        %v1559 = vadd.f32 0.0, %v1558
        %v1560 = vpop.f32.mrb[0].mxu0
        %1561 = vdwg.mxu0
        %1563 = vrot.lane.b32.xlu0 %v696, 120
        %v1564 = vpop.permute.xlu0 %1563
        %v1567 = vsel %vm710, %v1483, 0
        %1569 = vmatprep.subr.mxu0 0.0
        %1570 = vmatpush1.msra.mxu0 %v1564
        %1571 = vmatprep.subr.mxu0 0.0
        %1572 = vmatpush1.msra.mxu0 0.0
        %1573 = vmatprep.subr.mxu0 0.0
        %1574 = vmatpush1.msra.mxu0 0.0
        %1575 = vmatprep.subr.mxu0 0.0
        %1576 = vmatpush1.msra.mxu0 0.0
        %1577 = vmatprep.subr.mxu0 0.0
        %1578 = vmatpush1.msra.mxu0 0.0
        %1579 = vmatprep.subr.mxu0 0.0
        %1580 = vmatpush1.msra.mxu0 0.0
        %1581 = vmatprep.subr.mxu0 0.0
        %1582 = vmatpush1.msra.mxu0 0.0
        %1583 = vmatprep.subr.mxu0 0.0
        %1584 = vmatpush1.msra.mxu0 0.0
        %1585 = vmatprep.subr.mxu0 0.0
        %1586 = vmatpush1.msra.mxu0 0.0
        %1587 = vmatprep.subr.mxu0 0.0
        %1588 = vmatpush1.msra.mxu0 0.0
        %1589 = vmatprep.subr.mxu0 0.0
        %1590 = vmatpush1.msra.mxu0 0.0
        %1591 = vmatprep.subr.mxu0 0.0
        %1592 = vmatpush1.msra.mxu0 0.0
        %1593 = vmatprep.subr.mxu0 0.0
        %1594 = vmatpush1.msra.mxu0 0.0
        %1595 = vmatprep.subr.mxu0 0.0
        %1596 = vmatpush1.msra.mxu0 0.0
        %1597 = vmatprep.subr.mxu0 0.0
        %1598 = vmatpush1.msra.mxu0 0.0
        %1599 = vmatprep.subr.mxu0 0.0
        %1600 = vmatpush1.msra.mxu0 0.0
        %1601 = vmatprep.subr.mxu0 0.0
        %1602 = vmatpush1.msra.mxu0 0.0
        %1603 = vmatprep.subr.mxu0 0.0
        %1604 = vmatpush1.msra.mxu0 0.0
        %1605 = vmatprep.subr.mxu0 0.0
        %1606 = vmatpush1.msra.mxu0 0.0
        %1607 = vmatprep.subr.mxu0 0.0
        %1608 = vmatpush1.msra.mxu0 0.0
        %1609 = vmatprep.subr.mxu0 0.0
        %1610 = vmatpush1.msra.mxu0 0.0
        %1611 = vmatprep.subr.mxu0 0.0
        %1612 = vmatpush1.msra.mxu0 0.0
        %1613 = vmatprep.subr.mxu0 0.0
        %1614 = vmatpush1.msra.mxu0 0.0
        %1615 = vmatprep.subr.mxu0 0.0
        %1616 = vmatpush1.msra.mxu0 0.0
        %1617 = vmatprep.subr.mxu0 0.0
        %1618 = vmatpush1.msra.mxu0 0.0
        %1619 = vmatprep.subr.mxu0 0.0
        %1620 = vmatpush1.msra.mxu0 0.0
        %1621 = vmatprep.subr.mxu0 0.0
        %1622 = vmatpush1.msra.mxu0 0.0
        %1623 = vmatprep.subr.mxu0 0.0
        %1624 = vmatpush1.msra.mxu0 0.0
        %1625 = vmatprep.subr.mxu0 0.0
        %1626 = vmatpush1.msra.mxu0 0.0
        %1627 = vmatprep.subr.mxu0 0.0
        %1628 = vmatpush1.msra.mxu0 0.0
        %1629 = vmatprep.subr.mxu0 0.0
        %1630 = vmatpush1.msra.mxu0 0.0
        %1631 = vmatprep.subr.mxu0 0.0
        %1632 = vmatpush1.msra.mxu0 0.0
        %1633 = vmatprep.mubr.f32.mxu0 0.0
        %1634 = vmatmul.mubr.f32.gmra.mrb[0].mxu0 %v1567
        %v1635 = vpop.f32.mrb[0].mxu0
        %v1636 = vadd.f32 0.0, %v1635
        %v1637 = vpop.f32.mrb[0].mxu0
        %1638 = vdwg.mxu0
        %1640 = vrot.lane.b32.xlu0 %v701, 120
        %v1641 = vpop.permute.xlu0 %1640
        %v1644 = vsel %vm710, %v1484, 0
        %1646 = vmatprep.subr.mxu0 0.0
        %1647 = vmatpush1.msra.mxu0 %v1641
        %1648 = vmatprep.subr.mxu0 0.0
        %1649 = vmatpush1.msra.mxu0 0.0
        %1650 = vmatprep.subr.mxu0 0.0
        %1651 = vmatpush1.msra.mxu0 0.0
        %1652 = vmatprep.subr.mxu0 0.0
        %1653 = vmatpush1.msra.mxu0 0.0
        %1654 = vmatprep.subr.mxu0 0.0
        %1655 = vmatpush1.msra.mxu0 0.0
        %1656 = vmatprep.subr.mxu0 0.0
        %1657 = vmatpush1.msra.mxu0 0.0
        %1658 = vmatprep.subr.mxu0 0.0
        %1659 = vmatpush1.msra.mxu0 0.0
        %1660 = vmatprep.subr.mxu0 0.0
        %1661 = vmatpush1.msra.mxu0 0.0
        %1662 = vmatprep.subr.mxu0 0.0
        %1663 = vmatpush1.msra.mxu0 0.0
        %1664 = vmatprep.subr.mxu0 0.0
        %1665 = vmatpush1.msra.mxu0 0.0
        %1666 = vmatprep.subr.mxu0 0.0
        %1667 = vmatpush1.msra.mxu0 0.0
        %1668 = vmatprep.subr.mxu0 0.0
        %1669 = vmatpush1.msra.mxu0 0.0
        %1670 = vmatprep.subr.mxu0 0.0
        %1671 = vmatpush1.msra.mxu0 0.0
        %1672 = vmatprep.subr.mxu0 0.0
        %1673 = vmatpush1.msra.mxu0 0.0
        %1674 = vmatprep.subr.mxu0 0.0
        %1675 = vmatpush1.msra.mxu0 0.0
        %1676 = vmatprep.subr.mxu0 0.0
        %1677 = vmatpush1.msra.mxu0 0.0
        %1678 = vmatprep.subr.mxu0 0.0
        %1679 = vmatpush1.msra.mxu0 0.0
        %1680 = vmatprep.subr.mxu0 0.0
        %1681 = vmatpush1.msra.mxu0 0.0
        %1682 = vmatprep.subr.mxu0 0.0
        %1683 = vmatpush1.msra.mxu0 0.0
        %1684 = vmatprep.subr.mxu0 0.0
        %1685 = vmatpush1.msra.mxu0 0.0
        %1686 = vmatprep.subr.mxu0 0.0
        %1687 = vmatpush1.msra.mxu0 0.0
        %1688 = vmatprep.subr.mxu0 0.0
        %1689 = vmatpush1.msra.mxu0 0.0
        %1690 = vmatprep.subr.mxu0 0.0
        %1691 = vmatpush1.msra.mxu0 0.0
        %1692 = vmatprep.subr.mxu0 0.0
        %1693 = vmatpush1.msra.mxu0 0.0
        %1694 = vmatprep.subr.mxu0 0.0
        %1695 = vmatpush1.msra.mxu0 0.0
        %1696 = vmatprep.subr.mxu0 0.0
        %1697 = vmatpush1.msra.mxu0 0.0
        %1698 = vmatprep.subr.mxu0 0.0
        %1699 = vmatpush1.msra.mxu0 0.0
        %1700 = vmatprep.subr.mxu0 0.0
        %1701 = vmatpush1.msra.mxu0 0.0
        %1702 = vmatprep.subr.mxu0 0.0
        %1703 = vmatpush1.msra.mxu0 0.0
        %1704 = vmatprep.subr.mxu0 0.0
        %1705 = vmatpush1.msra.mxu0 0.0
        %1706 = vmatprep.subr.mxu0 0.0
        %1707 = vmatpush1.msra.mxu0 0.0
        %1708 = vmatprep.subr.mxu0 0.0
        %1709 = vmatpush1.msra.mxu0 0.0
        %1710 = vmatprep.mubr.f32.mxu0 0.0
        %1711 = vmatmul.mubr.f32.gmra.mrb[0].mxu0 %v1644
        %v1712 = vpop.f32.mrb[0].mxu0
        %v1713 = vadd.f32 0.0, %v1712
        %v1714 = vpop.f32.mrb[0].mxu0
        %1715 = vdwg.mxu0
        %1719 = vrot.lane.b32.xlu0 %v1559, 8
        %v1720 = vpop.permute.xlu0 %1719
        %1721 = vrot.lane.b32.xlu0 %v1636, 8
        %v1722 = vpop.permute.xlu0 %1721
        %1723 = vrot.lane.b32.xlu0 %v1713, 8
        %v1724 = vpop.permute.xlu0 %1723
        %vm1728 = vcmask 130112
        %1729 = vst.msk [vmem:[#allocation2] sm:$0xff] %vm1728, %v1720
        %1730 = vst.msk [vmem:[#allocation2 + $0x8] sm:$0xff] %vm1728, %v1722
        %1731 = vst.msk [vmem:[#allocation2 + $0x10] sm:$0xff] %vm1728, %v1724
        %1732 = vrot.lane.b32.xlu0 %v523, 112
        %v1733 = vpop.permute.xlu0 %1732
        %1734 = vrot.lane.b32.xlu0 %v607, 112
        %v1735 = vpop.permute.xlu0 %1734
        %v1736 = vsel %vm710, %v1733, 0
        %v1738 = vsel %vm710, %v1735, 0
        %1740 = vmatprep.subr.mxu0 0.0
        %1741 = vmatpush1.xpose.msra.mxu0 %v1738
        %1742 = vmatprep.subr.mxu0 0.0
        %1743 = vmatpush1.xpose.msra.mxu0 0.0
        %1744 = vmatprep.subr.mxu0 0.0
        %1745 = vmatpush1.xpose.msra.mxu0 0.0
        %1746 = vmatprep.subr.mxu0 0.0
        %1747 = vmatpush1.xpose.msra.mxu0 0.0
        %1748 = vmatprep.subr.mxu0 0.0
        %1749 = vmatpush1.xpose.msra.mxu0 0.0
        %1750 = vmatprep.subr.mxu0 0.0
        %1751 = vmatpush1.xpose.msra.mxu0 0.0
        %1752 = vmatprep.subr.mxu0 0.0
        %1753 = vmatpush1.xpose.msra.mxu0 0.0
        %1754 = vmatprep.subr.mxu0 0.0
        %1755 = vmatpush1.xpose.msra.mxu0 0.0
        %1756 = vmatprep.subr.mxu0 0.0
        %1757 = vmatpush1.xpose.msra.mxu0 0.0
        %1758 = vmatprep.subr.mxu0 0.0
        %1759 = vmatpush1.xpose.msra.mxu0 0.0
        %1760 = vmatprep.subr.mxu0 0.0
        %1761 = vmatpush1.xpose.msra.mxu0 0.0
        %1762 = vmatprep.subr.mxu0 0.0
        %1763 = vmatpush1.xpose.msra.mxu0 0.0
        %1764 = vmatprep.subr.mxu0 0.0
        %1765 = vmatpush1.xpose.msra.mxu0 0.0
        %1766 = vmatprep.subr.mxu0 0.0
        %1767 = vmatpush1.xpose.msra.mxu0 0.0
        %1768 = vmatprep.subr.mxu0 0.0
        %1769 = vmatpush1.xpose.msra.mxu0 0.0
        %1770 = vmatprep.subr.mxu0 0.0
        %1771 = vmatpush1.xpose.msra.mxu0 0.0
        %1772 = vmatprep.subr.mxu0 0.0
        %1773 = vmatpush1.xpose.msra.mxu0 0.0
        %1774 = vmatprep.subr.mxu0 0.0
        %1775 = vmatpush1.xpose.msra.mxu0 0.0
        %1776 = vmatprep.subr.mxu0 0.0
        %1777 = vmatpush1.xpose.msra.mxu0 0.0
        %1778 = vmatprep.subr.mxu0 0.0
        %1779 = vmatpush1.xpose.msra.mxu0 0.0
        %1780 = vmatprep.subr.mxu0 0.0
        %1781 = vmatpush1.xpose.msra.mxu0 0.0
        %1782 = vmatprep.subr.mxu0 0.0
        %1783 = vmatpush1.xpose.msra.mxu0 0.0
        %1784 = vmatprep.subr.mxu0 0.0
        %1785 = vmatpush1.xpose.msra.mxu0 0.0
        %1786 = vmatprep.subr.mxu0 0.0
        %1787 = vmatpush1.xpose.msra.mxu0 0.0
        %1788 = vmatprep.subr.mxu0 0.0
        %1789 = vmatpush1.xpose.msra.mxu0 0.0
        %1790 = vmatprep.subr.mxu0 0.0
        %1791 = vmatpush1.xpose.msra.mxu0 0.0
        %1792 = vmatprep.subr.mxu0 0.0
        %1793 = vmatpush1.xpose.msra.mxu0 0.0
        %1794 = vmatprep.subr.mxu0 0.0
        %1795 = vmatpush1.xpose.msra.mxu0 0.0
        %1796 = vmatprep.subr.mxu0 0.0
        %1797 = vmatpush1.xpose.msra.mxu0 0.0
        %1798 = vmatprep.subr.mxu0 0.0
        %1799 = vmatpush1.xpose.msra.mxu0 0.0
        %1800 = vmatprep.subr.mxu0 0.0
        %1801 = vmatpush1.xpose.msra.mxu0 0.0
        %1802 = vmatprep.subr.mxu0 0.0
        %1803 = vmatpush1.xpose.msra.mxu0 0.0
        %1804 = vmatprep.mubr.f32.mxu0 0.0
        %1805 = vmatmul.mubr.f32.gmra.mrb[0].mxu0 %v1736
        %v1806 = vpop.f32.mrb[0].mxu0
        %v1807 = vadd.f32 0.0, %v1806
        %v1808 = vpop.f32.mrb[0].mxu0
        %1809 = vdwg.mxu0
        %1810 = vrot.lane.b32.xlu0 %v528, 112
        %v1811 = vpop.permute.xlu0 %1810
        %1812 = vrot.lane.b32.xlu0 %v612, 112
        %v1813 = vpop.permute.xlu0 %1812
        %v1814 = vsel %vm710, %v1811, 0
        %v1816 = vsel %vm710, %v1813, 0
        %1818 = vmatprep.subr.mxu0 0.0
        %1819 = vmatpush1.xpose.msra.mxu0 %v1816
        %1820 = vmatprep.subr.mxu0 0.0
        %1821 = vmatpush1.xpose.msra.mxu0 0.0
        %1822 = vmatprep.subr.mxu0 0.0
        %1823 = vmatpush1.xpose.msra.mxu0 0.0
        %1824 = vmatprep.subr.mxu0 0.0
        %1825 = vmatpush1.xpose.msra.mxu0 0.0
        %1826 = vmatprep.subr.mxu0 0.0
        %1827 = vmatpush1.xpose.msra.mxu0 0.0
        %1828 = vmatprep.subr.mxu0 0.0
        %1829 = vmatpush1.xpose.msra.mxu0 0.0
        %1830 = vmatprep.subr.mxu0 0.0
        %1831 = vmatpush1.xpose.msra.mxu0 0.0
        %1832 = vmatprep.subr.mxu0 0.0
        %1833 = vmatpush1.xpose.msra.mxu0 0.0
        %1834 = vmatprep.subr.mxu0 0.0
        %1835 = vmatpush1.xpose.msra.mxu0 0.0
        %1836 = vmatprep.subr.mxu0 0.0
        %1837 = vmatpush1.xpose.msra.mxu0 0.0
        %1838 = vmatprep.subr.mxu0 0.0
        %1839 = vmatpush1.xpose.msra.mxu0 0.0
        %1840 = vmatprep.subr.mxu0 0.0
        %1841 = vmatpush1.xpose.msra.mxu0 0.0
        %1842 = vmatprep.subr.mxu0 0.0
        %1843 = vmatpush1.xpose.msra.mxu0 0.0
        %1844 = vmatprep.subr.mxu0 0.0
        %1845 = vmatpush1.xpose.msra.mxu0 0.0
        %1846 = vmatprep.subr.mxu0 0.0
        %1847 = vmatpush1.xpose.msra.mxu0 0.0
        %1848 = vmatprep.subr.mxu0 0.0
        %1849 = vmatpush1.xpose.msra.mxu0 0.0
        %1850 = vmatprep.subr.mxu0 0.0
        %1851 = vmatpush1.xpose.msra.mxu0 0.0
        %1852 = vmatprep.subr.mxu0 0.0
        %1853 = vmatpush1.xpose.msra.mxu0 0.0
        %1854 = vmatprep.subr.mxu0 0.0
        %1855 = vmatpush1.xpose.msra.mxu0 0.0
        %1856 = vmatprep.subr.mxu0 0.0
        %1857 = vmatpush1.xpose.msra.mxu0 0.0
        %1858 = vmatprep.subr.mxu0 0.0
        %1859 = vmatpush1.xpose.msra.mxu0 0.0
        %1860 = vmatprep.subr.mxu0 0.0
        %1861 = vmatpush1.xpose.msra.mxu0 0.0
        %1862 = vmatprep.subr.mxu0 0.0
        %1863 = vmatpush1.xpose.msra.mxu0 0.0
        %1864 = vmatprep.subr.mxu0 0.0
        %1865 = vmatpush1.xpose.msra.mxu0 0.0
        %1866 = vmatprep.subr.mxu0 0.0
        %1867 = vmatpush1.xpose.msra.mxu0 0.0
        %1868 = vmatprep.subr.mxu0 0.0
        %1869 = vmatpush1.xpose.msra.mxu0 0.0
        %1870 = vmatprep.subr.mxu0 0.0
        %1871 = vmatpush1.xpose.msra.mxu0 0.0
        %1872 = vmatprep.subr.mxu0 0.0
        %1873 = vmatpush1.xpose.msra.mxu0 0.0
        %1874 = vmatprep.subr.mxu0 0.0
        %1875 = vmatpush1.xpose.msra.mxu0 0.0
        %1876 = vmatprep.subr.mxu0 0.0
        %1877 = vmatpush1.xpose.msra.mxu0 0.0
        %1878 = vmatprep.subr.mxu0 0.0
        %1879 = vmatpush1.xpose.msra.mxu0 0.0
        %1880 = vmatprep.subr.mxu0 0.0
        %1881 = vmatpush1.xpose.msra.mxu0 0.0
        %1882 = vmatprep.mubr.f32.mxu0 0.0
        %1883 = vmatmul.mubr.f32.gmra.mrb[0].mxu0 %v1814
        %v1884 = vpop.f32.mrb[0].mxu0
        %v1885 = vadd.f32 0.0, %v1884
        %v1886 = vpop.f32.mrb[0].mxu0
        %1887 = vdwg.mxu0
        %1888 = vrot.lane.b32.xlu0 %v533, 112
        %v1889 = vpop.permute.xlu0 %1888
        %1890 = vrot.lane.b32.xlu0 %v617, 112
        %v1891 = vpop.permute.xlu0 %1890
        %v1892 = vsel %vm710, %v1889, 0
        %v1894 = vsel %vm710, %v1891, 0
        %1896 = vmatprep.subr.mxu0 0.0
        %1897 = vmatpush1.xpose.msra.mxu0 %v1894
        %1898 = vmatprep.subr.mxu0 0.0
        %1899 = vmatpush1.xpose.msra.mxu0 0.0
        %1900 = vmatprep.subr.mxu0 0.0
        %1901 = vmatpush1.xpose.msra.mxu0 0.0
        %1902 = vmatprep.subr.mxu0 0.0
        %1903 = vmatpush1.xpose.msra.mxu0 0.0
        %1904 = vmatprep.subr.mxu0 0.0
        %1905 = vmatpush1.xpose.msra.mxu0 0.0
        %1906 = vmatprep.subr.mxu0 0.0
        %1907 = vmatpush1.xpose.msra.mxu0 0.0
        %1908 = vmatprep.subr.mxu0 0.0
        %1909 = vmatpush1.xpose.msra.mxu0 0.0
        %1910 = vmatprep.subr.mxu0 0.0
        %1911 = vmatpush1.xpose.msra.mxu0 0.0
        %1912 = vmatprep.subr.mxu0 0.0
        %1913 = vmatpush1.xpose.msra.mxu0 0.0
        %1914 = vmatprep.subr.mxu0 0.0
        %1915 = vmatpush1.xpose.msra.mxu0 0.0
        %1916 = vmatprep.subr.mxu0 0.0
        %1917 = vmatpush1.xpose.msra.mxu0 0.0
        %1918 = vmatprep.subr.mxu0 0.0
        %1919 = vmatpush1.xpose.msra.mxu0 0.0
        %1920 = vmatprep.subr.mxu0 0.0
        %1921 = vmatpush1.xpose.msra.mxu0 0.0
        %1922 = vmatprep.subr.mxu0 0.0
        %1923 = vmatpush1.xpose.msra.mxu0 0.0
        %1924 = vmatprep.subr.mxu0 0.0
        %1925 = vmatpush1.xpose.msra.mxu0 0.0
        %1926 = vmatprep.subr.mxu0 0.0
        %1927 = vmatpush1.xpose.msra.mxu0 0.0
        %1928 = vmatprep.subr.mxu0 0.0
        %1929 = vmatpush1.xpose.msra.mxu0 0.0
        %1930 = vmatprep.subr.mxu0 0.0
        %1931 = vmatpush1.xpose.msra.mxu0 0.0
        %1932 = vmatprep.subr.mxu0 0.0
        %1933 = vmatpush1.xpose.msra.mxu0 0.0
        %1934 = vmatprep.subr.mxu0 0.0
        %1935 = vmatpush1.xpose.msra.mxu0 0.0
        %1936 = vmatprep.subr.mxu0 0.0
        %1937 = vmatpush1.xpose.msra.mxu0 0.0
        %1938 = vmatprep.subr.mxu0 0.0
        %1939 = vmatpush1.xpose.msra.mxu0 0.0
        %1940 = vmatprep.subr.mxu0 0.0
        %1941 = vmatpush1.xpose.msra.mxu0 0.0
        %1942 = vmatprep.subr.mxu0 0.0
        %1943 = vmatpush1.xpose.msra.mxu0 0.0
        %1944 = vmatprep.subr.mxu0 0.0
        %1945 = vmatpush1.xpose.msra.mxu0 0.0
        %1946 = vmatprep.subr.mxu0 0.0
        %1947 = vmatpush1.xpose.msra.mxu0 0.0
        %1948 = vmatprep.subr.mxu0 0.0
        %1949 = vmatpush1.xpose.msra.mxu0 0.0
        %1950 = vmatprep.subr.mxu0 0.0
        %1951 = vmatpush1.xpose.msra.mxu0 0.0
        %1952 = vmatprep.subr.mxu0 0.0
        %1953 = vmatpush1.xpose.msra.mxu0 0.0
        %1954 = vmatprep.subr.mxu0 0.0
        %1955 = vmatpush1.xpose.msra.mxu0 0.0
        %1956 = vmatprep.subr.mxu0 0.0
        %1957 = vmatpush1.xpose.msra.mxu0 0.0
        %1958 = vmatprep.subr.mxu0 0.0
        %1959 = vmatpush1.xpose.msra.mxu0 0.0
        %1960 = vmatprep.mubr.f32.mxu0 0.0
        %1961 = vmatmul.mubr.f32.gmra.mrb[0].mxu0 %v1892
        %v1962 = vpop.f32.mrb[0].mxu0
        %v1963 = vadd.f32 0.0, %v1962
        %v1964 = vpop.f32.mrb[0].mxu0
        %1965 = vdwg.mxu0
        %vm1966 = vcmp.gt.f32.partialorder %v1807, 0.0
        %vm1967 = vcmp.gt.f32.partialorder %v1885, 0.0
        %vm1968 = vcmp.gt.f32.partialorder %v1963, 0.0
        %v1969 = vmul.f32 %v1807, 0.2
        %v1970 = vmul.f32 %v1885, 0.2
        %v1971 = vmul.f32 %v1963, 0.2
        %v1972 = vsel %vm1966, %v1807, %v1969
        %v1973 = vsel %vm1967, %v1885, %v1970
        %v1974 = vsel %vm1968, %v1963, %v1971
        %v1975 = vadd.f32 %v1972, %v707
        %v1976 = vadd.f32 %v1973, %v708
        %v1977 = vadd.f32 %v1974, %v709
        %v1978 = vsel %vm710, %v1975, -inf
        %1979 = vmax.xlane.f32.xlu0 %v1978
        %v1980 = vpop.xlane.xlu0 %1979
        %v1981 = vsel %vm710, %v1976, -inf
        %1982 = vmax.xlane.f32.xlu0 %v1981
        %v1983 = vpop.xlane.xlu0 %1982
        %v1984 = vsel %vm710, %v1977, -inf
        %1985 = vmax.xlane.f32.xlu0 %v1984
        %v1986 = vpop.xlane.xlu0 %1985
        %v1987 = vsub.f32 %v1975, %v1980
        %v1988 = vsub.f32 %v1976, %v1983
        %v1989 = vsub.f32 %v1977, %v1986
        %v1990 = vmul.f32 %v1987, 1.442695
        %v1991 = vpow.pop %v1990
        %v1992 = vmul.f32 %v1988, 1.442695
        %v1993 = vpow.pop %v1992
        %v1994 = vmul.f32 %v1989, 1.442695
        %v1995 = vpow.pop %v1994
        %v1996 = vsel %vm710, %v1991, 0.0
        %1997 = vadd.xlane.f32.xlu0 %v1996
        %v1998 = vpop.xlane.xlu0 %1997
        %v1999 = vsel %vm710, %v1993, 0.0
        %2000 = vadd.xlane.f32.xlu0 %v1999
        %v2001 = vpop.xlane.xlu0 %2000
        %v2002 = vsel %vm710, %v1995, 0.0
        %2003 = vadd.xlane.f32.xlu0 %v2002
        %v2004 = vpop.xlane.xlu0 %2003
        %v2005 = vrcp.pop %v1998
        %v2006 = vrcp.pop %v2001
        %v2007 = vrcp.pop %v2004
        %v2008 = vmul.f32 %v1991, %v2005
        %v2009 = vmul.f32 %v1993, %v2006
        %v2010 = vmul.f32 %v1995, %v2007
        %2011 = vrot.lane.b32.xlu0 %v691, 112
        %v2012 = vpop.permute.xlu0 %2011
        %v2015 = vsel %vm710, %v2008, 0
        %2017 = vmatprep.subr.mxu0 0.0
        %2018 = vmatpush1.msra.mxu0 %v2012
        %2019 = vmatprep.subr.mxu0 0.0
        %2020 = vmatpush1.msra.mxu0 0.0
        %2021 = vmatprep.subr.mxu0 0.0
        %2022 = vmatpush1.msra.mxu0 0.0
        %2023 = vmatprep.subr.mxu0 0.0
        %2024 = vmatpush1.msra.mxu0 0.0
        %2025 = vmatprep.subr.mxu0 0.0
        %2026 = vmatpush1.msra.mxu0 0.0
        %2027 = vmatprep.subr.mxu0 0.0
        %2028 = vmatpush1.msra.mxu0 0.0
        %2029 = vmatprep.subr.mxu0 0.0
        %2030 = vmatpush1.msra.mxu0 0.0
        %2031 = vmatprep.subr.mxu0 0.0
        %2032 = vmatpush1.msra.mxu0 0.0
        %2033 = vmatprep.subr.mxu0 0.0
        %2034 = vmatpush1.msra.mxu0 0.0
        %2035 = vmatprep.subr.mxu0 0.0
        %2036 = vmatpush1.msra.mxu0 0.0
        %2037 = vmatprep.subr.mxu0 0.0
        %2038 = vmatpush1.msra.mxu0 0.0
        %2039 = vmatprep.subr.mxu0 0.0
        %2040 = vmatpush1.msra.mxu0 0.0
        %2041 = vmatprep.subr.mxu0 0.0
        %2042 = vmatpush1.msra.mxu0 0.0
        %2043 = vmatprep.subr.mxu0 0.0
        %2044 = vmatpush1.msra.mxu0 0.0
        %2045 = vmatprep.subr.mxu0 0.0
        %2046 = vmatpush1.msra.mxu0 0.0
        %2047 = vmatprep.subr.mxu0 0.0
        %2048 = vmatpush1.msra.mxu0 0.0
        %2049 = vmatprep.subr.mxu0 0.0
        %2050 = vmatpush1.msra.mxu0 0.0
        %2051 = vmatprep.subr.mxu0 0.0
        %2052 = vmatpush1.msra.mxu0 0.0
        %2053 = vmatprep.subr.mxu0 0.0
        %2054 = vmatpush1.msra.mxu0 0.0
        %2055 = vmatprep.subr.mxu0 0.0
        %2056 = vmatpush1.msra.mxu0 0.0
        %2057 = vmatprep.subr.mxu0 0.0
        %2058 = vmatpush1.msra.mxu0 0.0
        %2059 = vmatprep.subr.mxu0 0.0
        %2060 = vmatpush1.msra.mxu0 0.0
        %2061 = vmatprep.subr.mxu0 0.0
        %2062 = vmatpush1.msra.mxu0 0.0
        %2063 = vmatprep.subr.mxu0 0.0
        %2064 = vmatpush1.msra.mxu0 0.0
        %2065 = vmatprep.subr.mxu0 0.0
        %2066 = vmatpush1.msra.mxu0 0.0
        %2067 = vmatprep.subr.mxu0 0.0
        %2068 = vmatpush1.msra.mxu0 0.0
        %2069 = vmatprep.subr.mxu0 0.0
        %2070 = vmatpush1.msra.mxu0 0.0
        %2071 = vmatprep.subr.mxu0 0.0
        %2072 = vmatpush1.msra.mxu0 0.0
        %2073 = vmatprep.subr.mxu0 0.0
        %2074 = vmatpush1.msra.mxu0 0.0
        %2075 = vmatprep.subr.mxu0 0.0
        %2076 = vmatpush1.msra.mxu0 0.0
        %2077 = vmatprep.subr.mxu0 0.0
        %2078 = vmatpush1.msra.mxu0 0.0
        %2079 = vmatprep.subr.mxu0 0.0
        %2080 = vmatpush1.msra.mxu0 0.0
        %2081 = vmatprep.mubr.f32.mxu0 0.0
        %2082 = vmatmul.mubr.f32.gmra.mrb[0].mxu0 %v2015
        %v2083 = vpop.f32.mrb[0].mxu0
        %v2084 = vadd.f32 0.0, %v2083
        %v2085 = vpop.f32.mrb[0].mxu0
        %2086 = vdwg.mxu0
        %2087 = vrot.lane.b32.xlu0 %v696, 112
        %v2088 = vpop.permute.xlu0 %2087
        %v2091 = vsel %vm710, %v2009, 0
        %2093 = vmatprep.subr.mxu0 0.0
        %2094 = vmatpush1.msra.mxu0 %v2088
        %2095 = vmatprep.subr.mxu0 0.0
        %2096 = vmatpush1.msra.mxu0 0.0
        %2097 = vmatprep.subr.mxu0 0.0
        %2098 = vmatpush1.msra.mxu0 0.0
        %2099 = vmatprep.subr.mxu0 0.0
        %2100 = vmatpush1.msra.mxu0 0.0
        %2101 = vmatprep.subr.mxu0 0.0
        %2102 = vmatpush1.msra.mxu0 0.0
        %2103 = vmatprep.subr.mxu0 0.0
        %2104 = vmatpush1.msra.mxu0 0.0
        %2105 = vmatprep.subr.mxu0 0.0
        %2106 = vmatpush1.msra.mxu0 0.0
        %2107 = vmatprep.subr.mxu0 0.0
        %2108 = vmatpush1.msra.mxu0 0.0
        %2109 = vmatprep.subr.mxu0 0.0
        %2110 = vmatpush1.msra.mxu0 0.0
        %2111 = vmatprep.subr.mxu0 0.0
        %2112 = vmatpush1.msra.mxu0 0.0
        %2113 = vmatprep.subr.mxu0 0.0
        %2114 = vmatpush1.msra.mxu0 0.0
        %2115 = vmatprep.subr.mxu0 0.0
        %2116 = vmatpush1.msra.mxu0 0.0
        %2117 = vmatprep.subr.mxu0 0.0
        %2118 = vmatpush1.msra.mxu0 0.0
        %2119 = vmatprep.subr.mxu0 0.0
        %2120 = vmatpush1.msra.mxu0 0.0
        %2121 = vmatprep.subr.mxu0 0.0
        %2122 = vmatpush1.msra.mxu0 0.0
        %2123 = vmatprep.subr.mxu0 0.0
        %2124 = vmatpush1.msra.mxu0 0.0
        %2125 = vmatprep.subr.mxu0 0.0
        %2126 = vmatpush1.msra.mxu0 0.0
        %2127 = vmatprep.subr.mxu0 0.0
        %2128 = vmatpush1.msra.mxu0 0.0
        %2129 = vmatprep.subr.mxu0 0.0
        %2130 = vmatpush1.msra.mxu0 0.0
        %2131 = vmatprep.subr.mxu0 0.0
        %2132 = vmatpush1.msra.mxu0 0.0
        %2133 = vmatprep.subr.mxu0 0.0
        %2134 = vmatpush1.msra.mxu0 0.0
        %2135 = vmatprep.subr.mxu0 0.0
        %2136 = vmatpush1.msra.mxu0 0.0
        %2137 = vmatprep.subr.mxu0 0.0
        %2138 = vmatpush1.msra.mxu0 0.0
        %2139 = vmatprep.subr.mxu0 0.0
        %2140 = vmatpush1.msra.mxu0 0.0
        %2141 = vmatprep.subr.mxu0 0.0
        %2142 = vmatpush1.msra.mxu0 0.0
        %2143 = vmatprep.subr.mxu0 0.0
        %2144 = vmatpush1.msra.mxu0 0.0
        %2145 = vmatprep.subr.mxu0 0.0
        %2146 = vmatpush1.msra.mxu0 0.0
        %2147 = vmatprep.subr.mxu0 0.0
        %2148 = vmatpush1.msra.mxu0 0.0
        %2149 = vmatprep.subr.mxu0 0.0
        %2150 = vmatpush1.msra.mxu0 0.0
        %2151 = vmatprep.subr.mxu0 0.0
        %2152 = vmatpush1.msra.mxu0 0.0
        %2153 = vmatprep.subr.mxu0 0.0
        %2154 = vmatpush1.msra.mxu0 0.0
        %2155 = vmatprep.subr.mxu0 0.0
        %2156 = vmatpush1.msra.mxu0 0.0
        %2157 = vmatprep.mubr.f32.mxu0 0.0
        %2158 = vmatmul.mubr.f32.gmra.mrb[0].mxu0 %v2091
        %v2159 = vpop.f32.mrb[0].mxu0
        %v2160 = vadd.f32 0.0, %v2159
        %v2161 = vpop.f32.mrb[0].mxu0
        %2162 = vdwg.mxu0
        %2163 = vrot.lane.b32.xlu0 %v701, 112
        %v2164 = vpop.permute.xlu0 %2163
        %v2167 = vsel %vm710, %v2010, 0
        %2169 = vmatprep.subr.mxu0 0.0
        %2170 = vmatpush1.msra.mxu0 %v2164
        %2171 = vmatprep.subr.mxu0 0.0
        %2172 = vmatpush1.msra.mxu0 0.0
        %2173 = vmatprep.subr.mxu0 0.0
        %2174 = vmatpush1.msra.mxu0 0.0
        %2175 = vmatprep.subr.mxu0 0.0
        %2176 = vmatpush1.msra.mxu0 0.0
        %2177 = vmatprep.subr.mxu0 0.0
        %2178 = vmatpush1.msra.mxu0 0.0
        %2179 = vmatprep.subr.mxu0 0.0
        %2180 = vmatpush1.msra.mxu0 0.0
        %2181 = vmatprep.subr.mxu0 0.0
        %2182 = vmatpush1.msra.mxu0 0.0
        %2183 = vmatprep.subr.mxu0 0.0
        %2184 = vmatpush1.msra.mxu0 0.0
        %2185 = vmatprep.subr.mxu0 0.0
        %2186 = vmatpush1.msra.mxu0 0.0
        %2187 = vmatprep.subr.mxu0 0.0
        %2188 = vmatpush1.msra.mxu0 0.0
        %2189 = vmatprep.subr.mxu0 0.0
        %2190 = vmatpush1.msra.mxu0 0.0
        %2191 = vmatprep.subr.mxu0 0.0
        %2192 = vmatpush1.msra.mxu0 0.0
        %2193 = vmatprep.subr.mxu0 0.0
        %2194 = vmatpush1.msra.mxu0 0.0
        %2195 = vmatprep.subr.mxu0 0.0
        %2196 = vmatpush1.msra.mxu0 0.0
        %2197 = vmatprep.subr.mxu0 0.0
        %2198 = vmatpush1.msra.mxu0 0.0
        %2199 = vmatprep.subr.mxu0 0.0
        %2200 = vmatpush1.msra.mxu0 0.0
        %2201 = vmatprep.subr.mxu0 0.0
        %2202 = vmatpush1.msra.mxu0 0.0
        %2203 = vmatprep.subr.mxu0 0.0
        %2204 = vmatpush1.msra.mxu0 0.0
        %2205 = vmatprep.subr.mxu0 0.0
        %2206 = vmatpush1.msra.mxu0 0.0
        %2207 = vmatprep.subr.mxu0 0.0
        %2208 = vmatpush1.msra.mxu0 0.0
        %2209 = vmatprep.subr.mxu0 0.0
        %2210 = vmatpush1.msra.mxu0 0.0
        %2211 = vmatprep.subr.mxu0 0.0
        %2212 = vmatpush1.msra.mxu0 0.0
        %2213 = vmatprep.subr.mxu0 0.0
        %2214 = vmatpush1.msra.mxu0 0.0
        %2215 = vmatprep.subr.mxu0 0.0
        %2216 = vmatpush1.msra.mxu0 0.0
        %2217 = vmatprep.subr.mxu0 0.0
        %2218 = vmatpush1.msra.mxu0 0.0
        %2219 = vmatprep.subr.mxu0 0.0
        %2220 = vmatpush1.msra.mxu0 0.0
        %2221 = vmatprep.subr.mxu0 0.0
        %2222 = vmatpush1.msra.mxu0 0.0
        %2223 = vmatprep.subr.mxu0 0.0
        %2224 = vmatpush1.msra.mxu0 0.0
        %2225 = vmatprep.subr.mxu0 0.0
        %2226 = vmatpush1.msra.mxu0 0.0
        %2227 = vmatprep.subr.mxu0 0.0
        %2228 = vmatpush1.msra.mxu0 0.0
        %2229 = vmatprep.subr.mxu0 0.0
        %2230 = vmatpush1.msra.mxu0 0.0
        %2231 = vmatprep.subr.mxu0 0.0
        %2232 = vmatpush1.msra.mxu0 0.0
        %2233 = vmatprep.mubr.f32.mxu0 0.0
        %2234 = vmatmul.mubr.f32.gmra.mrb[0].mxu0 %v2167
        %v2235 = vpop.f32.mrb[0].mxu0
        %v2236 = vadd.f32 0.0, %v2235
        %v2237 = vpop.f32.mrb[0].mxu0
        %2238 = vdwg.mxu0
        %2242 = vrot.lane.b32.xlu0 %v2084, 16
        %v2243 = vpop.permute.xlu0 %2242
        %2244 = vrot.lane.b32.xlu0 %v2160, 16
        %v2245 = vpop.permute.xlu0 %2244
        %2246 = vrot.lane.b32.xlu0 %v2236, 16
        %v2247 = vpop.permute.xlu0 %2246
        %vm2251 = vcmask 195712
        %2252 = vst.msk [vmem:[#allocation2] sm:$0xff] %vm2251, %v2243
        %2253 = vst.msk [vmem:[#allocation2 + $0x8] sm:$0xff] %vm2251, %v2245
        %2254 = vst.msk [vmem:[#allocation2 + $0x10] sm:$0xff] %vm2251, %v2247
        %2255 = vrot.lane.b32.xlu0 %v523, 104
        %v2256 = vpop.permute.xlu0 %2255
        %2257 = vrot.lane.b32.xlu0 %v607, 104
        %v2258 = vpop.permute.xlu0 %2257
        %v2259 = vsel %vm710, %v2256, 0
        %v2261 = vsel %vm710, %v2258, 0
        %2263 = vmatprep.subr.mxu0 0.0
        %2264 = vmatpush1.xpose.msra.mxu0 %v2261
        %2265 = vmatprep.subr.mxu0 0.0
        %2266 = vmatpush1.xpose.msra.mxu0 0.0
        %2267 = vmatprep.subr.mxu0 0.0
        %2268 = vmatpush1.xpose.msra.mxu0 0.0
        %2269 = vmatprep.subr.mxu0 0.0
        %2270 = vmatpush1.xpose.msra.mxu0 0.0
        %2271 = vmatprep.subr.mxu0 0.0
        %2272 = vmatpush1.xpose.msra.mxu0 0.0
        %2273 = vmatprep.subr.mxu0 0.0
        %2274 = vmatpush1.xpose.msra.mxu0 0.0
        %2275 = vmatprep.subr.mxu0 0.0
        %2276 = vmatpush1.xpose.msra.mxu0 0.0
        %2277 = vmatprep.subr.mxu0 0.0
        %2278 = vmatpush1.xpose.msra.mxu0 0.0
        %2279 = vmatprep.subr.mxu0 0.0
        %2280 = vmatpush1.xpose.msra.mxu0 0.0
        %2281 = vmatprep.subr.mxu0 0.0
        %2282 = vmatpush1.xpose.msra.mxu0 0.0
        %2283 = vmatprep.subr.mxu0 0.0
        %2284 = vmatpush1.xpose.msra.mxu0 0.0
        %2285 = vmatprep.subr.mxu0 0.0
        %2286 = vmatpush1.xpose.msra.mxu0 0.0
        %2287 = vmatprep.subr.mxu0 0.0
        %2288 = vmatpush1.xpose.msra.mxu0 0.0
        %2289 = vmatprep.subr.mxu0 0.0
        %2290 = vmatpush1.xpose.msra.mxu0 0.0
        %2291 = vmatprep.subr.mxu0 0.0
        %2292 = vmatpush1.xpose.msra.mxu0 0.0
        %2293 = vmatprep.subr.mxu0 0.0
        %2294 = vmatpush1.xpose.msra.mxu0 0.0
        %2295 = vmatprep.subr.mxu0 0.0
        %2296 = vmatpush1.xpose.msra.mxu0 0.0
        %2297 = vmatprep.subr.mxu0 0.0
        %2298 = vmatpush1.xpose.msra.mxu0 0.0
        %2299 = vmatprep.subr.mxu0 0.0
        %2300 = vmatpush1.xpose.msra.mxu0 0.0
        %2301 = vmatprep.subr.mxu0 0.0
        %2302 = vmatpush1.xpose.msra.mxu0 0.0
        %2303 = vmatprep.subr.mxu0 0.0
        %2304 = vmatpush1.xpose.msra.mxu0 0.0
        %2305 = vmatprep.subr.mxu0 0.0
        %2306 = vmatpush1.xpose.msra.mxu0 0.0
        %2307 = vmatprep.subr.mxu0 0.0
        %2308 = vmatpush1.xpose.msra.mxu0 0.0
        %2309 = vmatprep.subr.mxu0 0.0
        %2310 = vmatpush1.xpose.msra.mxu0 0.0
        %2311 = vmatprep.subr.mxu0 0.0
        %2312 = vmatpush1.xpose.msra.mxu0 0.0
        %2313 = vmatprep.subr.mxu0 0.0
        %2314 = vmatpush1.xpose.msra.mxu0 0.0
        %2315 = vmatprep.subr.mxu0 0.0
        %2316 = vmatpush1.xpose.msra.mxu0 0.0
        %2317 = vmatprep.subr.mxu0 0.0
        %2318 = vmatpush1.xpose.msra.mxu0 0.0
        %2319 = vmatprep.subr.mxu0 0.0
        %2320 = vmatpush1.xpose.msra.mxu0 0.0
        %2321 = vmatprep.subr.mxu0 0.0
        %2322 = vmatpush1.xpose.msra.mxu0 0.0
        %2323 = vmatprep.subr.mxu0 0.0
        %2324 = vmatpush1.xpose.msra.mxu0 0.0
        %2325 = vmatprep.subr.mxu0 0.0
        %2326 = vmatpush1.xpose.msra.mxu0 0.0
        %2327 = vmatprep.mubr.f32.mxu0 0.0
        %2328 = vmatmul.mubr.f32.gmra.mrb[0].mxu0 %v2259
        %v2329 = vpop.f32.mrb[0].mxu0
        %v2330 = vadd.f32 0.0, %v2329
        %v2331 = vpop.f32.mrb[0].mxu0
        %2332 = vdwg.mxu0
        %2333 = vrot.lane.b32.xlu0 %v528, 104
        %v2334 = vpop.permute.xlu0 %2333
        %2335 = vrot.lane.b32.xlu0 %v612, 104
        %v2336 = vpop.permute.xlu0 %2335
        %v2337 = vsel %vm710, %v2334, 0
        %v2339 = vsel %vm710, %v2336, 0
        %2341 = vmatprep.subr.mxu0 0.0
        %2342 = vmatpush1.xpose.msra.mxu0 %v2339
        %2343 = vmatprep.subr.mxu0 0.0
        %2344 = vmatpush1.xpose.msra.mxu0 0.0
        %2345 = vmatprep.subr.mxu0 0.0
        %2346 = vmatpush1.xpose.msra.mxu0 0.0
        %2347 = vmatprep.subr.mxu0 0.0
        %2348 = vmatpush1.xpose.msra.mxu0 0.0
        %2349 = vmatprep.subr.mxu0 0.0
        %2350 = vmatpush1.xpose.msra.mxu0 0.0
        %2351 = vmatprep.subr.mxu0 0.0
        %2352 = vmatpush1.xpose.msra.mxu0 0.0
        %2353 = vmatprep.subr.mxu0 0.0
        %2354 = vmatpush1.xpose.msra.mxu0 0.0
        %2355 = vmatprep.subr.mxu0 0.0
        %2356 = vmatpush1.xpose.msra.mxu0 0.0
        %2357 = vmatprep.subr.mxu0 0.0
        %2358 = vmatpush1.xpose.msra.mxu0 0.0
        %2359 = vmatprep.subr.mxu0 0.0
        %2360 = vmatpush1.xpose.msra.mxu0 0.0
        %2361 = vmatprep.subr.mxu0 0.0
        %2362 = vmatpush1.xpose.msra.mxu0 0.0
        %2363 = vmatprep.subr.mxu0 0.0
        %2364 = vmatpush1.xpose.msra.mxu0 0.0
        %2365 = vmatprep.subr.mxu0 0.0
        %2366 = vmatpush1.xpose.msra.mxu0 0.0
        %2367 = vmatprep.subr.mxu0 0.0
        %2368 = vmatpush1.xpose.msra.mxu0 0.0
        %2369 = vmatprep.subr.mxu0 0.0
        %2370 = vmatpush1.xpose.msra.mxu0 0.0
        %2371 = vmatprep.subr.mxu0 0.0
        %2372 = vmatpush1.xpose.msra.mxu0 0.0
        %2373 = vmatprep.subr.mxu0 0.0
        %2374 = vmatpush1.xpose.msra.mxu0 0.0
        %2375 = vmatprep.subr.mxu0 0.0
        %2376 = vmatpush1.xpose.msra.mxu0 0.0
        %2377 = vmatprep.subr.mxu0 0.0
        %2378 = vmatpush1.xpose.msra.mxu0 0.0
        %2379 = vmatprep.subr.mxu0 0.0
        %2380 = vmatpush1.xpose.msra.mxu0 0.0
        %2381 = vmatprep.subr.mxu0 0.0
        %2382 = vmatpush1.xpose.msra.mxu0 0.0
        %2383 = vmatprep.subr.mxu0 0.0
        %2384 = vmatpush1.xpose.msra.mxu0 0.0
        %2385 = vmatprep.subr.mxu0 0.0
        %2386 = vmatpush1.xpose.msra.mxu0 0.0
        %2387 = vmatprep.subr.mxu0 0.0
        %2388 = vmatpush1.xpose.msra.mxu0 0.0
        %2389 = vmatprep.subr.mxu0 0.0
        %2390 = vmatpush1.xpose.msra.mxu0 0.0
        %2391 = vmatprep.subr.mxu0 0.0
        %2392 = vmatpush1.xpose.msra.mxu0 0.0
        %2393 = vmatprep.subr.mxu0 0.0
        %2394 = vmatpush1.xpose.msra.mxu0 0.0
        %2395 = vmatprep.subr.mxu0 0.0
        %2396 = vmatpush1.xpose.msra.mxu0 0.0
        %2397 = vmatprep.subr.mxu0 0.0
        %2398 = vmatpush1.xpose.msra.mxu0 0.0
        %2399 = vmatprep.subr.mxu0 0.0
        %2400 = vmatpush1.xpose.msra.mxu0 0.0
        %2401 = vmatprep.subr.mxu0 0.0
        %2402 = vmatpush1.xpose.msra.mxu0 0.0
        %2403 = vmatprep.subr.mxu0 0.0
        %2404 = vmatpush1.xpose.msra.mxu0 0.0
        %2405 = vmatprep.mubr.f32.mxu0 0.0
        %2406 = vmatmul.mubr.f32.gmra.mrb[0].mxu0 %v2337
        %v2407 = vpop.f32.mrb[0].mxu0
        %v2408 = vadd.f32 0.0, %v2407
        %v2409 = vpop.f32.mrb[0].mxu0
        %2410 = vdwg.mxu0
        %2411 = vrot.lane.b32.xlu0 %v533, 104
        %v2412 = vpop.permute.xlu0 %2411
        %2413 = vrot.lane.b32.xlu0 %v617, 104
        %v2414 = vpop.permute.xlu0 %2413
        %v2415 = vsel %vm710, %v2412, 0
        %v2417 = vsel %vm710, %v2414, 0
        %2419 = vmatprep.subr.mxu0 0.0
        %2420 = vmatpush1.xpose.msra.mxu0 %v2417
        %2421 = vmatprep.subr.mxu0 0.0
        %2422 = vmatpush1.xpose.msra.mxu0 0.0
        %2423 = vmatprep.subr.mxu0 0.0
        %2424 = vmatpush1.xpose.msra.mxu0 0.0
        %2425 = vmatprep.subr.mxu0 0.0
        %2426 = vmatpush1.xpose.msra.mxu0 0.0
        %2427 = vmatprep.subr.mxu0 0.0
        %2428 = vmatpush1.xpose.msra.mxu0 0.0
        %2429 = vmatprep.subr.mxu0 0.0
        %2430 = vmatpush1.xpose.msra.mxu0 0.0
        %2431 = vmatprep.subr.mxu0 0.0
        %2432 = vmatpush1.xpose.msra.mxu0 0.0
        %2433 = vmatprep.subr.mxu0 0.0
        %2434 = vmatpush1.xpose.msra.mxu0 0.0
        %2435 = vmatprep.subr.mxu0 0.0
        %2436 = vmatpush1.xpose.msra.mxu0 0.0
        %2437 = vmatprep.subr.mxu0 0.0
        %2438 = vmatpush1.xpose.msra.mxu0 0.0
        %2439 = vmatprep.subr.mxu0 0.0
        %2440 = vmatpush1.xpose.msra.mxu0 0.0
        %2441 = vmatprep.subr.mxu0 0.0
        %2442 = vmatpush1.xpose.msra.mxu0 0.0
        %2443 = vmatprep.subr.mxu0 0.0
        %2444 = vmatpush1.xpose.msra.mxu0 0.0
        %2445 = vmatprep.subr.mxu0 0.0
        %2446 = vmatpush1.xpose.msra.mxu0 0.0
        %2447 = vmatprep.subr.mxu0 0.0
        %2448 = vmatpush1.xpose.msra.mxu0 0.0
        %2449 = vmatprep.subr.mxu0 0.0
        %2450 = vmatpush1.xpose.msra.mxu0 0.0
        %2451 = vmatprep.subr.mxu0 0.0
        %2452 = vmatpush1.xpose.msra.mxu0 0.0
        %2453 = vmatprep.subr.mxu0 0.0
        %2454 = vmatpush1.xpose.msra.mxu0 0.0
        %2455 = vmatprep.subr.mxu0 0.0
        %2456 = vmatpush1.xpose.msra.mxu0 0.0
        %2457 = vmatprep.subr.mxu0 0.0
        %2458 = vmatpush1.xpose.msra.mxu0 0.0
        %2459 = vmatprep.subr.mxu0 0.0
        %2460 = vmatpush1.xpose.msra.mxu0 0.0
        %2461 = vmatprep.subr.mxu0 0.0
        %2462 = vmatpush1.xpose.msra.mxu0 0.0
        %2463 = vmatprep.subr.mxu0 0.0
        %2464 = vmatpush1.xpose.msra.mxu0 0.0
        %2465 = vmatprep.subr.mxu0 0.0
        %2466 = vmatpush1.xpose.msra.mxu0 0.0
        %2467 = vmatprep.subr.mxu0 0.0
        %2468 = vmatpush1.xpose.msra.mxu0 0.0
        %2469 = vmatprep.subr.mxu0 0.0
        %2470 = vmatpush1.xpose.msra.mxu0 0.0
        %2471 = vmatprep.subr.mxu0 0.0
        %2472 = vmatpush1.xpose.msra.mxu0 0.0
        %2473 = vmatprep.subr.mxu0 0.0
        %2474 = vmatpush1.xpose.msra.mxu0 0.0
        %2475 = vmatprep.subr.mxu0 0.0
        %2476 = vmatpush1.xpose.msra.mxu0 0.0
        %2477 = vmatprep.subr.mxu0 0.0
        %2478 = vmatpush1.xpose.msra.mxu0 0.0
        %2479 = vmatprep.subr.mxu0 0.0
        %2480 = vmatpush1.xpose.msra.mxu0 0.0
        %2481 = vmatprep.subr.mxu0 0.0
        %2482 = vmatpush1.xpose.msra.mxu0 0.0
        %2483 = vmatprep.mubr.f32.mxu0 0.0
        %2484 = vmatmul.mubr.f32.gmra.mrb[0].mxu0 %v2415
        %v2485 = vpop.f32.mrb[0].mxu0
        %v2486 = vadd.f32 0.0, %v2485
        %v2487 = vpop.f32.mrb[0].mxu0
        %2488 = vdwg.mxu0
        %vm2489 = vcmp.gt.f32.partialorder %v2330, 0.0
        %vm2490 = vcmp.gt.f32.partialorder %v2408, 0.0
        %vm2491 = vcmp.gt.f32.partialorder %v2486, 0.0
        %v2492 = vmul.f32 %v2330, 0.2
        %v2493 = vmul.f32 %v2408, 0.2
        %v2494 = vmul.f32 %v2486, 0.2
        %v2495 = vsel %vm2489, %v2330, %v2492
        %v2496 = vsel %vm2490, %v2408, %v2493
        %v2497 = vsel %vm2491, %v2486, %v2494
        %v2498 = vadd.f32 %v2495, %v707
        %v2499 = vadd.f32 %v2496, %v708
        %v2500 = vadd.f32 %v2497, %v709
        %v2501 = vsel %vm710, %v2498, -inf
        %2502 = vmax.xlane.f32.xlu0 %v2501
        %v2503 = vpop.xlane.xlu0 %2502
        %v2504 = vsel %vm710, %v2499, -inf
        %2505 = vmax.xlane.f32.xlu0 %v2504
        %v2506 = vpop.xlane.xlu0 %2505
        %v2507 = vsel %vm710, %v2500, -inf
        %2508 = vmax.xlane.f32.xlu0 %v2507
        %v2509 = vpop.xlane.xlu0 %2508
        %v2510 = vsub.f32 %v2498, %v2503
        %v2511 = vsub.f32 %v2499, %v2506
        %v2512 = vsub.f32 %v2500, %v2509
        %v2513 = vmul.f32 %v2510, 1.442695
        %v2514 = vpow.pop %v2513
        %v2515 = vmul.f32 %v2511, 1.442695
        %v2516 = vpow.pop %v2515
        %v2517 = vmul.f32 %v2512, 1.442695
        %v2518 = vpow.pop %v2517
        %v2519 = vsel %vm710, %v2514, 0.0
        %2520 = vadd.xlane.f32.xlu0 %v2519
        %v2521 = vpop.xlane.xlu0 %2520
        %v2522 = vsel %vm710, %v2516, 0.0
        %2523 = vadd.xlane.f32.xlu0 %v2522
        %v2524 = vpop.xlane.xlu0 %2523
        %v2525 = vsel %vm710, %v2518, 0.0
        %2526 = vadd.xlane.f32.xlu0 %v2525
        %v2527 = vpop.xlane.xlu0 %2526
        %v2528 = vrcp.pop %v2521
        %v2529 = vrcp.pop %v2524
        %v2530 = vrcp.pop %v2527
        %v2531 = vmul.f32 %v2514, %v2528
        %v2532 = vmul.f32 %v2516, %v2529
        %v2533 = vmul.f32 %v2518, %v2530
        %2534 = vrot.lane.b32.xlu0 %v691, 104
        %v2535 = vpop.permute.xlu0 %2534
        %v2538 = vsel %vm710, %v2531, 0
        %2540 = vmatprep.subr.mxu0 0.0
        %2541 = vmatpush1.msra.mxu0 %v2535
        %2542 = vmatprep.subr.mxu0 0.0
        %2543 = vmatpush1.msra.mxu0 0.0
        %2544 = vmatprep.subr.mxu0 0.0
        %2545 = vmatpush1.msra.mxu0 0.0
        %2546 = vmatprep.subr.mxu0 0.0
        %2547 = vmatpush1.msra.mxu0 0.0
        %2548 = vmatprep.subr.mxu0 0.0
        %2549 = vmatpush1.msra.mxu0 0.0
        %2550 = vmatprep.subr.mxu0 0.0
        %2551 = vmatpush1.msra.mxu0 0.0
        %2552 = vmatprep.subr.mxu0 0.0
        %2553 = vmatpush1.msra.mxu0 0.0
        %2554 = vmatprep.subr.mxu0 0.0
        %2555 = vmatpush1.msra.mxu0 0.0
        %2556 = vmatprep.subr.mxu0 0.0
        %2557 = vmatpush1.msra.mxu0 0.0
        %2558 = vmatprep.subr.mxu0 0.0
        %2559 = vmatpush1.msra.mxu0 0.0
        %2560 = vmatprep.subr.mxu0 0.0
        %2561 = vmatpush1.msra.mxu0 0.0
        %2562 = vmatprep.subr.mxu0 0.0
        %2563 = vmatpush1.msra.mxu0 0.0
        %2564 = vmatprep.subr.mxu0 0.0
        %2565 = vmatpush1.msra.mxu0 0.0
        %2566 = vmatprep.subr.mxu0 0.0
        %2567 = vmatpush1.msra.mxu0 0.0
        %2568 = vmatprep.subr.mxu0 0.0
        %2569 = vmatpush1.msra.mxu0 0.0
        %2570 = vmatprep.subr.mxu0 0.0
        %2571 = vmatpush1.msra.mxu0 0.0
        %2572 = vmatprep.subr.mxu0 0.0
        %2573 = vmatpush1.msra.mxu0 0.0
        %2574 = vmatprep.subr.mxu0 0.0
        %2575 = vmatpush1.msra.mxu0 0.0
        %2576 = vmatprep.subr.mxu0 0.0
        %2577 = vmatpush1.msra.mxu0 0.0
        %2578 = vmatprep.subr.mxu0 0.0
        %2579 = vmatpush1.msra.mxu0 0.0
        %2580 = vmatprep.subr.mxu0 0.0
        %2581 = vmatpush1.msra.mxu0 0.0
        %2582 = vmatprep.subr.mxu0 0.0
        %2583 = vmatpush1.msra.mxu0 0.0
        %2584 = vmatprep.subr.mxu0 0.0
        %2585 = vmatpush1.msra.mxu0 0.0
        %2586 = vmatprep.subr.mxu0 0.0
        %2587 = vmatpush1.msra.mxu0 0.0
        %2588 = vmatprep.subr.mxu0 0.0
        %2589 = vmatpush1.msra.mxu0 0.0
        %2590 = vmatprep.subr.mxu0 0.0
        %2591 = vmatpush1.msra.mxu0 0.0
        %2592 = vmatprep.subr.mxu0 0.0
        %2593 = vmatpush1.msra.mxu0 0.0
        %2594 = vmatprep.subr.mxu0 0.0
        %2595 = vmatpush1.msra.mxu0 0.0
        %2596 = vmatprep.subr.mxu0 0.0
        %2597 = vmatpush1.msra.mxu0 0.0
        %2598 = vmatprep.subr.mxu0 0.0
        %2599 = vmatpush1.msra.mxu0 0.0
        %2600 = vmatprep.subr.mxu0 0.0
        %2601 = vmatpush1.msra.mxu0 0.0
        %2602 = vmatprep.subr.mxu0 0.0
        %2603 = vmatpush1.msra.mxu0 0.0
        %2604 = vmatprep.mubr.f32.mxu0 0.0
        %2605 = vmatmul.mubr.f32.gmra.mrb[0].mxu0 %v2538
        %v2606 = vpop.f32.mrb[0].mxu0
        %v2607 = vadd.f32 0.0, %v2606
        %v2608 = vpop.f32.mrb[0].mxu0
        %2609 = vdwg.mxu0
        %2610 = vrot.lane.b32.xlu0 %v696, 104
        %v2611 = vpop.permute.xlu0 %2610
        %v2614 = vsel %vm710, %v2532, 0
        %2616 = vmatprep.subr.mxu0 0.0
        %2617 = vmatpush1.msra.mxu0 %v2611
        %2618 = vmatprep.subr.mxu0 0.0
        %2619 = vmatpush1.msra.mxu0 0.0
        %2620 = vmatprep.subr.mxu0 0.0
        %2621 = vmatpush1.msra.mxu0 0.0
        %2622 = vmatprep.subr.mxu0 0.0
        %2623 = vmatpush1.msra.mxu0 0.0
        %2624 = vmatprep.subr.mxu0 0.0
        %2625 = vmatpush1.msra.mxu0 0.0
        %2626 = vmatprep.subr.mxu0 0.0
        %2627 = vmatpush1.msra.mxu0 0.0
        %2628 = vmatprep.subr.mxu0 0.0
        %2629 = vmatpush1.msra.mxu0 0.0
        %2630 = vmatprep.subr.mxu0 0.0
        %2631 = vmatpush1.msra.mxu0 0.0
        %2632 = vmatprep.subr.mxu0 0.0
        %2633 = vmatpush1.msra.mxu0 0.0
        %2634 = vmatprep.subr.mxu0 0.0
        %2635 = vmatpush1.msra.mxu0 0.0
        %2636 = vmatprep.subr.mxu0 0.0
        %2637 = vmatpush1.msra.mxu0 0.0
        %2638 = vmatprep.subr.mxu0 0.0
        %2639 = vmatpush1.msra.mxu0 0.0
        %2640 = vmatprep.subr.mxu0 0.0
        %2641 = vmatpush1.msra.mxu0 0.0
        %2642 = vmatprep.subr.mxu0 0.0
        %2643 = vmatpush1.msra.mxu0 0.0
        %2644 = vmatprep.subr.mxu0 0.0
        %2645 = vmatpush1.msra.mxu0 0.0
        %2646 = vmatprep.subr.mxu0 0.0
        %2647 = vmatpush1.msra.mxu0 0.0
        %2648 = vmatprep.subr.mxu0 0.0
        %2649 = vmatpush1.msra.mxu0 0.0
        %2650 = vmatprep.subr.mxu0 0.0
        %2651 = vmatpush1.msra.mxu0 0.0
        %2652 = vmatprep.subr.mxu0 0.0
        %2653 = vmatpush1.msra.mxu0 0.0
        %2654 = vmatprep.subr.mxu0 0.0
        %2655 = vmatpush1.msra.mxu0 0.0
        %2656 = vmatprep.subr.mxu0 0.0
        %2657 = vmatpush1.msra.mxu0 0.0
        %2658 = vmatprep.subr.mxu0 0.0
        %2659 = vmatpush1.msra.mxu0 0.0
        %2660 = vmatprep.subr.mxu0 0.0
        %2661 = vmatpush1.msra.mxu0 0.0
        %2662 = vmatprep.subr.mxu0 0.0
        %2663 = vmatpush1.msra.mxu0 0.0
        %2664 = vmatprep.subr.mxu0 0.0
        %2665 = vmatpush1.msra.mxu0 0.0
        %2666 = vmatprep.subr.mxu0 0.0
        %2667 = vmatpush1.msra.mxu0 0.0
        %2668 = vmatprep.subr.mxu0 0.0
        %2669 = vmatpush1.msra.mxu0 0.0
        %2670 = vmatprep.subr.mxu0 0.0
        %2671 = vmatpush1.msra.mxu0 0.0
        %2672 = vmatprep.subr.mxu0 0.0
        %2673 = vmatpush1.msra.mxu0 0.0
        %2674 = vmatprep.subr.mxu0 0.0
        %2675 = vmatpush1.msra.mxu0 0.0
        %2676 = vmatprep.subr.mxu0 0.0
        %2677 = vmatpush1.msra.mxu0 0.0
        %2678 = vmatprep.subr.mxu0 0.0
        %2679 = vmatpush1.msra.mxu0 0.0
        %2680 = vmatprep.mubr.f32.mxu0 0.0
        %2681 = vmatmul.mubr.f32.gmra.mrb[0].mxu0 %v2614
        %v2682 = vpop.f32.mrb[0].mxu0
        %v2683 = vadd.f32 0.0, %v2682
        %v2684 = vpop.f32.mrb[0].mxu0
        %2685 = vdwg.mxu0
        %2686 = vrot.lane.b32.xlu0 %v701, 104
        %v2687 = vpop.permute.xlu0 %2686
        %v2690 = vsel %vm710, %v2533, 0
        %2692 = vmatprep.subr.mxu0 0.0
        %2693 = vmatpush1.msra.mxu0 %v2687
        %2694 = vmatprep.subr.mxu0 0.0
        %2695 = vmatpush1.msra.mxu0 0.0
        %2696 = vmatprep.subr.mxu0 0.0
        %2697 = vmatpush1.msra.mxu0 0.0
        %2698 = vmatprep.subr.mxu0 0.0
        %2699 = vmatpush1.msra.mxu0 0.0
        %2700 = vmatprep.subr.mxu0 0.0
        %2701 = vmatpush1.msra.mxu0 0.0
        %2702 = vmatprep.subr.mxu0 0.0
        %2703 = vmatpush1.msra.mxu0 0.0
        %2704 = vmatprep.subr.mxu0 0.0
        %2705 = vmatpush1.msra.mxu0 0.0
        %2706 = vmatprep.subr.mxu0 0.0
        %2707 = vmatpush1.msra.mxu0 0.0
        %2708 = vmatprep.subr.mxu0 0.0
        %2709 = vmatpush1.msra.mxu0 0.0
        %2710 = vmatprep.subr.mxu0 0.0
        %2711 = vmatpush1.msra.mxu0 0.0
        %2712 = vmatprep.subr.mxu0 0.0
        %2713 = vmatpush1.msra.mxu0 0.0
        %2714 = vmatprep.subr.mxu0 0.0
        %2715 = vmatpush1.msra.mxu0 0.0
        %2716 = vmatprep.subr.mxu0 0.0
        %2717 = vmatpush1.msra.mxu0 0.0
        %2718 = vmatprep.subr.mxu0 0.0
        %2719 = vmatpush1.msra.mxu0 0.0
        %2720 = vmatprep.subr.mxu0 0.0
        %2721 = vmatpush1.msra.mxu0 0.0
        %2722 = vmatprep.subr.mxu0 0.0
        %2723 = vmatpush1.msra.mxu0 0.0
        %2724 = vmatprep.subr.mxu0 0.0
        %2725 = vmatpush1.msra.mxu0 0.0
        %2726 = vmatprep.subr.mxu0 0.0
        %2727 = vmatpush1.msra.mxu0 0.0
        %2728 = vmatprep.subr.mxu0 0.0
        %2729 = vmatpush1.msra.mxu0 0.0
        %2730 = vmatprep.subr.mxu0 0.0
        %2731 = vmatpush1.msra.mxu0 0.0
        %2732 = vmatprep.subr.mxu0 0.0
        %2733 = vmatpush1.msra.mxu0 0.0
        %2734 = vmatprep.subr.mxu0 0.0
        %2735 = vmatpush1.msra.mxu0 0.0
        %2736 = vmatprep.subr.mxu0 0.0
        %2737 = vmatpush1.msra.mxu0 0.0
        %2738 = vmatprep.subr.mxu0 0.0
        %2739 = vmatpush1.msra.mxu0 0.0
        %2740 = vmatprep.subr.mxu0 0.0
        %2741 = vmatpush1.msra.mxu0 0.0
        %2742 = vmatprep.subr.mxu0 0.0
        %2743 = vmatpush1.msra.mxu0 0.0
        %2744 = vmatprep.subr.mxu0 0.0
        %2745 = vmatpush1.msra.mxu0 0.0
        %2746 = vmatprep.subr.mxu0 0.0
        %2747 = vmatpush1.msra.mxu0 0.0
        %2748 = vmatprep.subr.mxu0 0.0
        %2749 = vmatpush1.msra.mxu0 0.0
        %2750 = vmatprep.subr.mxu0 0.0
        %2751 = vmatpush1.msra.mxu0 0.0
        %2752 = vmatprep.subr.mxu0 0.0
        %2753 = vmatpush1.msra.mxu0 0.0
        %2754 = vmatprep.subr.mxu0 0.0
        %2755 = vmatpush1.msra.mxu0 0.0
        %2756 = vmatprep.mubr.f32.mxu0 0.0
        %2757 = vmatmul.mubr.f32.gmra.mrb[0].mxu0 %v2690
        %v2758 = vpop.f32.mrb[0].mxu0
        %v2759 = vadd.f32 0.0, %v2758
        %v2760 = vpop.f32.mrb[0].mxu0
        %2761 = vdwg.mxu0
        %2765 = vrot.lane.b32.xlu0 %v2607, 24
        %v2766 = vpop.permute.xlu0 %2765
        %2767 = vrot.lane.b32.xlu0 %v2683, 24
        %v2768 = vpop.permute.xlu0 %2767
        %2769 = vrot.lane.b32.xlu0 %v2759, 24
        %v2770 = vpop.permute.xlu0 %2769
        %vm2774 = vcmask 261312
        %2775 = vst.msk [vmem:[#allocation2] sm:$0xff] %vm2774, %v2766
        %2776 = vst.msk [vmem:[#allocation2 + $0x8] sm:$0xff] %vm2774, %v2768
        %2777 = vst.msk [vmem:[#allocation2 + $0x10] sm:$0xff] %vm2774, %v2770
        %v2778 = vld [vmem:[#allocation2] sm:$0xff]
        %v2779 = vld [vmem:[#allocation2 + $0x8] sm:$0xff]
        %v2780 = vld [vmem:[#allocation2 + $0x10] sm:$0xff]
        %v2781 = vld [vmem:[%s7] sm:$0x1]
        %v2782 = vld [vmem:[%s7 + $0x1] sm:$0x1]
        %v2783 = vld [vmem:[%s7 + $0x2] sm:$0x1]
        %v2784 = vld [vmem:[%s7 + $0x3] sm:$0x1]
        %v2785 = vsel %vm446, %v2778, 0.0
        %2786 = vadd.xlane.f32.xlu0 %v2785
        %v2787 = vpop.xlane.xlu0 %2786
        %v2788 = vsel %vm446, %v2779, 0.0
        %2789 = vadd.xlane.f32.xlu0 %v2788
        %v2790 = vpop.xlane.xlu0 %2789
        %v2791 = vsel %vm446, %v2780, 0.0
        %2792 = vadd.xlane.f32.xlu0 %v2791
        %v2793 = vpop.xlane.xlu0 %2792
        %v2794 = vrcp.pop 32.0
        %v2795 = vmul.f32 %v2787, %v2794
        %v2796 = vmul.f32 %v2790, %v2794
        %v2797 = vmul.f32 %v2793, %v2794
        %v2798 = vsub.f32 %v2778, %v2795
        %v2799 = vsub.f32 %v2779, %v2796
        %v2800 = vsub.f32 %v2780, %v2797
        %v2801 = vmul.f32 %v2798, %v2798
        %v2802 = vmul.f32 %v2799, %v2799
        %v2803 = vmul.f32 %v2800, %v2800
        %v2804 = vsel %vm446, %v2801, 0.0
        %2805 = vadd.xlane.f32.xlu0 %v2804
        %v2806 = vpop.xlane.xlu0 %2805
        %v2807 = vsel %vm446, %v2802, 0.0
        %2808 = vadd.xlane.f32.xlu0 %v2807
        %v2809 = vpop.xlane.xlu0 %2808
        %v2810 = vsel %vm446, %v2803, 0.0
        %2811 = vadd.xlane.f32.xlu0 %v2810
        %v2812 = vpop.xlane.xlu0 %2811
        %v2813 = vmul.f32 %v2806, %v2794
        %v2814 = vmul.f32 %v2809, %v2794
        %v2815 = vmul.f32 %v2812, %v2794
        %v2816 = vadd.f32 %v2813, 1e-05
        %v2817 = vadd.f32 %v2814, 1e-05
        %v2818 = vadd.f32 %v2815, 1e-05
        %v2819 = vrsqrt.pop %v2816
        %v2820 = vrsqrt.pop %v2817
        %v2821 = vrsqrt.pop %v2818
        %v2822 = vmul.f32 %v2798, %v2819
        %v2823 = vmul.f32 %v2799, %v2820
        %v2824 = vmul.f32 %v2800, %v2821
        %v2825 = vlaneseq
        %v2826 = vshrl.u32 %v2825, 7
        %v2827 = vsub.s32 0, %v2826
        %v2828 = vrot.slane %v2781, %v2827
        %v2829 = vmul.f32 %v2822, %v2828
        %v2830 = vmul.f32 %v2823, %v2828
        %v2831 = vmul.f32 %v2824, %v2828
        %v2832 = vlaneseq
        %v2833 = vshrl.u32 %v2832, 7
        %v2834 = vsub.s32 0, %v2833
        %v2835 = vrot.slane %v2782, %v2834
        %v2836 = vadd.f32 %v2829, %v2835
        %v2837 = vadd.f32 %v2830, %v2835
        %v2838 = vadd.f32 %v2831, %v2835
        %v2839 = vld [vmem:[#allocation12] sm:$0xff]
        %v2840 = vld [vmem:[#allocation12 + $0x8] sm:$0xff]
        %v2841 = vld [vmem:[#allocation12 + $0x10] sm:$0xff]
        %v2842 = vld [vmem:[#allocation12 + $0x18] sm:$0xff]
        %v2843 = vld [vmem:[#allocation14] sm:$0xff]
        %v2844 = vld [vmem:[#allocation14 + $0x8] sm:$0xff]
        %v2845 = vld [vmem:[#allocation14 + $0x10] sm:$0xff]
        %v2846 = vld [vmem:[#allocation14 + $0x18] sm:$0xff]
        %2847 = vmatprep.subr.mxu0 0.0
        %2848 = vmatpush1.msra.mxu0 %v2843
        %2849 = vmatprep.subr.mxu0 0.0
        %2850 = vmatpush1.msra.mxu0 %v2844
        %2851 = vmatprep.subr.mxu0 0.0
        %2852 = vmatpush1.msra.mxu0 %v2845
        %2853 = vmatprep.subr.mxu0 0.0
        %2854 = vmatpush1.msra.mxu0 %v2846
        %2855 = vmatprep.subr.mxu0 0.0
        %2856 = vmatpush1.msra.mxu0 0.0
        %2857 = vmatprep.subr.mxu0 0.0
        %2858 = vmatpush1.msra.mxu0 0.0
        %2859 = vmatprep.subr.mxu0 0.0
        %2860 = vmatpush1.msra.mxu0 0.0
        %2861 = vmatprep.subr.mxu0 0.0
        %2862 = vmatpush1.msra.mxu0 0.0
        %2863 = vmatprep.subr.mxu0 0.0
        %2864 = vmatpush1.msra.mxu0 0.0
        %2865 = vmatprep.subr.mxu0 0.0
        %2866 = vmatpush1.msra.mxu0 0.0
        %2867 = vmatprep.subr.mxu0 0.0
        %2868 = vmatpush1.msra.mxu0 0.0
        %2869 = vmatprep.subr.mxu0 0.0
        %2870 = vmatpush1.msra.mxu0 0.0
        %2871 = vmatprep.subr.mxu0 0.0
        %2872 = vmatpush1.msra.mxu0 0.0
        %2873 = vmatprep.subr.mxu0 0.0
        %2874 = vmatpush1.msra.mxu0 0.0
        %2875 = vmatprep.subr.mxu0 0.0
        %2876 = vmatpush1.msra.mxu0 0.0
        %2877 = vmatprep.subr.mxu0 0.0
        %2878 = vmatpush1.msra.mxu0 0.0
        %2879 = vmatprep.subr.mxu0 0.0
        %2880 = vmatpush1.msra.mxu0 0.0
        %2881 = vmatprep.subr.mxu0 0.0
        %2882 = vmatpush1.msra.mxu0 0.0
        %2883 = vmatprep.subr.mxu0 0.0
        %2884 = vmatpush1.msra.mxu0 0.0
        %2885 = vmatprep.subr.mxu0 0.0
        %2886 = vmatpush1.msra.mxu0 0.0
        %2887 = vmatprep.subr.mxu0 0.0
        %2888 = vmatpush1.msra.mxu0 0.0
        %2889 = vmatprep.subr.mxu0 0.0
        %2890 = vmatpush1.msra.mxu0 0.0
        %2891 = vmatprep.subr.mxu0 0.0
        %2892 = vmatpush1.msra.mxu0 0.0
        %2893 = vmatprep.subr.mxu0 0.0
        %2894 = vmatpush1.msra.mxu0 0.0
        %2895 = vmatprep.subr.mxu0 0.0
        %2896 = vmatpush1.msra.mxu0 0.0
        %2897 = vmatprep.subr.mxu0 0.0
        %2898 = vmatpush1.msra.mxu0 0.0
        %2899 = vmatprep.subr.mxu0 0.0
        %2900 = vmatpush1.msra.mxu0 0.0
        %2901 = vmatprep.subr.mxu0 0.0
        %2902 = vmatpush1.msra.mxu0 0.0
        %2903 = vmatprep.subr.mxu0 0.0
        %2904 = vmatpush1.msra.mxu0 0.0
        %2905 = vmatprep.subr.mxu0 0.0
        %2906 = vmatpush1.msra.mxu0 0.0
        %2907 = vmatprep.subr.mxu0 0.0
        %2908 = vmatpush1.msra.mxu0 0.0
        %2909 = vmatprep.subr.mxu0 0.0
        %2910 = vmatpush1.msra.mxu0 0.0
        %2911 = vmatprep.mubr.f32.mxu0 0.0
        %2912 = vmatmul.mubr.f32.gmra.mrb[0].mxu0 %v448
        %v2913 = vpop.f32.mrb[0].mxu0
        %v2914 = vadd.f32 0.0, %v2913
        %v2915 = vpop.f32.mrb[0].mxu0
        %2916 = vmatprep.mubr.f32.mxu0 0.0
        %2917 = vmatmul.mubr.f32.gmra.mrb[0].mxu0 %v451
        %v2918 = vpop.f32.mrb[0].mxu0
        %v2919 = vadd.f32 0.0, %v2918
        %v2920 = vpop.f32.mrb[0].mxu0
        %2921 = vmatprep.mubr.f32.mxu0 0.0
        %2922 = vmatmul.mubr.f32.gmra.mrb[0].mxu0 %v454
        %v2923 = vpop.f32.mrb[0].mxu0
        %v2924 = vadd.f32 0.0, %v2923
        %v2925 = vpop.f32.mrb[0].mxu0
        %2926 = vdwg.mxu0
        %v2928 = vsel %vm446, %v2836, 0
        %v2931 = vsel %vm446, %v2837, 0
        %v2934 = vsel %vm446, %v2838, 0
        %2936 = vmatprep.subr.mxu0 0.0
        %2937 = vmatpush1.msra.mxu0 %v2839
        %2938 = vmatprep.subr.mxu0 0.0
        %2939 = vmatpush1.msra.mxu0 %v2840
        %2940 = vmatprep.subr.mxu0 0.0
        %2941 = vmatpush1.msra.mxu0 %v2841
        %2942 = vmatprep.subr.mxu0 0.0
        %2943 = vmatpush1.msra.mxu0 %v2842
        %2944 = vmatprep.subr.mxu0 0.0
        %2945 = vmatpush1.msra.mxu0 0.0
        %2946 = vmatprep.subr.mxu0 0.0
        %2947 = vmatpush1.msra.mxu0 0.0
        %2948 = vmatprep.subr.mxu0 0.0
        %2949 = vmatpush1.msra.mxu0 0.0
        %2950 = vmatprep.subr.mxu0 0.0
        %2951 = vmatpush1.msra.mxu0 0.0
        %2952 = vmatprep.subr.mxu0 0.0
        %2953 = vmatpush1.msra.mxu0 0.0
        %2954 = vmatprep.subr.mxu0 0.0
        %2955 = vmatpush1.msra.mxu0 0.0
        %2956 = vmatprep.subr.mxu0 0.0
        %2957 = vmatpush1.msra.mxu0 0.0
        %2958 = vmatprep.subr.mxu0 0.0
        %2959 = vmatpush1.msra.mxu0 0.0
        %2960 = vmatprep.subr.mxu0 0.0
        %2961 = vmatpush1.msra.mxu0 0.0
        %2962 = vmatprep.subr.mxu0 0.0
        %2963 = vmatpush1.msra.mxu0 0.0
        %2964 = vmatprep.subr.mxu0 0.0
        %2965 = vmatpush1.msra.mxu0 0.0
        %2966 = vmatprep.subr.mxu0 0.0
        %2967 = vmatpush1.msra.mxu0 0.0
        %2968 = vmatprep.subr.mxu0 0.0
        %2969 = vmatpush1.msra.mxu0 0.0
        %2970 = vmatprep.subr.mxu0 0.0
        %2971 = vmatpush1.msra.mxu0 0.0
        %2972 = vmatprep.subr.mxu0 0.0
        %2973 = vmatpush1.msra.mxu0 0.0
        %2974 = vmatprep.subr.mxu0 0.0
        %2975 = vmatpush1.msra.mxu0 0.0
        %2976 = vmatprep.subr.mxu0 0.0
        %2977 = vmatpush1.msra.mxu0 0.0
        %2978 = vmatprep.subr.mxu0 0.0
        %2979 = vmatpush1.msra.mxu0 0.0
        %2980 = vmatprep.subr.mxu0 0.0
        %2981 = vmatpush1.msra.mxu0 0.0
        %2982 = vmatprep.subr.mxu0 0.0
        %2983 = vmatpush1.msra.mxu0 0.0
        %2984 = vmatprep.subr.mxu0 0.0
        %2985 = vmatpush1.msra.mxu0 0.0
        %2986 = vmatprep.subr.mxu0 0.0
        %2987 = vmatpush1.msra.mxu0 0.0
        %2988 = vmatprep.subr.mxu0 0.0
        %2989 = vmatpush1.msra.mxu0 0.0
        %2990 = vmatprep.subr.mxu0 0.0
        %2991 = vmatpush1.msra.mxu0 0.0
        %2992 = vmatprep.subr.mxu0 0.0
        %2993 = vmatpush1.msra.mxu0 0.0
        %2994 = vmatprep.subr.mxu0 0.0
        %2995 = vmatpush1.msra.mxu0 0.0
        %2996 = vmatprep.subr.mxu0 0.0
        %2997 = vmatpush1.msra.mxu0 0.0
        %2998 = vmatprep.subr.mxu0 0.0
        %2999 = vmatpush1.msra.mxu0 0.0
        %3000 = vmatprep.mubr.f32.mxu0 0.0
        %3001 = vmatmul.mubr.f32.gmra.mrb[0].mxu0 %v2928
        %v3002 = vpop.f32.mrb[0].mxu0
        %v3003 = vadd.f32 %v2914, %v3002
        %v3004 = vpop.f32.mrb[0].mxu0
        %3005 = vmatprep.mubr.f32.mxu0 0.0
        %3006 = vmatmul.mubr.f32.gmra.mrb[0].mxu0 %v2931
        %v3007 = vpop.f32.mrb[0].mxu0
        %v3008 = vadd.f32 %v2919, %v3007
        %v3009 = vpop.f32.mrb[0].mxu0
        %3010 = vmatprep.mubr.f32.mxu0 0.0
        %3011 = vmatmul.mubr.f32.gmra.mrb[0].mxu0 %v2934
        %v3012 = vpop.f32.mrb[0].mxu0
        %v3013 = vadd.f32 %v2924, %v3012
        %v3014 = vpop.f32.mrb[0].mxu0
        %3015 = vdwg.mxu0
        %v3016 = vsel %vm446, %v3003, 0.0
        %3017 = vadd.xlane.f32.xlu0 %v3016
        %v3018 = vpop.xlane.xlu0 %3017
        %v3019 = vsel %vm446, %v3008, 0.0
        %3020 = vadd.xlane.f32.xlu0 %v3019
        %v3021 = vpop.xlane.xlu0 %3020
        %v3022 = vsel %vm446, %v3013, 0.0
        %3023 = vadd.xlane.f32.xlu0 %v3022
        %v3024 = vpop.xlane.xlu0 %3023
        %v3025 = vmul.f32 %v3018, %v2794
        %v3026 = vmul.f32 %v3021, %v2794
        %v3027 = vmul.f32 %v3024, %v2794
        %v3028 = vsub.f32 %v3003, %v3025
        %v3029 = vsub.f32 %v3008, %v3026
        %v3030 = vsub.f32 %v3013, %v3027
        %v3031 = vmul.f32 %v3028, %v3028
        %v3032 = vmul.f32 %v3029, %v3029
        %v3033 = vmul.f32 %v3030, %v3030
        %v3034 = vsel %vm446, %v3031, 0.0
        %3035 = vadd.xlane.f32.xlu0 %v3034
        %v3036 = vpop.xlane.xlu0 %3035
        %v3037 = vsel %vm446, %v3032, 0.0
        %3038 = vadd.xlane.f32.xlu0 %v3037
        %v3039 = vpop.xlane.xlu0 %3038
        %v3040 = vsel %vm446, %v3033, 0.0
        %3041 = vadd.xlane.f32.xlu0 %v3040
        %v3042 = vpop.xlane.xlu0 %3041
        %v3043 = vmul.f32 %v3036, %v2794
        %v3044 = vmul.f32 %v3039, %v2794
        %v3045 = vmul.f32 %v3042, %v2794
        %v3046 = vadd.f32 %v3043, 1e-05
        %v3047 = vadd.f32 %v3044, 1e-05
        %v3048 = vadd.f32 %v3045, 1e-05
        %v3049 = vrsqrt.pop %v3046
        %v3050 = vrsqrt.pop %v3047
        %v3051 = vrsqrt.pop %v3048
        %v3052 = vmul.f32 %v3028, %v3049
        %v3053 = vmul.f32 %v3029, %v3050
        %v3054 = vmul.f32 %v3030, %v3051
        %v3055 = vlaneseq
        %v3056 = vshrl.u32 %v3055, 7
        %v3057 = vsub.s32 0, %v3056
        %v3058 = vrot.slane %v2783, %v3057
        %v3059 = vmul.f32 %v3052, %v3058
        %v3060 = vmul.f32 %v3053, %v3058
        %v3061 = vmul.f32 %v3054, %v3058
        %v3062 = vlaneseq
        %v3063 = vshrl.u32 %v3062, 7
        %v3064 = vsub.s32 0, %v3063
        %v3065 = vrot.slane %v2784, %v3064
        %v3066 = vadd.f32 %v3059, %v3065
        %v3067 = vadd.f32 %v3060, %v3065
        %v3068 = vadd.f32 %v3061, %v3065
        %v3069 = vadd.f32 %v3066, %v439
        %v3070 = vadd.f32 %v3067, %v440
        %v3071 = vadd.f32 %v3068, %v441
        %3072 = vst.msk [vmem:[%s435] sm:$0xff] %vm446, %v3069
        %3073 = vst.msk [vmem:[%s435 + $0x8] sm:$0xff] %vm446, %v3070
        %3074 = vst.msk [vmem:[%s435 + $0x10] sm:$0xff] %vm446, %v3071
        %s3075 = sand.u32 %s216, 1
        %s3076 = scalar_lea.sflag [#allocation5], %s3075
        %s3077 = sand.u32 %s216, 1
        %s3078 = smul.addr %s3077, 24
        %s3079 = scalar_lea.vmem [#allocation15], %s3078
        // Predicated region
        $region81: #{tpu_custom_call.1} parent=51 // pred_check
          %p3080 = pneg %p226
        $region82: #{tpu_custom_call.1} parent=51 // pred_check_branch
          %3082 = sbr.rel (%p3080) target = $region84
        $region83: #{tpu_custom_call.1} parent=51 // pred_region
          %s3083 = smul.u32 3, %s30
          %s3085 = ssub.s32 384, 384
          %3086 = vsyncadd %s3076, %s3085
          %s3087 = smul.addr %s3083, 128
          %s3088 = scalar_lea.hbm %s8, %s3087
          %s3089 = sshll.u32 %s3079, 4
          %s3090 = int_to_ptr.vmem [resolvable:$true] %s3089
          %3095 = dma.vmem_to_hbm [thread:$0]  %s3090, 384, %s3088, %s3076, 128, 128, 8
        $region84: #{tpu_custom_call.1} parent=51 // pred_fallthru
          _
      $region52: #{tpu_custom_call.1} parent=5 // pred_fallthru
        _
      %p3096 = scmp.le.s32.totalorder 2, %s25
      // Predicated region
      $region85: #{tpu_custom_call.1} parent=5 // pred_check
        %p3097 = pneg %p3096
      $region86: #{tpu_custom_call.1} parent=5 // pred_check_branch
        %3099 = sbr.rel (%p3097) target = $region88
      $region87: #{tpu_custom_call.1} parent=5 // pred_region
        %s3100 = ssub.s32 %s25, 2
        // Predicated region
        $region89: #{tpu_custom_call.1} parent=87 // pred_check
          %p3101 = pneg %p232
        $region90: #{tpu_custom_call.1} parent=87 // pred_check_branch
          %3103 = sbr.rel (%p3101) target = $region92
        $region91: #{tpu_custom_call.1} parent=87 // pred_region
          %s3104 = sand.u32 %s217, 1
          %s3105 = scalar_lea.sflag [#allocation5], %s3104
          %s3106 = sand.u32 %s217, 1
          %s3107 = smul.addr %s3106, 24
          %s3108 = scalar_lea.vmem [#allocation15], %s3107
          %3109 = dma.done %s3105, 384
        $region92: #{tpu_custom_call.1} parent=87 // pred_fallthru
          _
      $region88: #{tpu_custom_call.1} parent=5 // pred_fallthru
        _
    $region6: #{tpu_custom_call.1} parent=1 // loop_footer
      %s29 = sadd.s32 1, %s25
    $region7: #{tpu_custom_call.1} parent=1 // loop_footer_branch
      %24 = sbr.rel target = $region3
    $region8: #{tpu_custom_call.1} parent=1 // loop_exit
      _
    %3110 = vsyncpa [#allocation4], 1
    %s3111 = scalar_lea.sflag [#allocation4], 1
    %3112 = vsyncpa %s3111, 1
    %3113 = vsyncpa [#allocation7], 1
    %s3114 = scalar_lea.sflag [#allocation7], 1
    %3115 = vsyncpa %s3114, 1
    %3116 = vsyncpa [#allocation10], 1
    %3117 = vsyncpa [#allocation13], 1
    %3118 = vsyncpa [#allocation5], 1
    %s3119 = scalar_lea.sflag [#allocation5], 1
    %3120 = vsyncpa %s3119, 1

</llo_original>
